<compile_context>
chip_gen: v6e
topology: v6e:2x2x1
jax: 0.10.0
libtpu: 0.0.40
codegen_flags: <defaults>
</compile_context>

<pallas_src>
import jax
import jax.numpy as jnp
from jax.experimental import pallas as pl
from jax.experimental.pallas import tpu as pltpu


# ----------------------------------------------------------------------------
# Kernel
# ----------------------------------------------------------------------------
def _build_kernel(bt, C, H, W, Fp):
    """One grid step processes `bt` images, each a lane-dense (C, Fp) slab."""
    HW = H + W
    f32 = jnp.float32

    def kernel(x_ref, selp_ref, eh_ref, ew_ref, w1h_ref, w1w_ref, b1_ref,
               wh_ref, bh_ref, ww_ref, bw_ref, o_ref):
        x3 = x_ref[...]                              # (bt, C, Fp), input dtype
        x2 = x3.reshape(bt * C, Fp)                  # leading-dim merge (layout no-op, C % 8 == 0)

        # 0/1 selector constants are shipped as bf16 (exact); use the bf16 MXU
        # path when x is bf16, otherwise promote to f32.
        cdt = x2.dtype if x2.dtype == jnp.bfloat16 else f32
        selp = selp_ref[...].astype(cdt)             # (Fp, H+W)
        eh = eh_ref[...].astype(cdt)                 # (H, Fp)
        ew = ew_ref[...].astype(cdt)                 # (W, Fp)

        # (1) adaptive-avg-pool *sums*: ONE slab matmul per grid step.
        pool = jnp.dot(x2, selp, preferred_element_type=f32)        # (bt*C, H+W)
        pool3 = pool.reshape(bt, C, HW)
        ph3 = pool3[:, :, :H]                        # (bt, C, H)   sums over W
        pw3 = pool3[:, :, H:]                        # (bt, C, W)   sums over H

        # (2) conv1 (1x1) + folded BN/bias/pooling-scale + ReLU, batched over
        #     all bt images with a single fused batched dot per branch.
        w1h = jnp.broadcast_to(w1h_ref[...], (bt,) + w1h_ref.shape)  # (bt, mip, C)
        w1w = jnp.broadcast_to(w1w_ref[...], (bt,) + w1w_ref.shape)
        b1 = b1_ref[...][None]                                        # (1, mip, 1)
        yh = jnp.maximum(jnp.einsum('bmc,bch->bmh', w1h, ph3,
                                    preferred_element_type=f32) + b1, 0.0)
        yw = jnp.maximum(jnp.einsum('bmc,bcw->bmw', w1w, pw3,
                                    preferred_element_type=f32) + b1, 0.0)

        # (3) conv_h / conv_w (1x1) + sigmoid, batched.
        wh = jnp.broadcast_to(wh_ref[...], (bt,) + wh_ref.shape)      # (bt, C, mip)
        ww = jnp.broadcast_to(ww_ref[...], (bt,) + ww_ref.shape)
        ah = jax.nn.sigmoid(jnp.einsum('bcm,bmh->bch', wh, yh,
                                       preferred_element_type=f32)
                            + bh_ref[...][None])                      # (bt, C, H)
        aw = jax.nn.sigmoid(jnp.einsum('bcm,bmw->bcw', ww, yw,
                                       preferred_element_type=f32)
                            + bw_ref[...][None])                      # (bt, C, W)

        # (4) expand both attention maps back to the flat lane-dense layout
        #     with two slab matmuls (no (C,H,W) broadcasts, no lane concat).
        ah2 = ah.reshape(bt * C, H).astype(cdt)
        aw2 = aw.reshape(bt * C, W).astype(cdt)
        gate = (jnp.dot(ah2, eh, preferred_element_type=f32)
                * jnp.dot(aw2, ew, preferred_element_type=f32))       # (bt*C, Fp) f32

        # (5) single full-block gated store per grid step.
        if x2.dtype == jnp.float32:
            out2 = x2 * gate
        else:
            out2 = x2 * gate.astype(x2.dtype)        # bf16 multiply, no f32 slab copy
        o_ref[...] = out2.reshape(bt, C, Fp).astype(o_ref.dtype)

    return kernel


# ----------------------------------------------------------------------------
# Host-side helpers
# ----------------------------------------------------------------------------
def _selector_mats(H, W, F_pad):
    """0/1 selector matrices (bf16, exact) in the flat lane-dense layout."""
    F = H * W
    f = jnp.arange(F, dtype=jnp.int32)
    eh = (f[None, :] // W == jnp.arange(H, dtype=jnp.int32)[:, None]).astype(jnp.bfloat16)  # (H, F)
    ew = (f[None, :] % W == jnp.arange(W, dtype=jnp.int32)[:, None]).astype(jnp.bfloat16)   # (W, F)
    if F_pad != F:
        pad = F_pad - F
        eh = jnp.pad(eh, ((0, 0), (0, pad)))
        ew = jnp.pad(ew, ((0, 0), (0, pad)))
    sel_pool = jnp.concatenate([eh, ew], axis=0).T          # (F_pad, H+W)
    return sel_pool, eh, ew


def _device_vmem_caps():
    """Generation-aware VMEM budgets: (capacity, block_budget, limit_cap, bt_cap, multi_step)."""
    try:
        info = pltpu.get_tpu_info()
        cap = int(getattr(info, "vmem_capacity_bytes", 128 * 2**20))
    except Exception:
        cap = 128 * 2**20
    if cap <= 64 * 2**20:        # v7x-class TensorCore: 64 MiB VMEM, 2 TCs/chip
        return cap, 24 * 2**20, 48 * 2**20, 8, True
    return cap, 80 * 2**20, 100 * 2**20, 32, False   # v5e / v6e: 128 MiB VMEM


def _pick_block_batch(B, C, Fp, in_b, out_b, budget, bt_cap, prefer_multistep):
    # double-buffered in/out blocks + ~4 f32 slab temporaries + small mid-section
    per_img = C * Fp * (2 * (in_b + out_b) + 4 * 4) + 8 * C * (128 + 64)
    bt = max(1, min(B, bt_cap, budget // max(per_img, 1)))
    if prefer_multistep and B >= 2:
        bt = min(bt, B // 2)      # keep the 'parallel' grid >= 2 for 2-TC chips
    bt = max(1, bt)
    while B % bt:                 # keep the grid evenly tiled
        bt -= 1
    return int(bt)


# ----------------------------------------------------------------------------
# Wrapper
# ----------------------------------------------------------------------------
def coord_attention(x, params, *, block_batch=None):
    """x: (B, C, H, W) float32 or bfloat16. params: dict (see make_params)."""
    B, C, H, W = x.shape
    F = H * W
    Fp = ((F + 127) // 128) * 128            # lane-dense guard for small feature maps
    mip = params["w1"].shape[0]
    assert params["wh"].shape[0] == C, \
        "expand_as in the PyTorch forward requires out_channels == in_channels"

    # Fold inference BatchNorm, conv1 bias and the 1/W, 1/H pooling scales into
    # the (tiny) conv1 weights in f32 on the host.
    w1f = (params["bn_scale"] * params["w1"]).astype(jnp.float32)                       # (mip, C)
    b1f = (params["bn_scale"] * params["b1"] + params["bn_shift"]).astype(jnp.float32)  # (mip, 1)
    w1h = w1f / jnp.float32(W)
    w1w = w1f / jnp.float32(H)
    wh = params["wh"].astype(jnp.float32)
    bh = params["bh"].astype(jnp.float32)
    ww = params["ww"].astype(jnp.float32)
    bw = params["bw"].astype(jnp.float32)

    sel_pool, eh_sel, ew_sel = _selector_mats(H, W, Fp)     # bf16 0/1 constants

    x_flat = x.reshape(B, C, F)
    if Fp != F:
        x_flat = jnp.pad(x_flat, ((0, 0), (0, 0), (0, Fp - F)))

    in_b = x.dtype.itemsize
    out_b = in_b
    _, budget, limit_cap, bt_cap, prefer_multistep = _device_vmem_caps()

    if block_batch is not None:
        if B % block_batch:
            raise ValueError(f"block_batch={block_batch} must divide batch size {B}")
        bt = int(block_batch)
    else:
        bt = _pick_block_batch(B, C, Fp, in_b, out_b, budget, bt_cap, prefer_multistep)
    grid = (B // bt,)

    # VMEM accounting: double-buffered x/out blocks, constants (bias tiles pad
    # to 128 lanes), f32 slab temporaries (gate_h, gate_w, gate, out) + mid-section.
    const_bytes = (2 * Fp * (H + W)) * 2 \
        + (2 * mip * C + 2 * C * mip) * 4 + (mip + 2 * C) * 128 * 4
    tmp_bytes = 4 * bt * C * Fp * 4 + 8 * bt * (C + mip) * (H + W) * 4
    vmem_est = 2 * bt * C * Fp * (in_b + out_b) + 2 * const_bytes + tmp_bytes
    vmem_limit = int(min(limit_cap, max(32 * 2**20, vmem_est + 8 * 2**20)))

    flops_per_img = (2 * C * Fp * (H + W)        # pooling matmul
                     + 2 * mip * C * (H + W)     # conv1 (both branches)
                     + 2 * C * mip * (H + W)     # conv_h / conv_w
                     + 2 * C * Fp * (H + W)      # gate expansion matmuls
                     + 2 * C * Fp)               # gate product + gated output
    cost = pl.CostEstimate(
        flops=int(B * flops_per_img),
        transcendentals=int(B * C * (H + W)),
        bytes_accessed=int(B * C * Fp * (in_b + out_b) + const_bytes),
    )

    kernel = _build_kernel(bt, C, H, W, Fp)
    consts = (sel_pool, eh_sel, ew_sel, w1h, w1w, b1f, wh, bh, ww, bw)

    def _call(single_buffered_consts):
        if single_buffered_consts:
            def cspec(a):
                return pl.BlockSpec(a.shape, lambda i: (0, 0),
                                    pipeline_mode=pl.Buffered(1))
        else:
            def cspec(a):
                return pl.BlockSpec(a.shape, lambda i: (0, 0))
        grid_spec = pltpu.PrefetchScalarGridSpec(
            num_scalar_prefetch=0,
            grid=grid,
            in_specs=[pl.BlockSpec((bt, C, Fp), lambda i: (i, 0, 0))]
                     + [cspec(a) for a in consts],
            out_specs=pl.BlockSpec((bt, C, Fp), lambda i: (i, 0, 0)),
        )
        return pl.pallas_call(
            kernel,
            out_shape=jax.ShapeDtypeStruct((B, C, Fp), x.dtype),
            grid_spec=grid_spec,
            compiler_params=pltpu.CompilerParams(
                dimension_semantics=("parallel",),
                vmem_limit_bytes=vmem_limit),
            cost_estimate=cost,
        )(x_flat, *consts)

    try:
        out_flat = _call(True)          # single-buffered constants
    except Exception:
        # pl.Buffered(1) pipeline_mode not supported by this jax/libtpu combo:
        # fall back to default double-buffered constant inputs.
        out_flat = _call(False)

    if Fp != F:
        out_flat = out_flat[:, :, :F]
    return out_flat.reshape(B, C, H, W)


# ----------------------------------------------------------------------------
# Parameters + pure-JAX reference
# ----------------------------------------------------------------------------
def make_params(key, in_channels, out_channels, reduction=32, eps=1e-5):
    mip = max(8, in_channels // reduction)
    k = jax.random.split(key, 6)
    w1 = jax.random.normal(k[0], (mip, in_channels), jnp.float32) * 0.1
    b1 = jax.random.normal(k[1], (mip, 1), jnp.float32) * 0.1
    wh = jax.random.normal(k[2], (out_channels, mip), jnp.float32) * 0.1
    bh = jax.random.normal(k[3], (out_channels, 1), jnp.float32) * 0.1
    ww = jax.random.normal(k[4], (out_channels, mip), jnp.float32) * 0.1
    bw = jax.random.normal(k[5], (out_channels, 1), jnp.float32) * 0.1
    # BatchNorm2d defaults (inference): gamma=1, beta=0, mean=0, var=1
    gamma = jnp.ones((mip, 1), jnp.float32)
    beta = jnp.zeros((mip, 1), jnp.float32)
    mean = jnp.zeros((mip, 1), jnp.float32)
    var = jnp.ones((mip, 1), jnp.float32)
    bn_scale = gamma / jnp.sqrt(var + eps)
    bn_shift = beta - mean * bn_scale
    return dict(w1=w1, b1=b1, bn_scale=bn_scale, bn_shift=bn_shift,
                wh=wh, bh=bh, ww=ww, bw=bw)


def coord_attention_ref(x, p):
    """Pure-JAX reference mirroring the PyTorch forward (NCHW)."""
    B, C, H, W = x.shape
    x_h = jnp.mean(x, axis=3)                          # (B, C, H)
    x_w = jnp.mean(x, axis=2)                          # (B, C, W)
    y = jnp.concatenate([x_h, x_w], axis=2)            # (B, C, H+W)
    y = jnp.einsum("mc,bcs->bms", p["w1"], y) + p["b1"][None]
    y = y * p["bn_scale"][None] + p["bn_shift"][None]
    y = jnp.maximum(y, 0.0)
    y_h, y_w = y[:, :, :H], y[:, :, H:]
    a_h = jax.nn.sigmoid(jnp.einsum("om,bms->bos", p["wh"], y_h) + p["bh"][None])
    a_w = jax.nn.sigmoid(jnp.einsum("om,bms->bos", p["ww"], y_w) + p["bw"][None])
    return x * a_h[:, :, :, None] * a_w[:, :, None, :]


# ----------------------------------------------------------------------------
# Self-test
# ----------------------------------------------------------------------------
if __name__ == "__main__":
    key = jax.random.PRNGKey(0)
    kx, kp, kx2 = jax.random.split(key, 3)

    # Main config: batch=4, channels=16 (sublane-aligned), 16x16 spatial (F=256).
    B, C, H, W = 4, 16, 16, 16
    x = jax.random.normal(kx, (B, C, H, W), jnp.float32)
    params = make_params(kp, in_channels=C, out_channels=C, reduction=32)

    out = jax.block_until_ready(coord_attention(x, params))
    ref = coord_attention_ref(x, params)
    assert out.shape == (B, C, H, W)
    assert jnp.allclose(out, ref, atol=5e-5, rtol=1e-4), "mismatch vs reference (f32)"

    # bf16 I/O path: bf16 MXU pooling + bf16 gated store, f32 accumulation.
    x16 = x.astype(jnp.bfloat16)
    out16 = jax.block_until_ready(coord_attention(x16, params))
    ref16 = coord_attention_ref(x16.astype(jnp.float32), params)
    assert out16.dtype == jnp.bfloat16
    assert jnp.allclose(out16.astype(jnp.float32), ref16, atol=2e-2, rtol=2e-2), \
        "mismatch vs reference (bf16 I/O)"

    # Non-multiple-of-128 spatial size exercises the lane-padding guard (F=100 -> 128).
    B2, H2, W2 = 2, 10, 10
    x2 = jax.random.normal(kx2, (B2, C, H2, W2), jnp.float32)
    out2 = jax.block_until_ready(coord_attention(x2, params))
    ref2 = coord_attention_ref(x2, params)
    assert jnp.allclose(out2, ref2, atol=5e-5, rtol=1e-4), "mismatch vs reference (padded F)"

    print("KERNEL_OK")
</pallas_src>

<mosaic_0001>
module attributes {stable_mosaic.version = 11 : i64} {
  func.func @kernel(%arg0: i32, %arg1: memref<4x16x256xf32, #tpu.memory_space<vmem>>, %arg2: memref<256x32xbf16, #tpu.memory_space<vmem>>, %arg3: memref<16x256xbf16, #tpu.memory_space<vmem>>, %arg4: memref<16x256xbf16, #tpu.memory_space<vmem>>, %arg5: memref<8x16xf32, #tpu.memory_space<vmem>>, %arg6: memref<8x16xf32, #tpu.memory_space<vmem>>, %arg7: memref<8x1xf32, #tpu.memory_space<vmem>>, %arg8: memref<16x8xf32, #tpu.memory_space<vmem>>, %arg9: memref<16x1xf32, #tpu.memory_space<vmem>>, %arg10: memref<16x8xf32, #tpu.memory_space<vmem>>, %arg11: memref<16x1xf32, #tpu.memory_space<vmem>>, %arg12: memref<4x16x256xf32, #tpu.memory_space<vmem>>) attributes {dimension_semantics = [#tpu.dimension_semantics<parallel>], iteration_bounds = array<i64: 1>, scalar_prefetch = 0 : i64, scratch_operands = 0 : i64, tpu.core_type = #tpu.core_type<tc>, window_params = [{transform_indices = @transform_0, window_bounds = array<i64: 4, 16, 256>}, {pipeline_mode = #tpu.pipeline_mode<synchronous>, transform_indices = @transform_1, window_bounds = array<i64: 256, 32>}, {pipeline_mode = #tpu.pipeline_mode<synchronous>, transform_indices = @transform_2, window_bounds = array<i64: 16, 256>}, {pipeline_mode = #tpu.pipeline_mode<synchronous>, transform_indices = @transform_3, window_bounds = array<i64: 16, 256>}, {pipeline_mode = #tpu.pipeline_mode<synchronous>, transform_indices = @transform_4, window_bounds = array<i64: 8, 16>}, {pipeline_mode = #tpu.pipeline_mode<synchronous>, transform_indices = @transform_5, window_bounds = array<i64: 8, 16>}, {pipeline_mode = #tpu.pipeline_mode<synchronous>, transform_indices = @transform_6, window_bounds = array<i64: 8, 1>}, {pipeline_mode = #tpu.pipeline_mode<synchronous>, transform_indices = @transform_7, window_bounds = array<i64: 16, 8>}, {pipeline_mode = #tpu.pipeline_mode<synchronous>, transform_indices = @transform_8, window_bounds = array<i64: 16, 1>}, {pipeline_mode = #tpu.pipeline_mode<synchronous>, transform_indices = @transform_9, window_bounds = array<i64: 16, 8>}, {pipeline_mode = #tpu.pipeline_mode<synchronous>, transform_indices = @transform_10, window_bounds = array<i64: 16, 1>}, {transform_indices = @transform_11, window_bounds = array<i64: 4, 16, 256>}]} {
    %c0 = arith.constant 0 : index
    %c0_0 = arith.constant 0 : index
    %c0_1 = arith.constant 0 : index
    %0 = vector.load %arg1[%c0, %c0_0, %c0_1] : memref<4x16x256xf32, #tpu.memory_space<vmem>>, vector<4x16x256xf32>
    %1 = vector.shape_cast %0 : vector<4x16x256xf32> to vector<64x256xf32>
    %c0_2 = arith.constant 0 : index
    %c0_3 = arith.constant 0 : index
    %2 = vector.load %arg2[%c0_2, %c0_3] : memref<256x32xbf16, #tpu.memory_space<vmem>>, vector<256x32xbf16>
    %3 = arith.extf %2 : vector<256x32xbf16> to vector<256x32xf32>
    %c0_4 = arith.constant 0 : index
    %c0_5 = arith.constant 0 : index
    %4 = vector.load %arg3[%c0_4, %c0_5] : memref<16x256xbf16, #tpu.memory_space<vmem>>, vector<16x256xbf16>
    %5 = arith.extf %4 : vector<16x256xbf16> to vector<16x256xf32>
    %c0_6 = arith.constant 0 : index
    %c0_7 = arith.constant 0 : index
    %6 = vector.load %arg4[%c0_6, %c0_7] : memref<16x256xbf16, #tpu.memory_space<vmem>>, vector<16x256xbf16>
    %7 = arith.extf %6 : vector<16x256xbf16> to vector<16x256xf32>
    %cst = arith.constant dense<0.000000e+00> : vector<64x32xf32>
    %8 = tpu.matmul %1, %3, %cst {dimension_numbers = #tpu.dot_dimension_numbers<[1], [0], [0], [1], [0, 0, 1, 1], [], []>} : vector<64x256xf32>, vector<256x32xf32>, vector<64x32xf32> -> vector<64x32xf32>
    %9 = vector.shape_cast %8 : vector<64x32xf32> to vector<4x16x32xf32>
    %10 = vector.extract_strided_slice %9 {offsets = [0, 0, 0], sizes = [4, 16, 16], strides = [1, 1, 1]} : vector<4x16x32xf32> to vector<4x16x16xf32>
    %11 = vector.extract_strided_slice %9 {offsets = [0, 0, 16], sizes = [4, 16, 16], strides = [1, 1, 1]} : vector<4x16x32xf32> to vector<4x16x16xf32>
    %c0_8 = arith.constant 0 : index
    %c0_9 = arith.constant 0 : index
    %12 = vector.load %arg5[%c0_8, %c0_9] : memref<8x16xf32, #tpu.memory_space<vmem>>, vector<8x16xf32>
    %13 = vector.shape_cast %12 : vector<8x16xf32> to vector<1x8x16xf32>
    %14 = vector.broadcast %13 : vector<1x8x16xf32> to vector<4x8x16xf32>
    %c0_10 = arith.constant 0 : index
    %c0_11 = arith.constant 0 : index
    %15 = vector.load %arg6[%c0_10, %c0_11] : memref<8x16xf32, #tpu.memory_space<vmem>>, vector<8x16xf32>
    %16 = vector.shape_cast %15 : vector<8x16xf32> to vector<1x8x16xf32>
    %17 = vector.broadcast %16 : vector<1x8x16xf32> to vector<4x8x16xf32>
    %c0_12 = arith.constant 0 : index
    %c0_13 = arith.constant 0 : index
    %18 = vector.load %arg7[%c0_12, %c0_13] : memref<8x1xf32, #tpu.memory_space<vmem>>, vector<8x1xf32>
    %19 = vector.shape_cast %18 : vector<8x1xf32> to vector<1x8x1xf32>
    "tpu.trace_start"() <{level = 10 : i32, message = "bmc,bch->bmh"}> : () -> ()
    %cst_14 = arith.constant dense<0.000000e+00> : vector<4x8x16xf32>
    %20 = tpu.matmul %14, %10, %cst_14 {dimension_numbers = #tpu.dot_dimension_numbers<[2], [1], [1], [2], [0, 0, 0, 1, 1, 2], [0], [0]>} : vector<4x8x16xf32>, vector<4x16x16xf32>, vector<4x8x16xf32> -> vector<4x8x16xf32>
    "tpu.trace_stop"() : () -> ()
    %21 = vector.broadcast %19 : vector<1x8x1xf32> to vector<4x8x16xf32>
    %22 = arith.addf %20, %21 : vector<4x8x16xf32>
    %cst_15 = arith.constant 0.000000e+00 : f32
    %23 = vector.broadcast %cst_15 : f32 to vector<4x8x16xf32>
    %24 = arith.maximumf %22, %23 : vector<4x8x16xf32>
    "tpu.trace_start"() <{level = 10 : i32, message = "bmc,bcw->bmw"}> : () -> ()
    %cst_16 = arith.constant dense<0.000000e+00> : vector<4x8x16xf32>
    %25 = tpu.matmul %17, %11, %cst_16 {dimension_numbers = #tpu.dot_dimension_numbers<[2], [1], [1], [2], [0, 0, 0, 1, 1, 2], [0], [0]>} : vector<4x8x16xf32>, vector<4x16x16xf32>, vector<4x8x16xf32> -> vector<4x8x16xf32>
    "tpu.trace_stop"() : () -> ()
    %26 = vector.broadcast %19 : vector<1x8x1xf32> to vector<4x8x16xf32>
    %27 = arith.addf %25, %26 : vector<4x8x16xf32>
    %cst_17 = arith.constant 0.000000e+00 : f32
    %28 = vector.broadcast %cst_17 : f32 to vector<4x8x16xf32>
    %29 = arith.maximumf %27, %28 : vector<4x8x16xf32>
    %c0_18 = arith.constant 0 : index
    %c0_19 = arith.constant 0 : index
    %30 = vector.load %arg8[%c0_18, %c0_19] : memref<16x8xf32, #tpu.memory_space<vmem>>, vector<16x8xf32>
    %31 = vector.shape_cast %30 : vector<16x8xf32> to vector<1x16x8xf32>
    %32 = vector.broadcast %31 : vector<1x16x8xf32> to vector<4x16x8xf32>
    %c0_20 = arith.constant 0 : index
    %c0_21 = arith.constant 0 : index
    %33 = vector.load %arg10[%c0_20, %c0_21] : memref<16x8xf32, #tpu.memory_space<vmem>>, vector<16x8xf32>
    %34 = vector.shape_cast %33 : vector<16x8xf32> to vector<1x16x8xf32>
    %35 = vector.broadcast %34 : vector<1x16x8xf32> to vector<4x16x8xf32>
    "tpu.trace_start"() <{level = 10 : i32, message = "bcm,bmh->bch"}> : () -> ()
    %cst_22 = arith.constant dense<0.000000e+00> : vector<4x16x16xf32>
    %36 = tpu.matmul %32, %24, %cst_22 {dimension_numbers = #tpu.dot_dimension_numbers<[2], [1], [1], [2], [0, 0, 0, 1, 1, 2], [0], [0]>} : vector<4x16x8xf32>, vector<4x8x16xf32>, vector<4x16x16xf32> -> vector<4x16x16xf32>
    "tpu.trace_stop"() : () -> ()
    %c0_23 = arith.constant 0 : index
    %c0_24 = arith.constant 0 : index
    %37 = vector.load %arg9[%c0_23, %c0_24] : memref<16x1xf32, #tpu.memory_space<vmem>>, vector<16x1xf32>
    %38 = vector.shape_cast %37 : vector<16x1xf32> to vector<1x16x1xf32>
    %39 = vector.broadcast %38 : vector<1x16x1xf32> to vector<4x16x16xf32>
    %40 = arith.addf %36, %39 : vector<4x16x16xf32>
    %41 = arith.negf %40 : vector<4x16x16xf32>
    %42 = math.exp %41 : vector<4x16x16xf32>
    %cst_25 = arith.constant 1.000000e+00 : f32
    %43 = vector.broadcast %cst_25 : f32 to vector<4x16x16xf32>
    %44 = arith.addf %43, %42 : vector<4x16x16xf32>
    %45 = arith.divf %43, %44 : vector<4x16x16xf32>
    "tpu.trace_start"() <{level = 10 : i32, message = "bcm,bmw->bcw"}> : () -> ()
    %cst_26 = arith.constant dense<0.000000e+00> : vector<4x16x16xf32>
    %46 = tpu.matmul %35, %29, %cst_26 {dimension_numbers = #tpu.dot_dimension_numbers<[2], [1], [1], [2], [0, 0, 0, 1, 1, 2], [0], [0]>} : vector<4x16x8xf32>, vector<4x8x16xf32>, vector<4x16x16xf32> -> vector<4x16x16xf32>
    "tpu.trace_stop"() : () -> ()
    %c0_27 = arith.constant 0 : index
    %c0_28 = arith.constant 0 : index
    %47 = vector.load %arg11[%c0_27, %c0_28] : memref<16x1xf32, #tpu.memory_space<vmem>>, vector<16x1xf32>
    %48 = vector.shape_cast %47 : vector<16x1xf32> to vector<1x16x1xf32>
    %49 = vector.broadcast %48 : vector<1x16x1xf32> to vector<4x16x16xf32>
    %50 = arith.addf %46, %49 : vector<4x16x16xf32>
    %51 = arith.negf %50 : vector<4x16x16xf32>
    %52 = math.exp %51 : vector<4x16x16xf32>
    %cst_29 = arith.constant 1.000000e+00 : f32
    %53 = vector.broadcast %cst_29 : f32 to vector<4x16x16xf32>
    %54 = arith.addf %53, %52 : vector<4x16x16xf32>
    %55 = arith.divf %53, %54 : vector<4x16x16xf32>
    %56 = vector.shape_cast %45 : vector<4x16x16xf32> to vector<64x16xf32>
    %57 = vector.shape_cast %55 : vector<4x16x16xf32> to vector<64x16xf32>
    %cst_30 = arith.constant dense<0.000000e+00> : vector<64x256xf32>
    %58 = tpu.matmul %56, %5, %cst_30 {dimension_numbers = #tpu.dot_dimension_numbers<[1], [0], [0], [1], [0, 0, 1, 1], [], []>} : vector<64x16xf32>, vector<16x256xf32>, vector<64x256xf32> -> vector<64x256xf32>
    %cst_31 = arith.constant dense<0.000000e+00> : vector<64x256xf32>
    %59 = tpu.matmul %57, %7, %cst_31 {dimension_numbers = #tpu.dot_dimension_numbers<[1], [0], [0], [1], [0, 0, 1, 1], [], []>} : vector<64x16xf32>, vector<16x256xf32>, vector<64x256xf32> -> vector<64x256xf32>
    %60 = arith.mulf %58, %59 : vector<64x256xf32>
    %61 = arith.mulf %1, %60 : vector<64x256xf32>
    %62 = vector.shape_cast %61 : vector<64x256xf32> to vector<4x16x256xf32>
    %c0_32 = arith.constant 0 : index
    %c0_33 = arith.constant 0 : index
    %c0_34 = arith.constant 0 : index
    %63 = vector.load %arg12[%c0_32, %c0_33, %c0_34] : memref<4x16x256xf32, #tpu.memory_space<vmem>>, vector<4x16x256xf32>
    tpu.vector_store %arg12[%c0_32, %c0_33, %c0_34], %62 {strides = array<i32>} : memref<4x16x256xf32, #tpu.memory_space<vmem>>, vector<4x16x256xf32>,
    return
  }
  func.func @transform_0(%arg0: i32) -> (i32, i32, i32) {
    %c0_i32 = arith.constant 0 : i32
    %c0_i32_0 = arith.constant 0 : i32
    %c0_i32_1 = arith.constant 0 : i32
    return %arg0, %c0_i32, %c0_i32_0 : i32, i32, i32
  }
  func.func @transform_1(%arg0: i32) -> (i32, i32) {
    %c0_i32 = arith.constant 0 : i32
    %c0_i32_0 = arith.constant 0 : i32
    %c0_i32_1 = arith.constant 0 : i32
    return %c0_i32, %c0_i32_0 : i32, i32
  }
  func.func @transform_2(%arg0: i32) -> (i32, i32) {
    %c0_i32 = arith.constant 0 : i32
    %c0_i32_0 = arith.constant 0 : i32
    %c0_i32_1 = arith.constant 0 : i32
    return %c0_i32, %c0_i32_0 : i32, i32
  }
  func.func @transform_3(%arg0: i32) -> (i32, i32) {
    %c0_i32 = arith.constant 0 : i32
    %c0_i32_0 = arith.constant 0 : i32
    %c0_i32_1 = arith.constant 0 : i32
    return %c0_i32, %c0_i32_0 : i32, i32
  }
  func.func @transform_4(%arg0: i32) -> (i32, i32) {
    %c0_i32 = arith.constant 0 : i32
    %c0_i32_0 = arith.constant 0 : i32
    %c0_i32_1 = arith.constant 0 : i32
    return %c0_i32, %c0_i32_0 : i32, i32
  }
  func.func @transform_5(%arg0: i32) -> (i32, i32) {
    %c0_i32 = arith.constant 0 : i32
    %c0_i32_0 = arith.constant 0 : i32
    %c0_i32_1 = arith.constant 0 : i32
    return %c0_i32, %c0_i32_0 : i32, i32
  }
  func.func @transform_6(%arg0: i32) -> (i32, i32) {
    %c0_i32 = arith.constant 0 : i32
    %c0_i32_0 = arith.constant 0 : i32
    %c0_i32_1 = arith.constant 0 : i32
    return %c0_i32, %c0_i32_0 : i32, i32
  }
  func.func @transform_7(%arg0: i32) -> (i32, i32) {
    %c0_i32 = arith.constant 0 : i32
    %c0_i32_0 = arith.constant 0 : i32
    %c0_i32_1 = arith.constant 0 : i32
    return %c0_i32, %c0_i32_0 : i32, i32
  }
  func.func @transform_8(%arg0: i32) -> (i32, i32) {
    %c0_i32 = arith.constant 0 : i32
    %c0_i32_0 = arith.constant 0 : i32
    %c0_i32_1 = arith.constant 0 : i32
    return %c0_i32, %c0_i32_0 : i32, i32
  }
  func.func @transform_9(%arg0: i32) -> (i32, i32) {
    %c0_i32 = arith.constant 0 : i32
    %c0_i32_0 = arith.constant 0 : i32
    %c0_i32_1 = arith.constant 0 : i32
    return %c0_i32, %c0_i32_0 : i32, i32
  }
  func.func @transform_10(%arg0: i32) -> (i32, i32) {
    %c0_i32 = arith.constant 0 : i32
    %c0_i32_0 = arith.constant 0 : i32
    %c0_i32_1 = arith.constant 0 : i32
    return %c0_i32, %c0_i32_0 : i32, i32
  }
  func.func @transform_11(%arg0: i32) -> (i32, i32, i32) {
    %c0_i32 = arith.constant 0 : i32
    %c0_i32_0 = arith.constant 0 : i32
    %c0_i32_1 = arith.constant 0 : i32
    return %arg0, %c0_i32, %c0_i32_0 : i32, i32, i32
  }
}

module attributes {stable_mosaic.version = 11 : i64} {
  func.func @kernel(%arg0: i32, %arg1: memref<4x16x256xf32, #tpu.memory_space<vmem>>, %arg2: memref<256x32xbf16, #tpu.memory_space<vmem>>, %arg3: memref<16x256xbf16, #tpu.memory_space<vmem>>, %arg4: memref<16x256xbf16, #tpu.memory_space<vmem>>, %arg5: memref<8x16xf32, #tpu.memory_space<vmem>>, %arg6: memref<8x16xf32, #tpu.memory_space<vmem>>, %arg7: memref<8x1xf32, #tpu.memory_space<vmem>>, %arg8: memref<16x8xf32, #tpu.memory_space<vmem>>, %arg9: memref<16x1xf32, #tpu.memory_space<vmem>>, %arg10: memref<16x8xf32, #tpu.memory_space<vmem>>, %arg11: memref<16x1xf32, #tpu.memory_space<vmem>>, %arg12: memref<4x16x256xf32, #tpu.memory_space<vmem>>) attributes {dimension_semantics = [#tpu.dimension_semantics<parallel>], iteration_bounds = array<i64: 1>, scalar_prefetch = 0 : i64, scratch_operands = 0 : i64, tpu.core_type = #tpu.core_type<tc>, window_params = [{transform_indices = @transform_0, window_bounds = array<i64: 4, 16, 256>}, {pipeline_mode = #tpu.pipeline_mode<synchronous>, transform_indices = @transform_1, window_bounds = array<i64: 256, 32>}, {pipeline_mode = #tpu.pipeline_mode<synchronous>, transform_indices = @transform_2, window_bounds = array<i64: 16, 256>}, {pipeline_mode = #tpu.pipeline_mode<synchronous>, transform_indices = @transform_3, window_bounds = array<i64: 16, 256>}, {pipeline_mode = #tpu.pipeline_mode<synchronous>, transform_indices = @transform_4, window_bounds = array<i64: 8, 16>}, {pipeline_mode = #tpu.pipeline_mode<synchronous>, transform_indices = @transform_5, window_bounds = array<i64: 8, 16>}, {pipeline_mode = #tpu.pipeline_mode<synchronous>, transform_indices = @transform_6, window_bounds = array<i64: 8, 1>}, {pipeline_mode = #tpu.pipeline_mode<synchronous>, transform_indices = @transform_7, window_bounds = array<i64: 16, 8>}, {pipeline_mode = #tpu.pipeline_mode<synchronous>, transform_indices = @transform_8, window_bounds = array<i64: 16, 1>}, {pipeline_mode = #tpu.pipeline_mode<synchronous>, transform_indices = @transform_9, window_bounds = array<i64: 16, 8>}, {pipeline_mode = #tpu.pipeline_mode<synchronous>, transform_indices = @transform_10, window_bounds = array<i64: 16, 1>}, {transform_indices = @transform_11, window_bounds = array<i64: 4, 16, 256>}]} {
    %c0 = arith.constant 0 : index
    %c0_0 = arith.constant 0 : index
    %c0_1 = arith.constant 0 : index
    %0 = vector.load %arg1[%c0, %c0_0, %c0_1] : memref<4x16x256xf32, #tpu.memory_space<vmem>>, vector<4x16x256xf32>
    %1 = vector.shape_cast %0 : vector<4x16x256xf32> to vector<64x256xf32>
    %c0_2 = arith.constant 0 : index
    %c0_3 = arith.constant 0 : index
    %2 = vector.load %arg2[%c0_2, %c0_3] : memref<256x32xbf16, #tpu.memory_space<vmem>>, vector<256x32xbf16>
    %3 = arith.extf %2 : vector<256x32xbf16> to vector<256x32xf32>
    %c0_4 = arith.constant 0 : index
    %c0_5 = arith.constant 0 : index
    %4 = vector.load %arg3[%c0_4, %c0_5] : memref<16x256xbf16, #tpu.memory_space<vmem>>, vector<16x256xbf16>
    %5 = arith.extf %4 : vector<16x256xbf16> to vector<16x256xf32>
    %c0_6 = arith.constant 0 : index
    %c0_7 = arith.constant 0 : index
    %6 = vector.load %arg4[%c0_6, %c0_7] : memref<16x256xbf16, #tpu.memory_space<vmem>>, vector<16x256xbf16>
    %7 = arith.extf %6 : vector<16x256xbf16> to vector<16x256xf32>
    %cst = arith.constant dense<0.000000e+00> : vector<64x32xf32>
    %8 = tpu.matmul %1, %3, %cst {dimension_numbers = #tpu.dot_dimension_numbers<[1], [0], [0], [1], [0, 0, 1, 1], [], []>} : vector<64x256xf32>, vector<256x32xf32>, vector<64x32xf32> -> vector<64x32xf32>
    %9 = vector.shape_cast %8 : vector<64x32xf32> to vector<4x16x32xf32>
    %10 = vector.extract_strided_slice %9 {offsets = [0, 0, 0], sizes = [4, 16, 16], strides = [1, 1, 1]} : vector<4x16x32xf32> to vector<4x16x16xf32>
    %11 = vector.extract_strided_slice %9 {offsets = [0, 0, 16], sizes = [4, 16, 16], strides = [1, 1, 1]} : vector<4x16x32xf32> to vector<4x16x16xf32>
    %c0_8 = arith.constant 0 : index
    %c0_9 = arith.constant 0 : index
    %12 = vector.load %arg5[%c0_8, %c0_9] : memref<8x16xf32, #tpu.memory_space<vmem>>, vector<8x16xf32>
    %13 = vector.shape_cast %12 : vector<8x16xf32> to vector<1x8x16xf32>
    %14 = vector.broadcast %13 : vector<1x8x16xf32> to vector<4x8x16xf32>
    %c0_10 = arith.constant 0 : index
    %c0_11 = arith.constant 0 : index
    %15 = vector.load %arg6[%c0_10, %c0_11] : memref<8x16xf32, #tpu.memory_space<vmem>>, vector<8x16xf32>
    %16 = vector.shape_cast %15 : vector<8x16xf32> to vector<1x8x16xf32>
    %17 = vector.broadcast %16 : vector<1x8x16xf32> to vector<4x8x16xf32>
    %c0_12 = arith.constant 0 : index
    %c0_13 = arith.constant 0 : index
    %18 = vector.load %arg7[%c0_12, %c0_13] : memref<8x1xf32, #tpu.memory_space<vmem>>, vector<8x1xf32>
    %19 = vector.shape_cast %18 : vector<8x1xf32> to vector<1x8x1xf32>
    "tpu.trace_start"() <{level = 10 : i32, message = "bmc,bch->bmh"}> : () -> ()
    %cst_14 = arith.constant dense<0.000000e+00> : vector<4x8x16xf32>
    %20 = tpu.matmul %14, %10, %cst_14 {dimension_numbers = #tpu.dot_dimension_numbers<[2], [1], [1], [2], [0, 0, 0, 1, 1, 2], [0], [0]>} : vector<4x8x16xf32>, vector<4x16x16xf32>, vector<4x8x16xf32> -> vector<4x8x16xf32>
    "tpu.trace_stop"() : () -> ()
    %21 = vector.broadcast %19 : vector<1x8x1xf32> to vector<4x8x16xf32>
    %22 = arith.addf %20, %21 : vector<4x8x16xf32>
    %cst_15 = arith.constant 0.000000e+00 : f32
    %23 = vector.broadcast %cst_15 : f32 to vector<4x8x16xf32>
    %24 = arith.maximumf %22, %23 : vector<4x8x16xf32>
    "tpu.trace_start"() <{level = 10 : i32, message = "bmc,bcw->bmw"}> : () -> ()
    %cst_16 = arith.constant dense<0.000000e+00> : vector<4x8x16xf32>
    %25 = tpu.matmul %17, %11, %cst_16 {dimension_numbers = #tpu.dot_dimension_numbers<[2], [1], [1], [2], [0, 0, 0, 1, 1, 2], [0], [0]>} : vector<4x8x16xf32>, vector<4x16x16xf32>, vector<4x8x16xf32> -> vector<4x8x16xf32>
    "tpu.trace_stop"() : () -> ()
    %26 = vector.broadcast %19 : vector<1x8x1xf32> to vector<4x8x16xf32>
    %27 = arith.addf %25, %26 : vector<4x8x16xf32>
    %cst_17 = arith.constant 0.000000e+00 : f32
    %28 = vector.broadcast %cst_17 : f32 to vector<4x8x16xf32>
    %29 = arith.maximumf %27, %28 : vector<4x8x16xf32>
    %c0_18 = arith.constant 0 : index
    %c0_19 = arith.constant 0 : index
    %30 = vector.load %arg8[%c0_18, %c0_19] : memref<16x8xf32, #tpu.memory_space<vmem>>, vector<16x8xf32>
    %31 = vector.shape_cast %30 : vector<16x8xf32> to vector<1x16x8xf32>
    %32 = vector.broadcast %31 : vector<1x16x8xf32> to vector<4x16x8xf32>
    %c0_20 = arith.constant 0 : index
    %c0_21 = arith.constant 0 : index
    %33 = vector.load %arg10[%c0_20, %c0_21] : memref<16x8xf32, #tpu.memory_space<vmem>>, vector<16x8xf32>
    %34 = vector.shape_cast %33 : vector<16x8xf32> to vector<1x16x8xf32>
    %35 = vector.broadcast %34 : vector<1x16x8xf32> to vector<4x16x8xf32>
    "tpu.trace_start"() <{level = 10 : i32, message = "bcm,bmh->bch"}> : () -> ()
    %cst_22 = arith.constant dense<0.000000e+00> : vector<4x16x16xf32>
    %36 = tpu.matmul %32, %24, %cst_22 {dimension_numbers = #tpu.dot_dimension_numbers<[2], [1], [1], [2], [0, 0, 0, 1, 1, 2], [0], [0]>} : vector<4x16x8xf32>, vector<4x8x16xf32>, vector<4x16x16xf32> -> vector<4x16x16xf32>
    "tpu.trace_stop"() : () -> ()
    %c0_23 = arith.constant 0 : index
    %c0_24 = arith.constant 0 : index
    %37 = vector.load %arg9[%c0_23, %c0_24] : memref<16x1xf32, #tpu.memory_space<vmem>>, vector<16x1xf32>
    %38 = vector.shape_cast %37 : vector<16x1xf32> to vector<1x16x1xf32>
    %39 = vector.broadcast %38 : vector<1x16x1xf32> to vector<4x16x16xf32>
    %40 = arith.addf %36, %39 : vector<4x16x16xf32>
    %41 = arith.negf %40 : vector<4x16x16xf32>
    %42 = math.exp %41 : vector<4x16x16xf32>
    %cst_25 = arith.constant 1.000000e+00 : f32
    %43 = vector.broadcast %cst_25 : f32 to vector<4x16x16xf32>
    %44 = arith.addf %43, %42 : vector<4x16x16xf32>
    %45 = arith.divf %43, %44 : vector<4x16x16xf32>
    "tpu.trace_start"() <{level = 10 : i32, message = "bcm,bmw->bcw"}> : () -> ()
    %cst_26 = arith.constant dense<0.000000e+00> : vector<4x16x16xf32>
    %46 = tpu.matmul %35, %29, %cst_26 {dimension_numbers = #tpu.dot_dimension_numbers<[2], [1], [1], [2], [0, 0, 0, 1, 1, 2], [0], [0]>} : vector<4x16x8xf32>, vector<4x8x16xf32>, vector<4x16x16xf32> -> vector<4x16x16xf32>
    "tpu.trace_stop"() : () -> ()
    %c0_27 = arith.constant 0 : index
    %c0_28 = arith.constant 0 : index
    %47 = vector.load %arg11[%c0_27, %c0_28] : memref<16x1xf32, #tpu.memory_space<vmem>>, vector<16x1xf32>
    %48 = vector.shape_cast %47 : vector<16x1xf32> to vector<1x16x1xf32>
    %49 = vector.broadcast %48 : vector<1x16x1xf32> to vector<4x16x16xf32>
    %50 = arith.addf %46, %49 : vector<4x16x16xf32>
    %51 = arith.negf %50 : vector<4x16x16xf32>
    %52 = math.exp %51 : vector<4x16x16xf32>
    %cst_29 = arith.constant 1.000000e+00 : f32
    %53 = vector.broadcast %cst_29 : f32 to vector<4x16x16xf32>
    %54 = arith.addf %53, %52 : vector<4x16x16xf32>
    %55 = arith.divf %53, %54 : vector<4x16x16xf32>
    %56 = vector.shape_cast %45 : vector<4x16x16xf32> to vector<64x16xf32>
    %57 = vector.shape_cast %55 : vector<4x16x16xf32> to vector<64x16xf32>
    %cst_30 = arith.constant dense<0.000000e+00> : vector<64x256xf32>
    %58 = tpu.matmul %56, %5, %cst_30 {dimension_numbers = #tpu.dot_dimension_numbers<[1], [0], [0], [1], [0, 0, 1, 1], [], []>} : vector<64x16xf32>, vector<16x256xf32>, vector<64x256xf32> -> vector<64x256xf32>
    %cst_31 = arith.constant dense<0.000000e+00> : vector<64x256xf32>
    %59 = tpu.matmul %57, %7, %cst_31 {dimension_numbers = #tpu.dot_dimension_numbers<[1], [0], [0], [1], [0, 0, 1, 1], [], []>} : vector<64x16xf32>, vector<16x256xf32>, vector<64x256xf32> -> vector<64x256xf32>
    %60 = arith.mulf %58, %59 : vector<64x256xf32>
    %61 = arith.mulf %1, %60 : vector<64x256xf32>
    %62 = vector.shape_cast %61 : vector<64x256xf32> to vector<4x16x256xf32>
    %c0_32 = arith.constant 0 : index
    %c0_33 = arith.constant 0 : index
    %c0_34 = arith.constant 0 : index
    %63 = vector.load %arg12[%c0_32, %c0_33, %c0_34] : memref<4x16x256xf32, #tpu.memory_space<vmem>>, vector<4x16x256xf32>
    tpu.vector_store %arg12[%c0_32, %c0_33, %c0_34], %62 {strides = array<i32>} : memref<4x16x256xf32, #tpu.memory_space<vmem>>, vector<4x16x256xf32>,
    return
  }
  func.func @transform_0(%arg0: i32) -> (i32, i32, i32) {
    %c0_i32 = arith.constant 0 : i32
    %c0_i32_0 = arith.constant 0 : i32
    %c0_i32_1 = arith.constant 0 : i32
    return %arg0, %c0_i32, %c0_i32_0 : i32, i32, i32
  }
  func.func @transform_1(%arg0: i32) -> (i32, i32) {
    %c0_i32 = arith.constant 0 : i32
    %c0_i32_0 = arith.constant 0 : i32
    %c0_i32_1 = arith.constant 0 : i32
    return %c0_i32, %c0_i32_0 : i32, i32
  }
  func.func @transform_2(%arg0: i32) -> (i32, i32) {
    %c0_i32 = arith.constant 0 : i32
    %c0_i32_0 = arith.constant 0 : i32
    %c0_i32_1 = arith.constant 0 : i32
    return %c0_i32, %c0_i32_0 : i32, i32
  }
  func.func @transform_3(%arg0: i32) -> (i32, i32) {
    %c0_i32 = arith.constant 0 : i32
    %c0_i32_0 = arith.constant 0 : i32
    %c0_i32_1 = arith.constant 0 : i32
    return %c0_i32, %c0_i32_0 : i32, i32
  }
  func.func @transform_4(%arg0: i32) -> (i32, i32) {
    %c0_i32 = arith.constant 0 : i32
    %c0_i32_0 = arith.constant 0 : i32
    %c0_i32_1 = arith.constant 0 : i32
    return %c0_i32, %c0_i32_0 : i32, i32
  }
  func.func @transform_5(%arg0: i32) -> (i32, i32) {
    %c0_i32 = arith.constant 0 : i32
    %c0_i32_0 = arith.constant 0 : i32
    %c0_i32_1 = arith.constant 0 : i32
    return %c0_i32, %c0_i32_0 : i32, i32
  }
  func.func @transform_6(%arg0: i32) -> (i32, i32) {
    %c0_i32 = arith.constant 0 : i32
    %c0_i32_0 = arith.constant 0 : i32
    %c0_i32_1 = arith.constant 0 : i32
    return %c0_i32, %c0_i32_0 : i32, i32
  }
  func.func @transform_7(%arg0: i32) -> (i32, i32) {
    %c0_i32 = arith.constant 0 : i32
    %c0_i32_0 = arith.constant 0 : i32
    %c0_i32_1 = arith.constant 0 : i32
    return %c0_i32, %c0_i32_0 : i32, i32
  }
  func.func @transform_8(%arg0: i32) -> (i32, i32) {
    %c0_i32 = arith.constant 0 : i32
    %c0_i32_0 = arith.constant 0 : i32
    %c0_i32_1 = arith.constant 0 : i32
    return %c0_i32, %c0_i32_0 : i32, i32
  }
  func.func @transform_9(%arg0: i32) -> (i32, i32) {
    %c0_i32 = arith.constant 0 : i32
    %c0_i32_0 = arith.constant 0 : i32
    %c0_i32_1 = arith.constant 0 : i32
    return %c0_i32, %c0_i32_0 : i32, i32
  }
  func.func @transform_10(%arg0: i32) -> (i32, i32) {
    %c0_i32 = arith.constant 0 : i32
    %c0_i32_0 = arith.constant 0 : i32
    %c0_i32_1 = arith.constant 0 : i32
    return %c0_i32, %c0_i32_0 : i32, i32
  }
  func.func @transform_11(%arg0: i32) -> (i32, i32, i32) {
    %c0_i32 = arith.constant 0 : i32
    %c0_i32_0 = arith.constant 0 : i32
    %c0_i32_1 = arith.constant 0 : i32
    return %arg0, %c0_i32, %c0_i32_0 : i32, i32, i32
  }
}

</mosaic_0001>

<llo_original>
// kernel: tpu_custom_call.1
$region0: #{tpu_custom_call.1}
  #allocation0 [shape = 'u32[]', space=smem, size = 0x4, offset = 0x4, fixed_abs, tag = 'smem constant byte address 0x4 - core index']
  #allocation1 [shape = 'u32[144,128]{1,0:T(1,128)}', space=vmem, size = 0x12000, scoped, tag = 'internal scratch']
  %s0 = inlined_call_operand.vmem [shape: f32[4,16,256], index: 0, kind: input, shape index: {}]
  %s1 = inlined_call_operand.vmem [shape: bf16[256,32], index: 1, kind: input, shape index: {}]
  %s2 = inlined_call_operand.vmem [shape: bf16[16,256], index: 2, kind: input, shape index: {}]
  %s3 = inlined_call_operand.vmem [shape: bf16[16,256], index: 3, kind: input, shape index: {}]
  %s4 = inlined_call_operand.vmem [shape: f32[8,16], index: 4, kind: input, shape index: {}]
  %s5 = inlined_call_operand.vmem [shape: f32[8,16], index: 5, kind: input, shape index: {}]
  %s6 = inlined_call_operand.vmem [shape: f32[8,1], index: 6, kind: input, shape index: {}]
  %s7 = inlined_call_operand.vmem [shape: f32[16,8], index: 7, kind: input, shape index: {}]
  %s8 = inlined_call_operand.vmem [shape: f32[16,1], index: 8, kind: input, shape index: {}]
  %s9 = inlined_call_operand.vmem [shape: f32[16,8], index: 9, kind: input, shape index: {}]
  %s10 = inlined_call_operand.vmem [shape: f32[16,1], index: 10, kind: input, shape index: {}]
  %s11 = inlined_call_operand.hbm [shape: f32[4,16,256], index: 11, kind: output, shape index: {}]
  %s12 = sld [smem:[#allocation0]]
  $region54: #{tpu_custom_call.1} parent=0
    _
  %s14 = ssub.s32 1, %s12
  %s15 = scalar_select 0, %s14, %s12
  $region1: #{tpu_custom_call.1} parent=0
    #allocation2 [shape = 'u8[65536]{0}', space=vmem, size = 0x10000, scoped, tag = 'output window, operand 0, single buffered']
    #allocation3 [shape = 's32[1]{0}', space=sflag, size = 0x4, scoped, tag = 'scoped memory for tpu_custom_call.1']
    %16 = vsyncpa [#allocation3], 0
    // Predicated region
    $region2: #{tpu_custom_call.1} parent=1 // pred_check
      _
    $region3: #{tpu_custom_call.1} parent=1 // pred_check_branch
      %18 = sbr.rel (0) target = $region5
    $region4: #{tpu_custom_call.1} parent=1 // pred_region
      _
    $region5: #{tpu_custom_call.1} parent=1 // pred_fallthru
      _
    // Predicated region
    $region6: #{tpu_custom_call.1} parent=1 // pred_check
      _
    $region7: #{tpu_custom_call.1} parent=1 // pred_check_branch
      %20 = sbr.rel (0) target = $region9
    $region8: #{tpu_custom_call.1} parent=1 // pred_region
      _
    $region9: #{tpu_custom_call.1} parent=1 // pred_fallthru
      _
    // Predicated region
    $region10: #{tpu_custom_call.1} parent=1 // pred_check
      _
    $region11: #{tpu_custom_call.1} parent=1 // pred_check_branch
      %22 = sbr.rel (0) target = $region13
    $region12: #{tpu_custom_call.1} parent=1 // pred_region
      _
    $region13: #{tpu_custom_call.1} parent=1 // pred_fallthru
      _
    // Predicated region
    $region14: #{tpu_custom_call.1} parent=1 // pred_check
      _
    $region15: #{tpu_custom_call.1} parent=1 // pred_check_branch
      %24 = sbr.rel (0) target = $region17
    $region16: #{tpu_custom_call.1} parent=1 // pred_region
      _
    $region17: #{tpu_custom_call.1} parent=1 // pred_fallthru
      _
    // Predicated region
    $region18: #{tpu_custom_call.1} parent=1 // pred_check
      _
    $region19: #{tpu_custom_call.1} parent=1 // pred_check_branch
      %26 = sbr.rel (0) target = $region21
    $region20: #{tpu_custom_call.1} parent=1 // pred_region
      _
    $region21: #{tpu_custom_call.1} parent=1 // pred_fallthru
      _
    // Predicated region
    $region22: #{tpu_custom_call.1} parent=1 // pred_check
      _
    $region23: #{tpu_custom_call.1} parent=1 // pred_check_branch
      %28 = sbr.rel (0) target = $region25
    $region24: #{tpu_custom_call.1} parent=1 // pred_region
      _
    $region25: #{tpu_custom_call.1} parent=1 // pred_fallthru
      _
    // Predicated region
    $region26: #{tpu_custom_call.1} parent=1 // pred_check
      _
    $region27: #{tpu_custom_call.1} parent=1 // pred_check_branch
      %30 = sbr.rel (0) target = $region29
    $region28: #{tpu_custom_call.1} parent=1 // pred_region
      _
    $region29: #{tpu_custom_call.1} parent=1 // pred_fallthru
      _
    // Predicated region
    $region30: #{tpu_custom_call.1} parent=1 // pred_check
      _
    $region31: #{tpu_custom_call.1} parent=1 // pred_check_branch
      %32 = sbr.rel (0) target = $region33
    $region32: #{tpu_custom_call.1} parent=1 // pred_region
      _
    $region33: #{tpu_custom_call.1} parent=1 // pred_fallthru
      _
    // Predicated region
    $region34: #{tpu_custom_call.1} parent=1 // pred_check
      _
    $region35: #{tpu_custom_call.1} parent=1 // pred_check_branch
      %34 = sbr.rel (0) target = $region37
    $region36: #{tpu_custom_call.1} parent=1 // pred_region
      _
    $region37: #{tpu_custom_call.1} parent=1 // pred_fallthru
      _
    // Predicated region
    $region38: #{tpu_custom_call.1} parent=1 // pred_check
      _
    $region39: #{tpu_custom_call.1} parent=1 // pred_check_branch
      %36 = sbr.rel (0) target = $region41
    $region40: #{tpu_custom_call.1} parent=1 // pred_region
      _
    $region41: #{tpu_custom_call.1} parent=1 // pred_fallthru
      _
    // Predicated region
    $region42: #{tpu_custom_call.1} parent=1 // pred_check
      _
    $region43: #{tpu_custom_call.1} parent=1 // pred_check_branch
      %38 = sbr.rel (0) target = $region45
    $region44: #{tpu_custom_call.1} parent=1 // pred_region
      _
    $region45: #{tpu_custom_call.1} parent=1 // pred_fallthru
      _
    %v39 = vld [vmem:[%s0] sm:$0xff]
    %v40 = vld [vmem:[%s0 + $0x8] sm:$0xff]
    %v41 = vld [vmem:[%s0 + $0x10] sm:$0xff]
    %v42 = vld [vmem:[%s0 + $0x18] sm:$0xff]
    %v43 = vld [vmem:[%s0 + $0x20] sm:$0xff]
    %v44 = vld [vmem:[%s0 + $0x28] sm:$0xff]
    %v45 = vld [vmem:[%s0 + $0x30] sm:$0xff]
    %v46 = vld [vmem:[%s0 + $0x38] sm:$0xff]
    %v47 = vld [vmem:[%s0 + $0x40] sm:$0xff]
    %v48 = vld [vmem:[%s0 + $0x48] sm:$0xff]
    %v49 = vld [vmem:[%s0 + $0x50] sm:$0xff]
    %v50 = vld [vmem:[%s0 + $0x58] sm:$0xff]
    %v51 = vld [vmem:[%s0 + $0x60] sm:$0xff]
    %v52 = vld [vmem:[%s0 + $0x68] sm:$0xff]
    %v53 = vld [vmem:[%s0 + $0x70] sm:$0xff]
    %v54 = vld [vmem:[%s0 + $0x78] sm:$0xff]
    %v55 = vld [vmem:[%s1] sm:$0xf]
    %v56 = vld [vmem:[%s1 + $0x4] sm:$0xf]
    %v57 = vld [vmem:[%s1 + $0x8] sm:$0xf]
    %v58 = vld [vmem:[%s1 + $0xc] sm:$0xf]
    %v59 = vld [vmem:[%s1 + $0x10] sm:$0xf]
    %v60 = vld [vmem:[%s1 + $0x14] sm:$0xf]
    %v61 = vld [vmem:[%s1 + $0x18] sm:$0xf]
    %v62 = vld [vmem:[%s1 + $0x1c] sm:$0xf]
    %v63 = vld [vmem:[%s1 + $0x20] sm:$0xf]
    %v64 = vld [vmem:[%s1 + $0x24] sm:$0xf]
    %v65 = vld [vmem:[%s1 + $0x28] sm:$0xf]
    %v66 = vld [vmem:[%s1 + $0x2c] sm:$0xf]
    %v67 = vld [vmem:[%s1 + $0x30] sm:$0xf]
    %v68 = vld [vmem:[%s1 + $0x34] sm:$0xf]
    %v69 = vld [vmem:[%s1 + $0x38] sm:$0xf]
    %v70 = vld [vmem:[%s1 + $0x3c] sm:$0xf]
    %v71 = vld [vmem:[%s1 + $0x40] sm:$0xf]
    %v72 = vld [vmem:[%s1 + $0x44] sm:$0xf]
    %v73 = vld [vmem:[%s1 + $0x48] sm:$0xf]
    %v74 = vld [vmem:[%s1 + $0x4c] sm:$0xf]
    %v75 = vld [vmem:[%s1 + $0x50] sm:$0xf]
    %v76 = vld [vmem:[%s1 + $0x54] sm:$0xf]
    %v77 = vld [vmem:[%s1 + $0x58] sm:$0xf]
    %v78 = vld [vmem:[%s1 + $0x5c] sm:$0xf]
    %v79 = vld [vmem:[%s1 + $0x60] sm:$0xf]
    %v80 = vld [vmem:[%s1 + $0x64] sm:$0xf]
    %v81 = vld [vmem:[%s1 + $0x68] sm:$0xf]
    %v82 = vld [vmem:[%s1 + $0x6c] sm:$0xf]
    %v83 = vld [vmem:[%s1 + $0x70] sm:$0xf]
    %v84 = vld [vmem:[%s1 + $0x74] sm:$0xf]
    %v85 = vld [vmem:[%s1 + $0x78] sm:$0xf]
    %v86 = vld [vmem:[%s1 + $0x7c] sm:$0xf]
    %v87 = vunpack.c.l.bf16 %v55
    %v88 = vunpack.c.l.bf16 %v56
    %v89 = vunpack.c.l.bf16 %v57
    %v90 = vunpack.c.l.bf16 %v58
    %v91 = vunpack.c.l.bf16 %v59
    %v92 = vunpack.c.l.bf16 %v60
    %v93 = vunpack.c.l.bf16 %v61
    %v94 = vunpack.c.l.bf16 %v62
    %v95 = vunpack.c.l.bf16 %v63
    %v96 = vunpack.c.l.bf16 %v64
    %v97 = vunpack.c.l.bf16 %v65
    %v98 = vunpack.c.l.bf16 %v66
    %v99 = vunpack.c.l.bf16 %v67
    %v100 = vunpack.c.l.bf16 %v68
    %v101 = vunpack.c.l.bf16 %v69
    %v102 = vunpack.c.l.bf16 %v70
    %v103 = vunpack.c.l.bf16 %v71
    %v104 = vunpack.c.l.bf16 %v72
    %v105 = vunpack.c.l.bf16 %v73
    %v106 = vunpack.c.l.bf16 %v74
    %v107 = vunpack.c.l.bf16 %v75
    %v108 = vunpack.c.l.bf16 %v76
    %v109 = vunpack.c.l.bf16 %v77
    %v110 = vunpack.c.l.bf16 %v78
    %v111 = vunpack.c.l.bf16 %v79
    %v112 = vunpack.c.l.bf16 %v80
    %v113 = vunpack.c.l.bf16 %v81
    %v114 = vunpack.c.l.bf16 %v82
    %v115 = vunpack.c.l.bf16 %v83
    %v116 = vunpack.c.l.bf16 %v84
    %v117 = vunpack.c.l.bf16 %v85
    %v118 = vunpack.c.l.bf16 %v86
    %v119 = vld [vmem:[%s2] sm:$0xff]
    %v120 = vld [vmem:[%s2 + $0x8] sm:$0xff]
    %v121 = vunpack.c.l.bf16 %v119
    %v122 = vunpack.c.h.bf16 %v119
    %v123 = vunpack.c.l.bf16 %v120
    %v124 = vunpack.c.h.bf16 %v120
    %v125 = vld [vmem:[%s3] sm:$0xff]
    %v126 = vld [vmem:[%s3 + $0x8] sm:$0xff]
    %v127 = vunpack.c.l.bf16 %v125
    %v128 = vunpack.c.h.bf16 %v125
    %v129 = vunpack.c.l.bf16 %v126
    %v130 = vunpack.c.h.bf16 %v126
    %131 = vmatprep.subr.mxu0 0.0
    %132 = vmatpush1.msra.mxu0 %v102
    %133 = vmatprep.subr.mxu0 0.0
    %134 = vmatpush1.msra.mxu0 %v101
    %135 = vmatprep.subr.mxu0 0.0
    %136 = vmatpush1.msra.mxu0 %v100
    %137 = vmatprep.subr.mxu0 0.0
    %138 = vmatpush1.msra.mxu0 %v99
    %139 = vmatprep.subr.mxu0 0.0
    %140 = vmatpush1.msra.mxu0 %v98
    %141 = vmatprep.subr.mxu0 0.0
    %142 = vmatpush1.msra.mxu0 %v97
    %143 = vmatprep.subr.mxu0 0.0
    %144 = vmatpush1.msra.mxu0 %v96
    %145 = vmatprep.subr.mxu0 0.0
    %146 = vmatpush1.msra.mxu0 %v95
    %147 = vmatprep.subr.mxu0 0.0
    %148 = vmatpush1.msra.mxu0 %v94
    %149 = vmatprep.subr.mxu0 0.0
    %150 = vmatpush1.msra.mxu0 %v93
    %151 = vmatprep.subr.mxu0 0.0
    %152 = vmatpush1.msra.mxu0 %v92
    %153 = vmatprep.subr.mxu0 0.0
    %154 = vmatpush1.msra.mxu0 %v91
    %155 = vmatprep.subr.mxu0 0.0
    %156 = vmatpush1.msra.mxu0 %v90
    %157 = vmatprep.subr.mxu0 0.0
    %158 = vmatpush1.msra.mxu0 %v89
    %159 = vmatprep.subr.mxu0 0.0
    %160 = vmatpush1.msra.mxu0 %v88
    %161 = vmatprep.subr.mxu0 0.0
    %162 = vmatpush1.msra.mxu0 %v87
    %163 = vmatprep.subr.mxu0 0.0
    %164 = vmatpush2.msra.mxu0 %v118
    %165 = vmatprep.subr.mxu0 0.0
    %166 = vmatpush2.msra.mxu0 %v117
    %167 = vmatprep.subr.mxu0 0.0
    %168 = vmatpush2.msra.mxu0 %v116
    %169 = vmatprep.subr.mxu0 0.0
    %170 = vmatpush2.msra.mxu0 %v115
    %171 = vmatprep.subr.mxu0 0.0
    %172 = vmatpush2.msra.mxu0 %v114
    %173 = vmatprep.subr.mxu0 0.0
    %174 = vmatpush2.msra.mxu0 %v113
    %175 = vmatprep.subr.mxu0 0.0
    %176 = vmatpush2.msra.mxu0 %v112
    %177 = vmatprep.subr.mxu0 0.0
    %178 = vmatpush2.msra.mxu0 %v111
    %179 = vmatprep.subr.mxu0 0.0
    %180 = vmatpush2.msra.mxu0 %v110
    %181 = vmatprep.subr.mxu0 0.0
    %182 = vmatpush2.msra.mxu0 %v109
    %183 = vmatprep.subr.mxu0 0.0
    %184 = vmatpush2.msra.mxu0 %v108
    %185 = vmatprep.subr.mxu0 0.0
    %186 = vmatpush2.msra.mxu0 %v107
    %187 = vmatprep.subr.mxu0 0.0
    %188 = vmatpush2.msra.mxu0 %v106
    %189 = vmatprep.subr.mxu0 0.0
    %190 = vmatpush2.msra.mxu0 %v105
    %191 = vmatprep.subr.mxu0 0.0
    %192 = vmatpush2.msra.mxu0 %v104
    %193 = vmatprep.subr.mxu0 0.0
    %194 = vmatpush2.msra.mxu0 %v103
    %195 = vmatprep.mubr.f32.mxu0 %v40
    %196 = vmatmul.mubr.f32.gmra.mxu0 %v39
    %v197 = vpop.f32.mrf.mxu0
    %v198 = vadd.f32 0.0, %v197
    %v199 = vpop.f32.mrf.mxu0
    %200 = vmatprep.mubr.f32.mxu0 %v42
    %201 = vmatmul.mubr.f32.gmra.mxu0 %v41
    %v202 = vpop.f32.mrf.mxu0
    %v203 = vadd.f32 0.0, %v202
    %v204 = vpop.f32.mrf.mxu0
    %205 = vmatprep.mubr.f32.mxu0 %v44
    %206 = vmatmul.mubr.f32.gmra.mxu0 %v43
    %v207 = vpop.f32.mrf.mxu0
    %v208 = vadd.f32 0.0, %v207
    %v209 = vpop.f32.mrf.mxu0
    %210 = vmatprep.mubr.f32.mxu0 %v46
    %211 = vmatmul.mubr.f32.gmra.mxu0 %v45
    %v212 = vpop.f32.mrf.mxu0
    %v213 = vadd.f32 0.0, %v212
    %v214 = vpop.f32.mrf.mxu0
    %215 = vmatprep.mubr.f32.mxu0 %v48
    %216 = vmatmul.mubr.f32.gmra.mxu0 %v47
    %v217 = vpop.f32.mrf.mxu0
    %v218 = vadd.f32 0.0, %v217
    %v219 = vpop.f32.mrf.mxu0
    %220 = vmatprep.mubr.f32.mxu0 %v50
    %221 = vmatmul.mubr.f32.gmra.mxu0 %v49
    %v222 = vpop.f32.mrf.mxu0
    %v223 = vadd.f32 0.0, %v222
    %v224 = vpop.f32.mrf.mxu0
    %225 = vmatprep.mubr.f32.mxu0 %v52
    %226 = vmatmul.mubr.f32.gmra.mxu0 %v51
    %v227 = vpop.f32.mrf.mxu0
    %v228 = vadd.f32 0.0, %v227
    %v229 = vpop.f32.mrf.mxu0
    %230 = vmatprep.mubr.f32.mxu0 %v54
    %231 = vmatmul.mubr.f32.gmra.mxu0 %v53
    %v232 = vpop.f32.mrf.mxu0
    %v233 = vadd.f32 0.0, %v232
    %v234 = vpop.f32.mrf.mxu0
    %235 = vdwg.mxu0
    %v236 = vld [vmem:[%s4] sm:$0xff]
    %v237 = vld [vmem:[%s5] sm:$0xff]
    %v238 = vld [vmem:[%s6] sm:$0xff]
    %240 = vset.pattern.permute.xlu0 0
    %241 = vperm.xlu0 %240, %v238
    %v242 = vpop.permute.xlu0 %241
    %vm244 = vcmask 130048
    %v246 = vsel %vm244, %v236, 0
    %248 = vmatprep.subr.mxu0 0.0
    %249 = vmatpush1.msra.mxu0 0.0
    %250 = vmatprep.subr.mxu0 0.0
    %251 = vmatpush1.msra.mxu0 0.0
    %252 = vmatprep.subr.mxu0 0.0
    %253 = vmatpush1.msra.mxu0 0.0
    %254 = vmatprep.subr.mxu0 0.0
    %255 = vmatpush1.msra.mxu0 0.0
    %256 = vmatprep.subr.mxu0 0.0
    %257 = vmatpush1.msra.mxu0 0.0
    %258 = vmatprep.subr.mxu0 0.0
    %259 = vmatpush1.msra.mxu0 0.0
    %260 = vmatprep.subr.mxu0 0.0
    %261 = vmatpush1.msra.mxu0 0.0
    %262 = vmatprep.subr.mxu0 0.0
    %263 = vmatpush1.msra.mxu0 0.0
    %264 = vmatprep.subr.mxu0 0.0
    %265 = vmatpush1.msra.mxu0 0.0
    %266 = vmatprep.subr.mxu0 0.0
    %267 = vmatpush1.msra.mxu0 0.0
    %268 = vmatprep.subr.mxu0 0.0
    %269 = vmatpush1.msra.mxu0 0.0
    %270 = vmatprep.subr.mxu0 0.0
    %271 = vmatpush1.msra.mxu0 0.0
    %272 = vmatprep.subr.mxu0 0.0
    %273 = vmatpush1.msra.mxu0 0.0
    %274 = vmatprep.subr.mxu0 0.0
    %275 = vmatpush1.msra.mxu0 0.0
    %276 = vmatprep.subr.mxu0 0.0
    %277 = vmatpush1.msra.mxu0 %v203
    %278 = vmatprep.subr.mxu0 0.0
    %279 = vmatpush1.msra.mxu0 %v198
    %280 = vmatprep.subr.mxu0 0.0
    %281 = vmatpush2.msra.mxu0 0.0
    %282 = vmatprep.subr.mxu0 0.0
    %283 = vmatpush2.msra.mxu0 0.0
    %284 = vmatprep.subr.mxu0 0.0
    %285 = vmatpush2.msra.mxu0 0.0
    %286 = vmatprep.subr.mxu0 0.0
    %287 = vmatpush2.msra.mxu0 0.0
    %288 = vmatprep.subr.mxu0 0.0
    %289 = vmatpush2.msra.mxu0 0.0
    %290 = vmatprep.subr.mxu0 0.0
    %291 = vmatpush2.msra.mxu0 0.0
    %292 = vmatprep.subr.mxu0 0.0
    %293 = vmatpush2.msra.mxu0 0.0
    %294 = vmatprep.subr.mxu0 0.0
    %295 = vmatpush2.msra.mxu0 0.0
    %296 = vmatprep.subr.mxu0 0.0
    %297 = vmatpush2.msra.mxu0 0.0
    %298 = vmatprep.subr.mxu0 0.0
    %299 = vmatpush2.msra.mxu0 0.0
    %300 = vmatprep.subr.mxu0 0.0
    %301 = vmatpush2.msra.mxu0 0.0
    %302 = vmatprep.subr.mxu0 0.0
    %303 = vmatpush2.msra.mxu0 0.0
    %304 = vmatprep.subr.mxu0 0.0
    %305 = vmatpush2.msra.mxu0 0.0
    %306 = vmatprep.subr.mxu0 0.0
    %307 = vmatpush2.msra.mxu0 0.0
    %308 = vmatprep.subr.mxu0 0.0
    %309 = vmatpush2.msra.mxu0 0.0
    %310 = vmatprep.subr.mxu0 0.0
    %311 = vmatpush2.msra.mxu0 0.0
    %312 = vmatprep.mubr.f32.mxu0 0.0
    %313 = vmatmul.mubr.f32.gmra.mxu0 %v246
    %v314 = vpop.f32.mrf.mxu0
    %v315 = vadd.f32 %v242, %v314
    %v316 = vpop.f32.mrf.mxu0
    %317 = vdwg.mxu0
    %318 = vmatprep.subr.mxu0 0.0
    %319 = vmatpush1.msra.mxu0 0.0
    %320 = vmatprep.subr.mxu0 0.0
    %321 = vmatpush1.msra.mxu0 0.0
    %322 = vmatprep.subr.mxu0 0.0
    %323 = vmatpush1.msra.mxu0 0.0
    %324 = vmatprep.subr.mxu0 0.0
    %325 = vmatpush1.msra.mxu0 0.0
    %326 = vmatprep.subr.mxu0 0.0
    %327 = vmatpush1.msra.mxu0 0.0
    %328 = vmatprep.subr.mxu0 0.0
    %329 = vmatpush1.msra.mxu0 0.0
    %330 = vmatprep.subr.mxu0 0.0
    %331 = vmatpush1.msra.mxu0 0.0
    %332 = vmatprep.subr.mxu0 0.0
    %333 = vmatpush1.msra.mxu0 0.0
    %334 = vmatprep.subr.mxu0 0.0
    %335 = vmatpush1.msra.mxu0 0.0
    %336 = vmatprep.subr.mxu0 0.0
    %337 = vmatpush1.msra.mxu0 0.0
    %338 = vmatprep.subr.mxu0 0.0
    %339 = vmatpush1.msra.mxu0 0.0
    %340 = vmatprep.subr.mxu0 0.0
    %341 = vmatpush1.msra.mxu0 0.0
    %342 = vmatprep.subr.mxu0 0.0
    %343 = vmatpush1.msra.mxu0 0.0
    %344 = vmatprep.subr.mxu0 0.0
    %345 = vmatpush1.msra.mxu0 0.0
    %346 = vmatprep.subr.mxu0 0.0
    %347 = vmatpush1.msra.mxu0 %v213
    %348 = vmatprep.subr.mxu0 0.0
    %349 = vmatpush1.msra.mxu0 %v208
    %350 = vmatprep.subr.mxu0 0.0
    %351 = vmatpush2.msra.mxu0 0.0
    %352 = vmatprep.subr.mxu0 0.0
    %353 = vmatpush2.msra.mxu0 0.0
    %354 = vmatprep.subr.mxu0 0.0
    %355 = vmatpush2.msra.mxu0 0.0
    %356 = vmatprep.subr.mxu0 0.0
    %357 = vmatpush2.msra.mxu0 0.0
    %358 = vmatprep.subr.mxu0 0.0
    %359 = vmatpush2.msra.mxu0 0.0
    %360 = vmatprep.subr.mxu0 0.0
    %361 = vmatpush2.msra.mxu0 0.0
    %362 = vmatprep.subr.mxu0 0.0
    %363 = vmatpush2.msra.mxu0 0.0
    %364 = vmatprep.subr.mxu0 0.0
    %365 = vmatpush2.msra.mxu0 0.0
    %366 = vmatprep.subr.mxu0 0.0
    %367 = vmatpush2.msra.mxu0 0.0
    %368 = vmatprep.subr.mxu0 0.0
    %369 = vmatpush2.msra.mxu0 0.0
    %370 = vmatprep.subr.mxu0 0.0
    %371 = vmatpush2.msra.mxu0 0.0
    %372 = vmatprep.subr.mxu0 0.0
    %373 = vmatpush2.msra.mxu0 0.0
    %374 = vmatprep.subr.mxu0 0.0
    %375 = vmatpush2.msra.mxu0 0.0
    %376 = vmatprep.subr.mxu0 0.0
    %377 = vmatpush2.msra.mxu0 0.0
    %378 = vmatprep.subr.mxu0 0.0
    %379 = vmatpush2.msra.mxu0 0.0
    %380 = vmatprep.subr.mxu0 0.0
    %381 = vmatpush2.msra.mxu0 0.0
    %382 = vmatprep.mubr.f32.mxu0 0.0
    %383 = vmatmul.mubr.f32.gmra.mxu0 %v246
    %v384 = vpop.f32.mrf.mxu0
    %v385 = vadd.f32 %v242, %v384
    %v386 = vpop.f32.mrf.mxu0
    %387 = vdwg.mxu0
    %388 = vmatprep.subr.mxu0 0.0
    %389 = vmatpush1.msra.mxu0 0.0
    %390 = vmatprep.subr.mxu0 0.0
    %391 = vmatpush1.msra.mxu0 0.0
    %392 = vmatprep.subr.mxu0 0.0
    %393 = vmatpush1.msra.mxu0 0.0
    %394 = vmatprep.subr.mxu0 0.0
    %395 = vmatpush1.msra.mxu0 0.0
    %396 = vmatprep.subr.mxu0 0.0
    %397 = vmatpush1.msra.mxu0 0.0
    %398 = vmatprep.subr.mxu0 0.0
    %399 = vmatpush1.msra.mxu0 0.0
    %400 = vmatprep.subr.mxu0 0.0
    %401 = vmatpush1.msra.mxu0 0.0
    %402 = vmatprep.subr.mxu0 0.0
    %403 = vmatpush1.msra.mxu0 0.0
    %404 = vmatprep.subr.mxu0 0.0
    %405 = vmatpush1.msra.mxu0 0.0
    %406 = vmatprep.subr.mxu0 0.0
    %407 = vmatpush1.msra.mxu0 0.0
    %408 = vmatprep.subr.mxu0 0.0
    %409 = vmatpush1.msra.mxu0 0.0
    %410 = vmatprep.subr.mxu0 0.0
    %411 = vmatpush1.msra.mxu0 0.0
    %412 = vmatprep.subr.mxu0 0.0
    %413 = vmatpush1.msra.mxu0 0.0
    %414 = vmatprep.subr.mxu0 0.0
    %415 = vmatpush1.msra.mxu0 0.0
    %416 = vmatprep.subr.mxu0 0.0
    %417 = vmatpush1.msra.mxu0 %v223
    %418 = vmatprep.subr.mxu0 0.0
    %419 = vmatpush1.msra.mxu0 %v218
    %420 = vmatprep.subr.mxu0 0.0
    %421 = vmatpush2.msra.mxu0 0.0
    %422 = vmatprep.subr.mxu0 0.0
    %423 = vmatpush2.msra.mxu0 0.0
    %424 = vmatprep.subr.mxu0 0.0
    %425 = vmatpush2.msra.mxu0 0.0
    %426 = vmatprep.subr.mxu0 0.0
    %427 = vmatpush2.msra.mxu0 0.0
    %428 = vmatprep.subr.mxu0 0.0
    %429 = vmatpush2.msra.mxu0 0.0
    %430 = vmatprep.subr.mxu0 0.0
    %431 = vmatpush2.msra.mxu0 0.0
    %432 = vmatprep.subr.mxu0 0.0
    %433 = vmatpush2.msra.mxu0 0.0
    %434 = vmatprep.subr.mxu0 0.0
    %435 = vmatpush2.msra.mxu0 0.0
    %436 = vmatprep.subr.mxu0 0.0
    %437 = vmatpush2.msra.mxu0 0.0
    %438 = vmatprep.subr.mxu0 0.0
    %439 = vmatpush2.msra.mxu0 0.0
    %440 = vmatprep.subr.mxu0 0.0
    %441 = vmatpush2.msra.mxu0 0.0
    %442 = vmatprep.subr.mxu0 0.0
    %443 = vmatpush2.msra.mxu0 0.0
    %444 = vmatprep.subr.mxu0 0.0
    %445 = vmatpush2.msra.mxu0 0.0
    %446 = vmatprep.subr.mxu0 0.0
    %447 = vmatpush2.msra.mxu0 0.0
    %448 = vmatprep.subr.mxu0 0.0
    %449 = vmatpush2.msra.mxu0 0.0
    %450 = vmatprep.subr.mxu0 0.0
    %451 = vmatpush2.msra.mxu0 0.0
    %452 = vmatprep.mubr.f32.mxu0 0.0
    %453 = vmatmul.mubr.f32.gmra.mxu0 %v246
    %v454 = vpop.f32.mrf.mxu0
    %v455 = vadd.f32 %v242, %v454
    %v456 = vpop.f32.mrf.mxu0
    %457 = vdwg.mxu0
    %458 = vmatprep.subr.mxu0 0.0
    %459 = vmatpush1.msra.mxu0 0.0
    %460 = vmatprep.subr.mxu0 0.0
    %461 = vmatpush1.msra.mxu0 0.0
    %462 = vmatprep.subr.mxu0 0.0
    %463 = vmatpush1.msra.mxu0 0.0
    %464 = vmatprep.subr.mxu0 0.0
    %465 = vmatpush1.msra.mxu0 0.0
    %466 = vmatprep.subr.mxu0 0.0
    %467 = vmatpush1.msra.mxu0 0.0
    %468 = vmatprep.subr.mxu0 0.0
    %469 = vmatpush1.msra.mxu0 0.0
    %470 = vmatprep.subr.mxu0 0.0
    %471 = vmatpush1.msra.mxu0 0.0
    %472 = vmatprep.subr.mxu0 0.0
    %473 = vmatpush1.msra.mxu0 0.0
    %474 = vmatprep.subr.mxu0 0.0
    %475 = vmatpush1.msra.mxu0 0.0
    %476 = vmatprep.subr.mxu0 0.0
    %477 = vmatpush1.msra.mxu0 0.0
    %478 = vmatprep.subr.mxu0 0.0
    %479 = vmatpush1.msra.mxu0 0.0
    %480 = vmatprep.subr.mxu0 0.0
    %481 = vmatpush1.msra.mxu0 0.0
    %482 = vmatprep.subr.mxu0 0.0
    %483 = vmatpush1.msra.mxu0 0.0
    %484 = vmatprep.subr.mxu0 0.0
    %485 = vmatpush1.msra.mxu0 0.0
    %486 = vmatprep.subr.mxu0 0.0
    %487 = vmatpush1.msra.mxu0 %v233
    %488 = vmatprep.subr.mxu0 0.0
    %489 = vmatpush1.msra.mxu0 %v228
    %490 = vmatprep.subr.mxu0 0.0
    %491 = vmatpush2.msra.mxu0 0.0
    %492 = vmatprep.subr.mxu0 0.0
    %493 = vmatpush2.msra.mxu0 0.0
    %494 = vmatprep.subr.mxu0 0.0
    %495 = vmatpush2.msra.mxu0 0.0
    %496 = vmatprep.subr.mxu0 0.0
    %497 = vmatpush2.msra.mxu0 0.0
    %498 = vmatprep.subr.mxu0 0.0
    %499 = vmatpush2.msra.mxu0 0.0
    %500 = vmatprep.subr.mxu0 0.0
    %501 = vmatpush2.msra.mxu0 0.0
    %502 = vmatprep.subr.mxu0 0.0
    %503 = vmatpush2.msra.mxu0 0.0
    %504 = vmatprep.subr.mxu0 0.0
    %505 = vmatpush2.msra.mxu0 0.0
    %506 = vmatprep.subr.mxu0 0.0
    %507 = vmatpush2.msra.mxu0 0.0
    %508 = vmatprep.subr.mxu0 0.0
    %509 = vmatpush2.msra.mxu0 0.0
    %510 = vmatprep.subr.mxu0 0.0
    %511 = vmatpush2.msra.mxu0 0.0
    %512 = vmatprep.subr.mxu0 0.0
    %513 = vmatpush2.msra.mxu0 0.0
    %514 = vmatprep.subr.mxu0 0.0
    %515 = vmatpush2.msra.mxu0 0.0
    %516 = vmatprep.subr.mxu0 0.0
    %517 = vmatpush2.msra.mxu0 0.0
    %518 = vmatprep.subr.mxu0 0.0
    %519 = vmatpush2.msra.mxu0 0.0
    %520 = vmatprep.subr.mxu0 0.0
    %521 = vmatpush2.msra.mxu0 0.0
    %522 = vmatprep.mubr.f32.mxu0 0.0
    %523 = vmatmul.mubr.f32.gmra.mxu0 %v246
    %v524 = vpop.f32.mrf.mxu0
    %v525 = vadd.f32 %v242, %v524
    %v526 = vpop.f32.mrf.mxu0
    %527 = vdwg.mxu0
    %v528 = vmax.f32 %v315, 0.0
    %v529 = vmax.f32 %v385, 0.0
    %v530 = vmax.f32 %v455, 0.0
    %v531 = vmax.f32 %v525, 0.0
    %534 = vrot.lane.b32.xlu0 %v198, 112
    %v535 = vpop.permute.xlu0 %534
    %536 = vrot.lane.b32.xlu0 %v203, 112
    %v537 = vpop.permute.xlu0 %536
    %v541 = vsel %vm244, %v237, 0
    %543 = vmatprep.subr.mxu0 0.0
    %544 = vmatpush1.msra.mxu0 0.0
    %545 = vmatprep.subr.mxu0 0.0
    %546 = vmatpush1.msra.mxu0 0.0
    %547 = vmatprep.subr.mxu0 0.0
    %548 = vmatpush1.msra.mxu0 0.0
    %549 = vmatprep.subr.mxu0 0.0
    %550 = vmatpush1.msra.mxu0 0.0
    %551 = vmatprep.subr.mxu0 0.0
    %552 = vmatpush1.msra.mxu0 0.0
    %553 = vmatprep.subr.mxu0 0.0
    %554 = vmatpush1.msra.mxu0 0.0
    %555 = vmatprep.subr.mxu0 0.0
    %556 = vmatpush1.msra.mxu0 0.0
    %557 = vmatprep.subr.mxu0 0.0
    %558 = vmatpush1.msra.mxu0 0.0
    %559 = vmatprep.subr.mxu0 0.0
    %560 = vmatpush1.msra.mxu0 0.0
    %561 = vmatprep.subr.mxu0 0.0
    %562 = vmatpush1.msra.mxu0 0.0
    %563 = vmatprep.subr.mxu0 0.0
    %564 = vmatpush1.msra.mxu0 0.0
    %565 = vmatprep.subr.mxu0 0.0
    %566 = vmatpush1.msra.mxu0 0.0
    %567 = vmatprep.subr.mxu0 0.0
    %568 = vmatpush1.msra.mxu0 0.0
    %569 = vmatprep.subr.mxu0 0.0
    %570 = vmatpush1.msra.mxu0 0.0
    %571 = vmatprep.subr.mxu0 0.0
    %572 = vmatpush1.msra.mxu0 %v537
    %573 = vmatprep.subr.mxu0 0.0
    %574 = vmatpush1.msra.mxu0 %v535
    %575 = vmatprep.subr.mxu0 0.0
    %576 = vmatpush2.msra.mxu0 0.0
    %577 = vmatprep.subr.mxu0 0.0
    %578 = vmatpush2.msra.mxu0 0.0
    %579 = vmatprep.subr.mxu0 0.0
    %580 = vmatpush2.msra.mxu0 0.0
    %581 = vmatprep.subr.mxu0 0.0
    %582 = vmatpush2.msra.mxu0 0.0
    %583 = vmatprep.subr.mxu0 0.0
    %584 = vmatpush2.msra.mxu0 0.0
    %585 = vmatprep.subr.mxu0 0.0
    %586 = vmatpush2.msra.mxu0 0.0
    %587 = vmatprep.subr.mxu0 0.0
    %588 = vmatpush2.msra.mxu0 0.0
    %589 = vmatprep.subr.mxu0 0.0
    %590 = vmatpush2.msra.mxu0 0.0
    %591 = vmatprep.subr.mxu0 0.0
    %592 = vmatpush2.msra.mxu0 0.0
    %593 = vmatprep.subr.mxu0 0.0
    %594 = vmatpush2.msra.mxu0 0.0
    %595 = vmatprep.subr.mxu0 0.0
    %596 = vmatpush2.msra.mxu0 0.0
    %597 = vmatprep.subr.mxu0 0.0
    %598 = vmatpush2.msra.mxu0 0.0
    %599 = vmatprep.subr.mxu0 0.0
    %600 = vmatpush2.msra.mxu0 0.0
    %601 = vmatprep.subr.mxu0 0.0
    %602 = vmatpush2.msra.mxu0 0.0
    %603 = vmatprep.subr.mxu0 0.0
    %604 = vmatpush2.msra.mxu0 0.0
    %605 = vmatprep.subr.mxu0 0.0
    %606 = vmatpush2.msra.mxu0 0.0
    %607 = vmatprep.mubr.f32.mxu0 0.0
    %608 = vmatmul.mubr.f32.gmra.mxu0 %v541
    %v609 = vpop.f32.mrf.mxu0
    %v610 = vadd.f32 %v242, %v609
    %v611 = vpop.f32.mrf.mxu0
    %612 = vdwg.mxu0
    %615 = vrot.lane.b32.xlu0 %v208, 112
    %v616 = vpop.permute.xlu0 %615
    %617 = vrot.lane.b32.xlu0 %v213, 112
    %v618 = vpop.permute.xlu0 %617
    %621 = vmatprep.subr.mxu0 0.0
    %622 = vmatpush1.msra.mxu0 0.0
    %623 = vmatprep.subr.mxu0 0.0
    %624 = vmatpush1.msra.mxu0 0.0
    %625 = vmatprep.subr.mxu0 0.0
    %626 = vmatpush1.msra.mxu0 0.0
    %627 = vmatprep.subr.mxu0 0.0
    %628 = vmatpush1.msra.mxu0 0.0
    %629 = vmatprep.subr.mxu0 0.0
    %630 = vmatpush1.msra.mxu0 0.0
    %631 = vmatprep.subr.mxu0 0.0
    %632 = vmatpush1.msra.mxu0 0.0
    %633 = vmatprep.subr.mxu0 0.0
    %634 = vmatpush1.msra.mxu0 0.0
    %635 = vmatprep.subr.mxu0 0.0
    %636 = vmatpush1.msra.mxu0 0.0
    %637 = vmatprep.subr.mxu0 0.0
    %638 = vmatpush1.msra.mxu0 0.0
    %639 = vmatprep.subr.mxu0 0.0
    %640 = vmatpush1.msra.mxu0 0.0
    %641 = vmatprep.subr.mxu0 0.0
    %642 = vmatpush1.msra.mxu0 0.0
    %643 = vmatprep.subr.mxu0 0.0
    %644 = vmatpush1.msra.mxu0 0.0
    %645 = vmatprep.subr.mxu0 0.0
    %646 = vmatpush1.msra.mxu0 0.0
    %647 = vmatprep.subr.mxu0 0.0
    %648 = vmatpush1.msra.mxu0 0.0
    %649 = vmatprep.subr.mxu0 0.0
    %650 = vmatpush1.msra.mxu0 %v618
    %651 = vmatprep.subr.mxu0 0.0
    %652 = vmatpush1.msra.mxu0 %v616
    %653 = vmatprep.subr.mxu0 0.0
    %654 = vmatpush2.msra.mxu0 0.0
    %655 = vmatprep.subr.mxu0 0.0
    %656 = vmatpush2.msra.mxu0 0.0
    %657 = vmatprep.subr.mxu0 0.0
    %658 = vmatpush2.msra.mxu0 0.0
    %659 = vmatprep.subr.mxu0 0.0
    %660 = vmatpush2.msra.mxu0 0.0
    %661 = vmatprep.subr.mxu0 0.0
    %662 = vmatpush2.msra.mxu0 0.0
    %663 = vmatprep.subr.mxu0 0.0
    %664 = vmatpush2.msra.mxu0 0.0
    %665 = vmatprep.subr.mxu0 0.0
    %666 = vmatpush2.msra.mxu0 0.0
    %667 = vmatprep.subr.mxu0 0.0
    %668 = vmatpush2.msra.mxu0 0.0
    %669 = vmatprep.subr.mxu0 0.0
    %670 = vmatpush2.msra.mxu0 0.0
    %671 = vmatprep.subr.mxu0 0.0
    %672 = vmatpush2.msra.mxu0 0.0
    %673 = vmatprep.subr.mxu0 0.0
    %674 = vmatpush2.msra.mxu0 0.0
    %675 = vmatprep.subr.mxu0 0.0
    %676 = vmatpush2.msra.mxu0 0.0
    %677 = vmatprep.subr.mxu0 0.0
    %678 = vmatpush2.msra.mxu0 0.0
    %679 = vmatprep.subr.mxu0 0.0
    %680 = vmatpush2.msra.mxu0 0.0
    %681 = vmatprep.subr.mxu0 0.0
    %682 = vmatpush2.msra.mxu0 0.0
    %683 = vmatprep.subr.mxu0 0.0
    %684 = vmatpush2.msra.mxu0 0.0
    %685 = vmatprep.mubr.f32.mxu0 0.0
    %686 = vmatmul.mubr.f32.gmra.mxu0 %v541
    %v687 = vpop.f32.mrf.mxu0
    %v688 = vadd.f32 %v242, %v687
    %v689 = vpop.f32.mrf.mxu0
    %690 = vdwg.mxu0
    %693 = vrot.lane.b32.xlu0 %v218, 112
    %v694 = vpop.permute.xlu0 %693
    %695 = vrot.lane.b32.xlu0 %v223, 112
    %v696 = vpop.permute.xlu0 %695
    %699 = vmatprep.subr.mxu0 0.0
    %700 = vmatpush1.msra.mxu0 0.0
    %701 = vmatprep.subr.mxu0 0.0
    %702 = vmatpush1.msra.mxu0 0.0
    %703 = vmatprep.subr.mxu0 0.0
    %704 = vmatpush1.msra.mxu0 0.0
    %705 = vmatprep.subr.mxu0 0.0
    %706 = vmatpush1.msra.mxu0 0.0
    %707 = vmatprep.subr.mxu0 0.0
    %708 = vmatpush1.msra.mxu0 0.0
    %709 = vmatprep.subr.mxu0 0.0
    %710 = vmatpush1.msra.mxu0 0.0
    %711 = vmatprep.subr.mxu0 0.0
    %712 = vmatpush1.msra.mxu0 0.0
    %713 = vmatprep.subr.mxu0 0.0
    %714 = vmatpush1.msra.mxu0 0.0
    %715 = vmatprep.subr.mxu0 0.0
    %716 = vmatpush1.msra.mxu0 0.0
    %717 = vmatprep.subr.mxu0 0.0
    %718 = vmatpush1.msra.mxu0 0.0
    %719 = vmatprep.subr.mxu0 0.0
    %720 = vmatpush1.msra.mxu0 0.0
    %721 = vmatprep.subr.mxu0 0.0
    %722 = vmatpush1.msra.mxu0 0.0
    %723 = vmatprep.subr.mxu0 0.0
    %724 = vmatpush1.msra.mxu0 0.0
    %725 = vmatprep.subr.mxu0 0.0
    %726 = vmatpush1.msra.mxu0 0.0
    %727 = vmatprep.subr.mxu0 0.0
    %728 = vmatpush1.msra.mxu0 %v696
    %729 = vmatprep.subr.mxu0 0.0
    %730 = vmatpush1.msra.mxu0 %v694
    %731 = vmatprep.subr.mxu0 0.0
    %732 = vmatpush2.msra.mxu0 0.0
    %733 = vmatprep.subr.mxu0 0.0
    %734 = vmatpush2.msra.mxu0 0.0
    %735 = vmatprep.subr.mxu0 0.0
    %736 = vmatpush2.msra.mxu0 0.0
    %737 = vmatprep.subr.mxu0 0.0
    %738 = vmatpush2.msra.mxu0 0.0
    %739 = vmatprep.subr.mxu0 0.0
    %740 = vmatpush2.msra.mxu0 0.0
    %741 = vmatprep.subr.mxu0 0.0
    %742 = vmatpush2.msra.mxu0 0.0
    %743 = vmatprep.subr.mxu0 0.0
    %744 = vmatpush2.msra.mxu0 0.0
    %745 = vmatprep.subr.mxu0 0.0
    %746 = vmatpush2.msra.mxu0 0.0
    %747 = vmatprep.subr.mxu0 0.0
    %748 = vmatpush2.msra.mxu0 0.0
    %749 = vmatprep.subr.mxu0 0.0
    %750 = vmatpush2.msra.mxu0 0.0
    %751 = vmatprep.subr.mxu0 0.0
    %752 = vmatpush2.msra.mxu0 0.0
    %753 = vmatprep.subr.mxu0 0.0
    %754 = vmatpush2.msra.mxu0 0.0
    %755 = vmatprep.subr.mxu0 0.0
    %756 = vmatpush2.msra.mxu0 0.0
    %757 = vmatprep.subr.mxu0 0.0
    %758 = vmatpush2.msra.mxu0 0.0
    %759 = vmatprep.subr.mxu0 0.0
    %760 = vmatpush2.msra.mxu0 0.0
    %761 = vmatprep.subr.mxu0 0.0
    %762 = vmatpush2.msra.mxu0 0.0
    %763 = vmatprep.mubr.f32.mxu0 0.0
    %764 = vmatmul.mubr.f32.gmra.mxu0 %v541
    %v765 = vpop.f32.mrf.mxu0
    %v766 = vadd.f32 %v242, %v765
    %v767 = vpop.f32.mrf.mxu0
    %768 = vdwg.mxu0
    %771 = vrot.lane.b32.xlu0 %v228, 112
    %v772 = vpop.permute.xlu0 %771
    %773 = vrot.lane.b32.xlu0 %v233, 112
    %v774 = vpop.permute.xlu0 %773
    %777 = vmatprep.subr.mxu0 0.0
    %778 = vmatpush1.msra.mxu0 0.0
    %779 = vmatprep.subr.mxu0 0.0
    %780 = vmatpush1.msra.mxu0 0.0
    %781 = vmatprep.subr.mxu0 0.0
    %782 = vmatpush1.msra.mxu0 0.0
    %783 = vmatprep.subr.mxu0 0.0
    %784 = vmatpush1.msra.mxu0 0.0
    %785 = vmatprep.subr.mxu0 0.0
    %786 = vmatpush1.msra.mxu0 0.0
    %787 = vmatprep.subr.mxu0 0.0
    %788 = vmatpush1.msra.mxu0 0.0
    %789 = vmatprep.subr.mxu0 0.0
    %790 = vmatpush1.msra.mxu0 0.0
    %791 = vmatprep.subr.mxu0 0.0
    %792 = vmatpush1.msra.mxu0 0.0
    %793 = vmatprep.subr.mxu0 0.0
    %794 = vmatpush1.msra.mxu0 0.0
    %795 = vmatprep.subr.mxu0 0.0
    %796 = vmatpush1.msra.mxu0 0.0
    %797 = vmatprep.subr.mxu0 0.0
    %798 = vmatpush1.msra.mxu0 0.0
    %799 = vmatprep.subr.mxu0 0.0
    %800 = vmatpush1.msra.mxu0 0.0
    %801 = vmatprep.subr.mxu0 0.0
    %802 = vmatpush1.msra.mxu0 0.0
    %803 = vmatprep.subr.mxu0 0.0
    %804 = vmatpush1.msra.mxu0 0.0
    %805 = vmatprep.subr.mxu0 0.0
    %806 = vmatpush1.msra.mxu0 %v774
    %807 = vmatprep.subr.mxu0 0.0
    %808 = vmatpush1.msra.mxu0 %v772
    %809 = vmatprep.subr.mxu0 0.0
    %810 = vmatpush2.msra.mxu0 0.0
    %811 = vmatprep.subr.mxu0 0.0
    %812 = vmatpush2.msra.mxu0 0.0
    %813 = vmatprep.subr.mxu0 0.0
    %814 = vmatpush2.msra.mxu0 0.0
    %815 = vmatprep.subr.mxu0 0.0
    %816 = vmatpush2.msra.mxu0 0.0
    %817 = vmatprep.subr.mxu0 0.0
    %818 = vmatpush2.msra.mxu0 0.0
    %819 = vmatprep.subr.mxu0 0.0
    %820 = vmatpush2.msra.mxu0 0.0
    %821 = vmatprep.subr.mxu0 0.0
    %822 = vmatpush2.msra.mxu0 0.0
    %823 = vmatprep.subr.mxu0 0.0
    %824 = vmatpush2.msra.mxu0 0.0
    %825 = vmatprep.subr.mxu0 0.0
    %826 = vmatpush2.msra.mxu0 0.0
    %827 = vmatprep.subr.mxu0 0.0
    %828 = vmatpush2.msra.mxu0 0.0
    %829 = vmatprep.subr.mxu0 0.0
    %830 = vmatpush2.msra.mxu0 0.0
    %831 = vmatprep.subr.mxu0 0.0
    %832 = vmatpush2.msra.mxu0 0.0
    %833 = vmatprep.subr.mxu0 0.0
    %834 = vmatpush2.msra.mxu0 0.0
    %835 = vmatprep.subr.mxu0 0.0
    %836 = vmatpush2.msra.mxu0 0.0
    %837 = vmatprep.subr.mxu0 0.0
    %838 = vmatpush2.msra.mxu0 0.0
    %839 = vmatprep.subr.mxu0 0.0
    %840 = vmatpush2.msra.mxu0 0.0
    %841 = vmatprep.mubr.f32.mxu0 0.0
    %842 = vmatmul.mubr.f32.gmra.mxu0 %v541
    %v843 = vpop.f32.mrf.mxu0
    %v844 = vadd.f32 %v242, %v843
    %v845 = vpop.f32.mrf.mxu0
    %846 = vdwg.mxu0
    %v847 = vmax.f32 %v610, 0.0
    %v848 = vmax.f32 %v688, 0.0
    %v849 = vmax.f32 %v766, 0.0
    %v850 = vmax.f32 %v844, 0.0
    %v851 = vld [vmem:[%s7] sm:$0xff]
    %v852 = vld [vmem:[%s7 + $0x8] sm:$0xff]
    %v853 = vld [vmem:[%s9] sm:$0xff]
    %v854 = vld [vmem:[%s9 + $0x8] sm:$0xff]
    %v855 = vld [vmem:[%s8] sm:$0xff]
    %v856 = vld [vmem:[%s8 + $0x8] sm:$0xff]
    %858 = vset.pattern.permute.xlu0 0
    %859 = vperm.xlu0 %858, %v855
    %v860 = vpop.permute.xlu0 %859
    %863 = vset.pattern.permute.xlu0 0
    %864 = vperm.xlu0 %863, %v856
    %v865 = vpop.permute.xlu0 %864
    %vm867 = vcmask 64512
    %v869 = vsel %vm867, %v851, 0
    %v872 = vsel %vm867, %v852, 0
    %874 = vmatprep.subr.mxu0 0.0
    %875 = vmatpush1.msra.mxu0 0.0
    %876 = vmatprep.subr.mxu0 0.0
    %877 = vmatpush1.msra.mxu0 0.0
    %878 = vmatprep.subr.mxu0 0.0
    %879 = vmatpush1.msra.mxu0 0.0
    %880 = vmatprep.subr.mxu0 0.0
    %881 = vmatpush1.msra.mxu0 0.0
    %882 = vmatprep.subr.mxu0 0.0
    %883 = vmatpush1.msra.mxu0 0.0
    %884 = vmatprep.subr.mxu0 0.0
    %885 = vmatpush1.msra.mxu0 0.0
    %886 = vmatprep.subr.mxu0 0.0
    %887 = vmatpush1.msra.mxu0 0.0
    %888 = vmatprep.subr.mxu0 0.0
    %889 = vmatpush1.msra.mxu0 0.0
    %890 = vmatprep.subr.mxu0 0.0
    %891 = vmatpush1.msra.mxu0 0.0
    %892 = vmatprep.subr.mxu0 0.0
    %893 = vmatpush1.msra.mxu0 0.0
    %894 = vmatprep.subr.mxu0 0.0
    %895 = vmatpush1.msra.mxu0 0.0
    %896 = vmatprep.subr.mxu0 0.0
    %897 = vmatpush1.msra.mxu0 0.0
    %898 = vmatprep.subr.mxu0 0.0
    %899 = vmatpush1.msra.mxu0 0.0
    %900 = vmatprep.subr.mxu0 0.0
    %901 = vmatpush1.msra.mxu0 0.0
    %902 = vmatprep.subr.mxu0 0.0
    %903 = vmatpush1.msra.mxu0 0.0
    %904 = vmatprep.subr.mxu0 0.0
    %905 = vmatpush1.msra.mxu0 %v528
    %906 = vmatprep.subr.mxu0 0.0
    %907 = vmatpush2.msra.mxu0 0.0
    %908 = vmatprep.subr.mxu0 0.0
    %909 = vmatpush2.msra.mxu0 0.0
    %910 = vmatprep.subr.mxu0 0.0
    %911 = vmatpush2.msra.mxu0 0.0
    %912 = vmatprep.subr.mxu0 0.0
    %913 = vmatpush2.msra.mxu0 0.0
    %914 = vmatprep.subr.mxu0 0.0
    %915 = vmatpush2.msra.mxu0 0.0
    %916 = vmatprep.subr.mxu0 0.0
    %917 = vmatpush2.msra.mxu0 0.0
    %918 = vmatprep.subr.mxu0 0.0
    %919 = vmatpush2.msra.mxu0 0.0
    %920 = vmatprep.subr.mxu0 0.0
    %921 = vmatpush2.msra.mxu0 0.0
    %922 = vmatprep.subr.mxu0 0.0
    %923 = vmatpush2.msra.mxu0 0.0
    %924 = vmatprep.subr.mxu0 0.0
    %925 = vmatpush2.msra.mxu0 0.0
    %926 = vmatprep.subr.mxu0 0.0
    %927 = vmatpush2.msra.mxu0 0.0
    %928 = vmatprep.subr.mxu0 0.0
    %929 = vmatpush2.msra.mxu0 0.0
    %930 = vmatprep.subr.mxu0 0.0
    %931 = vmatpush2.msra.mxu0 0.0
    %932 = vmatprep.subr.mxu0 0.0
    %933 = vmatpush2.msra.mxu0 0.0
    %934 = vmatprep.subr.mxu0 0.0
    %935 = vmatpush2.msra.mxu0 0.0
    %936 = vmatprep.subr.mxu0 0.0
    %937 = vmatpush2.msra.mxu0 0.0
    %938 = vmatprep.mubr.f32.mxu0 0.0
    %939 = vmatmul.mubr.f32.gmra.mxu0 %v869
    %v940 = vpop.f32.mrf.mxu0
    %v941 = vadd.f32 %v860, %v940
    %v942 = vpop.f32.mrf.mxu0
    %943 = vmatprep.mubr.f32.mxu0 0.0
    %944 = vmatmul.mubr.f32.gmra.mxu0 %v872
    %v945 = vpop.f32.mrf.mxu0
    %v946 = vadd.f32 %v865, %v945
    %v947 = vpop.f32.mrf.mxu0
    %948 = vdwg.mxu0
    %949 = vmatprep.subr.mxu0 0.0
    %950 = vmatpush1.msra.mxu0 0.0
    %951 = vmatprep.subr.mxu0 0.0
    %952 = vmatpush1.msra.mxu0 0.0
    %953 = vmatprep.subr.mxu0 0.0
    %954 = vmatpush1.msra.mxu0 0.0
    %955 = vmatprep.subr.mxu0 0.0
    %956 = vmatpush1.msra.mxu0 0.0
    %957 = vmatprep.subr.mxu0 0.0
    %958 = vmatpush1.msra.mxu0 0.0
    %959 = vmatprep.subr.mxu0 0.0
    %960 = vmatpush1.msra.mxu0 0.0
    %961 = vmatprep.subr.mxu0 0.0
    %962 = vmatpush1.msra.mxu0 0.0
    %963 = vmatprep.subr.mxu0 0.0
    %964 = vmatpush1.msra.mxu0 0.0
    %965 = vmatprep.subr.mxu0 0.0
    %966 = vmatpush1.msra.mxu0 0.0
    %967 = vmatprep.subr.mxu0 0.0
    %968 = vmatpush1.msra.mxu0 0.0
    %969 = vmatprep.subr.mxu0 0.0
    %970 = vmatpush1.msra.mxu0 0.0
    %971 = vmatprep.subr.mxu0 0.0
    %972 = vmatpush1.msra.mxu0 0.0
    %973 = vmatprep.subr.mxu0 0.0
    %974 = vmatpush1.msra.mxu0 0.0
    %975 = vmatprep.subr.mxu0 0.0
    %976 = vmatpush1.msra.mxu0 0.0
    %977 = vmatprep.subr.mxu0 0.0
    %978 = vmatpush1.msra.mxu0 0.0
    %979 = vmatprep.subr.mxu0 0.0
    %980 = vmatpush1.msra.mxu0 %v529
    %981 = vmatprep.subr.mxu0 0.0
    %982 = vmatpush2.msra.mxu0 0.0
    %983 = vmatprep.subr.mxu0 0.0
    %984 = vmatpush2.msra.mxu0 0.0
    %985 = vmatprep.subr.mxu0 0.0
    %986 = vmatpush2.msra.mxu0 0.0
    %987 = vmatprep.subr.mxu0 0.0
    %988 = vmatpush2.msra.mxu0 0.0
    %989 = vmatprep.subr.mxu0 0.0
    %990 = vmatpush2.msra.mxu0 0.0
    %991 = vmatprep.subr.mxu0 0.0
    %992 = vmatpush2.msra.mxu0 0.0
    %993 = vmatprep.subr.mxu0 0.0
    %994 = vmatpush2.msra.mxu0 0.0
    %995 = vmatprep.subr.mxu0 0.0
    %996 = vmatpush2.msra.mxu0 0.0
    %997 = vmatprep.subr.mxu0 0.0
    %998 = vmatpush2.msra.mxu0 0.0
    %999 = vmatprep.subr.mxu0 0.0
    %1000 = vmatpush2.msra.mxu0 0.0
    %1001 = vmatprep.subr.mxu0 0.0
    %1002 = vmatpush2.msra.mxu0 0.0
    %1003 = vmatprep.subr.mxu0 0.0
    %1004 = vmatpush2.msra.mxu0 0.0
    %1005 = vmatprep.subr.mxu0 0.0
    %1006 = vmatpush2.msra.mxu0 0.0
    %1007 = vmatprep.subr.mxu0 0.0
    %1008 = vmatpush2.msra.mxu0 0.0
    %1009 = vmatprep.subr.mxu0 0.0
    %1010 = vmatpush2.msra.mxu0 0.0
    %1011 = vmatprep.subr.mxu0 0.0
    %1012 = vmatpush2.msra.mxu0 0.0
    %1013 = vmatprep.mubr.f32.mxu0 0.0
    %1014 = vmatmul.mubr.f32.gmra.mxu0 %v869
    %v1015 = vpop.f32.mrf.mxu0
    %v1016 = vadd.f32 %v860, %v1015
    %v1017 = vpop.f32.mrf.mxu0
    %1018 = vmatprep.mubr.f32.mxu0 0.0
    %1019 = vmatmul.mubr.f32.gmra.mxu0 %v872
    %v1020 = vpop.f32.mrf.mxu0
    %v1021 = vadd.f32 %v865, %v1020
    %v1022 = vpop.f32.mrf.mxu0
    %1023 = vdwg.mxu0
    %1024 = vmatprep.subr.mxu0 0.0
    %1025 = vmatpush1.msra.mxu0 0.0
    %1026 = vmatprep.subr.mxu0 0.0
    %1027 = vmatpush1.msra.mxu0 0.0
    %1028 = vmatprep.subr.mxu0 0.0
    %1029 = vmatpush1.msra.mxu0 0.0
    %1030 = vmatprep.subr.mxu0 0.0
    %1031 = vmatpush1.msra.mxu0 0.0
    %1032 = vmatprep.subr.mxu0 0.0
    %1033 = vmatpush1.msra.mxu0 0.0
    %1034 = vmatprep.subr.mxu0 0.0
    %1035 = vmatpush1.msra.mxu0 0.0
    %1036 = vmatprep.subr.mxu0 0.0
    %1037 = vmatpush1.msra.mxu0 0.0
    %1038 = vmatprep.subr.mxu0 0.0
    %1039 = vmatpush1.msra.mxu0 0.0
    %1040 = vmatprep.subr.mxu0 0.0
    %1041 = vmatpush1.msra.mxu0 0.0
    %1042 = vmatprep.subr.mxu0 0.0
    %1043 = vmatpush1.msra.mxu0 0.0
    %1044 = vmatprep.subr.mxu0 0.0
    %1045 = vmatpush1.msra.mxu0 0.0
    %1046 = vmatprep.subr.mxu0 0.0
    %1047 = vmatpush1.msra.mxu0 0.0
    %1048 = vmatprep.subr.mxu0 0.0
    %1049 = vmatpush1.msra.mxu0 0.0
    %1050 = vmatprep.subr.mxu0 0.0
    %1051 = vmatpush1.msra.mxu0 0.0
    %1052 = vmatprep.subr.mxu0 0.0
    %1053 = vmatpush1.msra.mxu0 0.0
    %1054 = vmatprep.subr.mxu0 0.0
    %1055 = vmatpush1.msra.mxu0 %v530
    %1056 = vmatprep.subr.mxu0 0.0
    %1057 = vmatpush2.msra.mxu0 0.0
    %1058 = vmatprep.subr.mxu0 0.0
    %1059 = vmatpush2.msra.mxu0 0.0
    %1060 = vmatprep.subr.mxu0 0.0
    %1061 = vmatpush2.msra.mxu0 0.0
    %1062 = vmatprep.subr.mxu0 0.0
    %1063 = vmatpush2.msra.mxu0 0.0
    %1064 = vmatprep.subr.mxu0 0.0
    %1065 = vmatpush2.msra.mxu0 0.0
    %1066 = vmatprep.subr.mxu0 0.0
    %1067 = vmatpush2.msra.mxu0 0.0
    %1068 = vmatprep.subr.mxu0 0.0
    %1069 = vmatpush2.msra.mxu0 0.0
    %1070 = vmatprep.subr.mxu0 0.0
    %1071 = vmatpush2.msra.mxu0 0.0
    %1072 = vmatprep.subr.mxu0 0.0
    %1073 = vmatpush2.msra.mxu0 0.0
    %1074 = vmatprep.subr.mxu0 0.0
    %1075 = vmatpush2.msra.mxu0 0.0
    %1076 = vmatprep.subr.mxu0 0.0
    %1077 = vmatpush2.msra.mxu0 0.0
    %1078 = vmatprep.subr.mxu0 0.0
    %1079 = vmatpush2.msra.mxu0 0.0
    %1080 = vmatprep.subr.mxu0 0.0
    %1081 = vmatpush2.msra.mxu0 0.0
    %1082 = vmatprep.subr.mxu0 0.0
    %1083 = vmatpush2.msra.mxu0 0.0
    %1084 = vmatprep.subr.mxu0 0.0
    %1085 = vmatpush2.msra.mxu0 0.0
    %1086 = vmatprep.subr.mxu0 0.0
    %1087 = vmatpush2.msra.mxu0 0.0
    %1088 = vmatprep.mubr.f32.mxu0 0.0
    %1089 = vmatmul.mubr.f32.gmra.mxu0 %v869
    %v1090 = vpop.f32.mrf.mxu0
    %v1091 = vadd.f32 %v860, %v1090
    %v1092 = vpop.f32.mrf.mxu0
    %1093 = vmatprep.mubr.f32.mxu0 0.0
    %1094 = vmatmul.mubr.f32.gmra.mxu0 %v872
    %v1095 = vpop.f32.mrf.mxu0
    %v1096 = vadd.f32 %v865, %v1095
    %v1097 = vpop.f32.mrf.mxu0
    %1098 = vdwg.mxu0
    %1099 = vmatprep.subr.mxu0 0.0
    %1100 = vmatpush1.msra.mxu0 0.0
    %1101 = vmatprep.subr.mxu0 0.0
    %1102 = vmatpush1.msra.mxu0 0.0
    %1103 = vmatprep.subr.mxu0 0.0
    %1104 = vmatpush1.msra.mxu0 0.0
    %1105 = vmatprep.subr.mxu0 0.0
    %1106 = vmatpush1.msra.mxu0 0.0
    %1107 = vmatprep.subr.mxu0 0.0
    %1108 = vmatpush1.msra.mxu0 0.0
    %1109 = vmatprep.subr.mxu0 0.0
    %1110 = vmatpush1.msra.mxu0 0.0
    %1111 = vmatprep.subr.mxu0 0.0
    %1112 = vmatpush1.msra.mxu0 0.0
    %1113 = vmatprep.subr.mxu0 0.0
    %1114 = vmatpush1.msra.mxu0 0.0
    %1115 = vmatprep.subr.mxu0 0.0
    %1116 = vmatpush1.msra.mxu0 0.0
    %1117 = vmatprep.subr.mxu0 0.0
    %1118 = vmatpush1.msra.mxu0 0.0
    %1119 = vmatprep.subr.mxu0 0.0
    %1120 = vmatpush1.msra.mxu0 0.0
    %1121 = vmatprep.subr.mxu0 0.0
    %1122 = vmatpush1.msra.mxu0 0.0
    %1123 = vmatprep.subr.mxu0 0.0
    %1124 = vmatpush1.msra.mxu0 0.0
    %1125 = vmatprep.subr.mxu0 0.0
    %1126 = vmatpush1.msra.mxu0 0.0
    %1127 = vmatprep.subr.mxu0 0.0
    %1128 = vmatpush1.msra.mxu0 0.0
    %1129 = vmatprep.subr.mxu0 0.0
    %1130 = vmatpush1.msra.mxu0 %v531
    %1131 = vmatprep.subr.mxu0 0.0
    %1132 = vmatpush2.msra.mxu0 0.0
    %1133 = vmatprep.subr.mxu0 0.0
    %1134 = vmatpush2.msra.mxu0 0.0
    %1135 = vmatprep.subr.mxu0 0.0
    %1136 = vmatpush2.msra.mxu0 0.0
    %1137 = vmatprep.subr.mxu0 0.0
    %1138 = vmatpush2.msra.mxu0 0.0
    %1139 = vmatprep.subr.mxu0 0.0
    %1140 = vmatpush2.msra.mxu0 0.0
    %1141 = vmatprep.subr.mxu0 0.0
    %1142 = vmatpush2.msra.mxu0 0.0
    %1143 = vmatprep.subr.mxu0 0.0
    %1144 = vmatpush2.msra.mxu0 0.0
    %1145 = vmatprep.subr.mxu0 0.0
    %1146 = vmatpush2.msra.mxu0 0.0
    %1147 = vmatprep.subr.mxu0 0.0
    %1148 = vmatpush2.msra.mxu0 0.0
    %1149 = vmatprep.subr.mxu0 0.0
    %1150 = vmatpush2.msra.mxu0 0.0
    %1151 = vmatprep.subr.mxu0 0.0
    %1152 = vmatpush2.msra.mxu0 0.0
    %1153 = vmatprep.subr.mxu0 0.0
    %1154 = vmatpush2.msra.mxu0 0.0
    %1155 = vmatprep.subr.mxu0 0.0
    %1156 = vmatpush2.msra.mxu0 0.0
    %1157 = vmatprep.subr.mxu0 0.0
    %1158 = vmatpush2.msra.mxu0 0.0
    %1159 = vmatprep.subr.mxu0 0.0
    %1160 = vmatpush2.msra.mxu0 0.0
    %1161 = vmatprep.subr.mxu0 0.0
    %1162 = vmatpush2.msra.mxu0 0.0
    %1163 = vmatprep.mubr.f32.mxu0 0.0
    %1164 = vmatmul.mubr.f32.gmra.mxu0 %v869
    %v1165 = vpop.f32.mrf.mxu0
    %v1166 = vadd.f32 %v860, %v1165
    %v1167 = vpop.f32.mrf.mxu0
    %1168 = vmatprep.mubr.f32.mxu0 0.0
    %1169 = vmatmul.mubr.f32.gmra.mxu0 %v872
    %v1170 = vpop.f32.mrf.mxu0
    %v1171 = vadd.f32 %v865, %v1170
    %v1172 = vpop.f32.mrf.mxu0
    %1173 = vdwg.mxu0
    %v1174 = vxor.u32 %v941, 2147483648
    %v1175 = vxor.u32 %v946, 2147483648
    %v1176 = vxor.u32 %v1016, 2147483648
    %v1177 = vxor.u32 %v1021, 2147483648
    %v1178 = vxor.u32 %v1091, 2147483648
    %v1179 = vxor.u32 %v1096, 2147483648
    %v1180 = vxor.u32 %v1166, 2147483648
    %v1181 = vxor.u32 %v1171, 2147483648
    %v1182 = vmul.f32 %v1174, 1.442695
    %v1183 = vpow.pop %v1182
    %v1184 = vmul.f32 %v1175, 1.442695
    %v1185 = vpow.pop %v1184
    %v1186 = vmul.f32 %v1176, 1.442695
    %v1187 = vpow.pop %v1186
    %v1188 = vmul.f32 %v1177, 1.442695
    %v1189 = vpow.pop %v1188
    %v1190 = vmul.f32 %v1178, 1.442695
    %v1191 = vpow.pop %v1190
    %v1192 = vmul.f32 %v1179, 1.442695
    %v1193 = vpow.pop %v1192
    %v1194 = vmul.f32 %v1180, 1.442695
    %v1195 = vpow.pop %v1194
    %v1196 = vmul.f32 %v1181, 1.442695
    %v1197 = vpow.pop %v1196
    %v1198 = vadd.f32 %v1183, 1.0
    %v1199 = vadd.f32 %v1185, 1.0
    %v1200 = vadd.f32 %v1187, 1.0
    %v1201 = vadd.f32 %v1189, 1.0
    %v1202 = vadd.f32 %v1191, 1.0
    %v1203 = vadd.f32 %v1193, 1.0
    %v1204 = vadd.f32 %v1195, 1.0
    %v1205 = vadd.f32 %v1197, 1.0
    %v1206 = vrcp.pop %v1198
    %v1207 = vmul.f32 1.0, %v1206
    %v1208 = vrcp.pop %v1199
    %v1209 = vmul.f32 1.0, %v1208
    %v1210 = vrcp.pop %v1200
    %v1211 = vmul.f32 1.0, %v1210
    %v1212 = vrcp.pop %v1201
    %v1213 = vmul.f32 1.0, %v1212
    %v1214 = vrcp.pop %v1202
    %v1215 = vmul.f32 1.0, %v1214
    %v1216 = vrcp.pop %v1203
    %v1217 = vmul.f32 1.0, %v1216
    %v1218 = vrcp.pop %v1204
    %v1219 = vmul.f32 1.0, %v1218
    %v1220 = vrcp.pop %v1205
    %v1221 = vmul.f32 1.0, %v1220
    %v1222 = vld [vmem:[%s10] sm:$0xff]
    %v1223 = vld [vmem:[%s10 + $0x8] sm:$0xff]
    %1225 = vset.pattern.permute.xlu0 0
    %1226 = vperm.xlu0 %1225, %v1222
    %v1227 = vpop.permute.xlu0 %1226
    %1230 = vset.pattern.permute.xlu0 0
    %1231 = vperm.xlu0 %1230, %v1223
    %v1232 = vpop.permute.xlu0 %1231
    %v1235 = vsel %vm867, %v853, 0
    %v1238 = vsel %vm867, %v854, 0
    %1240 = vmatprep.subr.mxu0 0.0
    %1241 = vmatpush1.msra.mxu0 0.0
    %1242 = vmatprep.subr.mxu0 0.0
    %1243 = vmatpush1.msra.mxu0 0.0
    %1244 = vmatprep.subr.mxu0 0.0
    %1245 = vmatpush1.msra.mxu0 0.0
    %1246 = vmatprep.subr.mxu0 0.0
    %1247 = vmatpush1.msra.mxu0 0.0
    %1248 = vmatprep.subr.mxu0 0.0
    %1249 = vmatpush1.msra.mxu0 0.0
    %1250 = vmatprep.subr.mxu0 0.0
    %1251 = vmatpush1.msra.mxu0 0.0
    %1252 = vmatprep.subr.mxu0 0.0
    %1253 = vmatpush1.msra.mxu0 0.0
    %1254 = vmatprep.subr.mxu0 0.0
    %1255 = vmatpush1.msra.mxu0 0.0
    %1256 = vmatprep.subr.mxu0 0.0
    %1257 = vmatpush1.msra.mxu0 0.0
    %1258 = vmatprep.subr.mxu0 0.0
    %1259 = vmatpush1.msra.mxu0 0.0
    %1260 = vmatprep.subr.mxu0 0.0
    %1261 = vmatpush1.msra.mxu0 0.0
    %1262 = vmatprep.subr.mxu0 0.0
    %1263 = vmatpush1.msra.mxu0 0.0
    %1264 = vmatprep.subr.mxu0 0.0
    %1265 = vmatpush1.msra.mxu0 0.0
    %1266 = vmatprep.subr.mxu0 0.0
    %1267 = vmatpush1.msra.mxu0 0.0
    %1268 = vmatprep.subr.mxu0 0.0
    %1269 = vmatpush1.msra.mxu0 0.0
    %1270 = vmatprep.subr.mxu0 0.0
    %1271 = vmatpush1.msra.mxu0 %v847
    %1272 = vmatprep.subr.mxu0 0.0
    %1273 = vmatpush2.msra.mxu0 0.0
    %1274 = vmatprep.subr.mxu0 0.0
    %1275 = vmatpush2.msra.mxu0 0.0
    %1276 = vmatprep.subr.mxu0 0.0
    %1277 = vmatpush2.msra.mxu0 0.0
    %1278 = vmatprep.subr.mxu0 0.0
    %1279 = vmatpush2.msra.mxu0 0.0
    %1280 = vmatprep.subr.mxu0 0.0
    %1281 = vmatpush2.msra.mxu0 0.0
    %1282 = vmatprep.subr.mxu0 0.0
    %1283 = vmatpush2.msra.mxu0 0.0
    %1284 = vmatprep.subr.mxu0 0.0
    %1285 = vmatpush2.msra.mxu0 0.0
    %1286 = vmatprep.subr.mxu0 0.0
    %1287 = vmatpush2.msra.mxu0 0.0
    %1288 = vmatprep.subr.mxu0 0.0
    %1289 = vmatpush2.msra.mxu0 0.0
    %1290 = vmatprep.subr.mxu0 0.0
    %1291 = vmatpush2.msra.mxu0 0.0
    %1292 = vmatprep.subr.mxu0 0.0
    %1293 = vmatpush2.msra.mxu0 0.0
    %1294 = vmatprep.subr.mxu0 0.0
    %1295 = vmatpush2.msra.mxu0 0.0
    %1296 = vmatprep.subr.mxu0 0.0
    %1297 = vmatpush2.msra.mxu0 0.0
    %1298 = vmatprep.subr.mxu0 0.0
    %1299 = vmatpush2.msra.mxu0 0.0
    %1300 = vmatprep.subr.mxu0 0.0
    %1301 = vmatpush2.msra.mxu0 0.0
    %1302 = vmatprep.subr.mxu0 0.0
    %1303 = vmatpush2.msra.mxu0 0.0
    %1304 = vmatprep.mubr.f32.mxu0 0.0
    %1305 = vmatmul.mubr.f32.gmra.mxu0 %v1235
    %v1306 = vpop.f32.mrf.mxu0
    %v1307 = vadd.f32 %v1227, %v1306
    %v1308 = vpop.f32.mrf.mxu0
    %1309 = vmatprep.mubr.f32.mxu0 0.0
    %1310 = vmatmul.mubr.f32.gmra.mxu0 %v1238
    %v1311 = vpop.f32.mrf.mxu0
    %v1312 = vadd.f32 %v1232, %v1311
    %v1313 = vpop.f32.mrf.mxu0
    %1314 = vdwg.mxu0
    %1315 = vmatprep.subr.mxu0 0.0
    %1316 = vmatpush1.msra.mxu0 0.0
    %1317 = vmatprep.subr.mxu0 0.0
    %1318 = vmatpush1.msra.mxu0 0.0
    %1319 = vmatprep.subr.mxu0 0.0
    %1320 = vmatpush1.msra.mxu0 0.0
    %1321 = vmatprep.subr.mxu0 0.0
    %1322 = vmatpush1.msra.mxu0 0.0
    %1323 = vmatprep.subr.mxu0 0.0
    %1324 = vmatpush1.msra.mxu0 0.0
    %1325 = vmatprep.subr.mxu0 0.0
    %1326 = vmatpush1.msra.mxu0 0.0
    %1327 = vmatprep.subr.mxu0 0.0
    %1328 = vmatpush1.msra.mxu0 0.0
    %1329 = vmatprep.subr.mxu0 0.0
    %1330 = vmatpush1.msra.mxu0 0.0
    %1331 = vmatprep.subr.mxu0 0.0
    %1332 = vmatpush1.msra.mxu0 0.0
    %1333 = vmatprep.subr.mxu0 0.0
    %1334 = vmatpush1.msra.mxu0 0.0
    %1335 = vmatprep.subr.mxu0 0.0
    %1336 = vmatpush1.msra.mxu0 0.0
    %1337 = vmatprep.subr.mxu0 0.0
    %1338 = vmatpush1.msra.mxu0 0.0
    %1339 = vmatprep.subr.mxu0 0.0
    %1340 = vmatpush1.msra.mxu0 0.0
    %1341 = vmatprep.subr.mxu0 0.0
    %1342 = vmatpush1.msra.mxu0 0.0
    %1343 = vmatprep.subr.mxu0 0.0
    %1344 = vmatpush1.msra.mxu0 0.0
    %1345 = vmatprep.subr.mxu0 0.0
    %1346 = vmatpush1.msra.mxu0 %v848
    %1347 = vmatprep.subr.mxu0 0.0
    %1348 = vmatpush2.msra.mxu0 0.0
    %1349 = vmatprep.subr.mxu0 0.0
    %1350 = vmatpush2.msra.mxu0 0.0
    %1351 = vmatprep.subr.mxu0 0.0
    %1352 = vmatpush2.msra.mxu0 0.0
    %1353 = vmatprep.subr.mxu0 0.0
    %1354 = vmatpush2.msra.mxu0 0.0
    %1355 = vmatprep.subr.mxu0 0.0
    %1356 = vmatpush2.msra.mxu0 0.0
    %1357 = vmatprep.subr.mxu0 0.0
    %1358 = vmatpush2.msra.mxu0 0.0
    %1359 = vmatprep.subr.mxu0 0.0
    %1360 = vmatpush2.msra.mxu0 0.0
    %1361 = vmatprep.subr.mxu0 0.0
    %1362 = vmatpush2.msra.mxu0 0.0
    %1363 = vmatprep.subr.mxu0 0.0
    %1364 = vmatpush2.msra.mxu0 0.0
    %1365 = vmatprep.subr.mxu0 0.0
    %1366 = vmatpush2.msra.mxu0 0.0
    %1367 = vmatprep.subr.mxu0 0.0
    %1368 = vmatpush2.msra.mxu0 0.0
    %1369 = vmatprep.subr.mxu0 0.0
    %1370 = vmatpush2.msra.mxu0 0.0
    %1371 = vmatprep.subr.mxu0 0.0
    %1372 = vmatpush2.msra.mxu0 0.0
    %1373 = vmatprep.subr.mxu0 0.0
    %1374 = vmatpush2.msra.mxu0 0.0
    %1375 = vmatprep.subr.mxu0 0.0
    %1376 = vmatpush2.msra.mxu0 0.0
    %1377 = vmatprep.subr.mxu0 0.0
    %1378 = vmatpush2.msra.mxu0 0.0
    %1379 = vmatprep.mubr.f32.mxu0 0.0
    %1380 = vmatmul.mubr.f32.gmra.mxu0 %v1235
    %v1381 = vpop.f32.mrf.mxu0
    %v1382 = vadd.f32 %v1227, %v1381
    %v1383 = vpop.f32.mrf.mxu0
    %1384 = vmatprep.mubr.f32.mxu0 0.0
    %1385 = vmatmul.mubr.f32.gmra.mxu0 %v1238
    %v1386 = vpop.f32.mrf.mxu0
    %v1387 = vadd.f32 %v1232, %v1386
    %v1388 = vpop.f32.mrf.mxu0
    %1389 = vdwg.mxu0
    %1390 = vmatprep.subr.mxu0 0.0
    %1391 = vmatpush1.msra.mxu0 0.0
    %1392 = vmatprep.subr.mxu0 0.0
    %1393 = vmatpush1.msra.mxu0 0.0
    %1394 = vmatprep.subr.mxu0 0.0
    %1395 = vmatpush1.msra.mxu0 0.0
    %1396 = vmatprep.subr.mxu0 0.0
    %1397 = vmatpush1.msra.mxu0 0.0
    %1398 = vmatprep.subr.mxu0 0.0
    %1399 = vmatpush1.msra.mxu0 0.0
    %1400 = vmatprep.subr.mxu0 0.0
    %1401 = vmatpush1.msra.mxu0 0.0
    %1402 = vmatprep.subr.mxu0 0.0
    %1403 = vmatpush1.msra.mxu0 0.0
    %1404 = vmatprep.subr.mxu0 0.0
    %1405 = vmatpush1.msra.mxu0 0.0
    %1406 = vmatprep.subr.mxu0 0.0
    %1407 = vmatpush1.msra.mxu0 0.0
    %1408 = vmatprep.subr.mxu0 0.0
    %1409 = vmatpush1.msra.mxu0 0.0
    %1410 = vmatprep.subr.mxu0 0.0
    %1411 = vmatpush1.msra.mxu0 0.0
    %1412 = vmatprep.subr.mxu0 0.0
    %1413 = vmatpush1.msra.mxu0 0.0
    %1414 = vmatprep.subr.mxu0 0.0
    %1415 = vmatpush1.msra.mxu0 0.0
    %1416 = vmatprep.subr.mxu0 0.0
    %1417 = vmatpush1.msra.mxu0 0.0
    %1418 = vmatprep.subr.mxu0 0.0
    %1419 = vmatpush1.msra.mxu0 0.0
    %1420 = vmatprep.subr.mxu0 0.0
    %1421 = vmatpush1.msra.mxu0 %v849
    %1422 = vmatprep.subr.mxu0 0.0
    %1423 = vmatpush2.msra.mxu0 0.0
    %1424 = vmatprep.subr.mxu0 0.0
    %1425 = vmatpush2.msra.mxu0 0.0
    %1426 = vmatprep.subr.mxu0 0.0
    %1427 = vmatpush2.msra.mxu0 0.0
    %1428 = vmatprep.subr.mxu0 0.0
    %1429 = vmatpush2.msra.mxu0 0.0
    %1430 = vmatprep.subr.mxu0 0.0
    %1431 = vmatpush2.msra.mxu0 0.0
    %1432 = vmatprep.subr.mxu0 0.0
    %1433 = vmatpush2.msra.mxu0 0.0
    %1434 = vmatprep.subr.mxu0 0.0
    %1435 = vmatpush2.msra.mxu0 0.0
    %1436 = vmatprep.subr.mxu0 0.0
    %1437 = vmatpush2.msra.mxu0 0.0
    %1438 = vmatprep.subr.mxu0 0.0
    %1439 = vmatpush2.msra.mxu0 0.0
    %1440 = vmatprep.subr.mxu0 0.0
    %1441 = vmatpush2.msra.mxu0 0.0
    %1442 = vmatprep.subr.mxu0 0.0
    %1443 = vmatpush2.msra.mxu0 0.0
    %1444 = vmatprep.subr.mxu0 0.0
    %1445 = vmatpush2.msra.mxu0 0.0
    %1446 = vmatprep.subr.mxu0 0.0
    %1447 = vmatpush2.msra.mxu0 0.0
    %1448 = vmatprep.subr.mxu0 0.0
    %1449 = vmatpush2.msra.mxu0 0.0
    %1450 = vmatprep.subr.mxu0 0.0
    %1451 = vmatpush2.msra.mxu0 0.0
    %1452 = vmatprep.subr.mxu0 0.0
    %1453 = vmatpush2.msra.mxu0 0.0
    %1454 = vmatprep.mubr.f32.mxu0 0.0
    %1455 = vmatmul.mubr.f32.gmra.mxu0 %v1235
    %v1456 = vpop.f32.mrf.mxu0
    %v1457 = vadd.f32 %v1227, %v1456
    %v1458 = vpop.f32.mrf.mxu0
    %1459 = vmatprep.mubr.f32.mxu0 0.0
    %1460 = vmatmul.mubr.f32.gmra.mxu0 %v1238
    %v1461 = vpop.f32.mrf.mxu0
    %v1462 = vadd.f32 %v1232, %v1461
    %v1463 = vpop.f32.mrf.mxu0
    %1464 = vdwg.mxu0
    %1465 = vmatprep.subr.mxu0 0.0
    %1466 = vmatpush1.msra.mxu0 0.0
    %1467 = vmatprep.subr.mxu0 0.0
    %1468 = vmatpush1.msra.mxu0 0.0
    %1469 = vmatprep.subr.mxu0 0.0
    %1470 = vmatpush1.msra.mxu0 0.0
    %1471 = vmatprep.subr.mxu0 0.0
    %1472 = vmatpush1.msra.mxu0 0.0
    %1473 = vmatprep.subr.mxu0 0.0
    %1474 = vmatpush1.msra.mxu0 0.0
    %1475 = vmatprep.subr.mxu0 0.0
    %1476 = vmatpush1.msra.mxu0 0.0
    %1477 = vmatprep.subr.mxu0 0.0
    %1478 = vmatpush1.msra.mxu0 0.0
    %1479 = vmatprep.subr.mxu0 0.0
    %1480 = vmatpush1.msra.mxu0 0.0
    %1481 = vmatprep.subr.mxu0 0.0
    %1482 = vmatpush1.msra.mxu0 0.0
    %1483 = vmatprep.subr.mxu0 0.0
    %1484 = vmatpush1.msra.mxu0 0.0
    %1485 = vmatprep.subr.mxu0 0.0
    %1486 = vmatpush1.msra.mxu0 0.0
    %1487 = vmatprep.subr.mxu0 0.0
    %1488 = vmatpush1.msra.mxu0 0.0
    %1489 = vmatprep.subr.mxu0 0.0
    %1490 = vmatpush1.msra.mxu0 0.0
    %1491 = vmatprep.subr.mxu0 0.0
    %1492 = vmatpush1.msra.mxu0 0.0
    %1493 = vmatprep.subr.mxu0 0.0
    %1494 = vmatpush1.msra.mxu0 0.0
    %1495 = vmatprep.subr.mxu0 0.0
    %1496 = vmatpush1.msra.mxu0 %v850
    %1497 = vmatprep.subr.mxu0 0.0
    %1498 = vmatpush2.msra.mxu0 0.0
    %1499 = vmatprep.subr.mxu0 0.0
    %1500 = vmatpush2.msra.mxu0 0.0
    %1501 = vmatprep.subr.mxu0 0.0
    %1502 = vmatpush2.msra.mxu0 0.0
    %1503 = vmatprep.subr.mxu0 0.0
    %1504 = vmatpush2.msra.mxu0 0.0
    %1505 = vmatprep.subr.mxu0 0.0
    %1506 = vmatpush2.msra.mxu0 0.0
    %1507 = vmatprep.subr.mxu0 0.0
    %1508 = vmatpush2.msra.mxu0 0.0
    %1509 = vmatprep.subr.mxu0 0.0
    %1510 = vmatpush2.msra.mxu0 0.0
    %1511 = vmatprep.subr.mxu0 0.0
    %1512 = vmatpush2.msra.mxu0 0.0
    %1513 = vmatprep.subr.mxu0 0.0
    %1514 = vmatpush2.msra.mxu0 0.0
    %1515 = vmatprep.subr.mxu0 0.0
    %1516 = vmatpush2.msra.mxu0 0.0
    %1517 = vmatprep.subr.mxu0 0.0
    %1518 = vmatpush2.msra.mxu0 0.0
    %1519 = vmatprep.subr.mxu0 0.0
    %1520 = vmatpush2.msra.mxu0 0.0
    %1521 = vmatprep.subr.mxu0 0.0
    %1522 = vmatpush2.msra.mxu0 0.0
    %1523 = vmatprep.subr.mxu0 0.0
    %1524 = vmatpush2.msra.mxu0 0.0
    %1525 = vmatprep.subr.mxu0 0.0
    %1526 = vmatpush2.msra.mxu0 0.0
    %1527 = vmatprep.subr.mxu0 0.0
    %1528 = vmatpush2.msra.mxu0 0.0
    %1529 = vmatprep.mubr.f32.mxu0 0.0
    %1530 = vmatmul.mubr.f32.gmra.mxu0 %v1235
    %v1531 = vpop.f32.mrf.mxu0
    %v1532 = vadd.f32 %v1227, %v1531
    %v1533 = vpop.f32.mrf.mxu0
    %1534 = vmatprep.mubr.f32.mxu0 0.0
    %1535 = vmatmul.mubr.f32.gmra.mxu0 %v1238
    %v1536 = vpop.f32.mrf.mxu0
    %v1537 = vadd.f32 %v1232, %v1536
    %v1538 = vpop.f32.mrf.mxu0
    %1539 = vdwg.mxu0
    %v1540 = vxor.u32 %v1307, 2147483648
    %v1541 = vxor.u32 %v1312, 2147483648
    %v1542 = vxor.u32 %v1382, 2147483648
    %v1543 = vxor.u32 %v1387, 2147483648
    %v1544 = vxor.u32 %v1457, 2147483648
    %v1545 = vxor.u32 %v1462, 2147483648
    %v1546 = vxor.u32 %v1532, 2147483648
    %v1547 = vxor.u32 %v1537, 2147483648
    %v1548 = vmul.f32 %v1540, 1.442695
    %v1549 = vpow.pop %v1548
    %v1550 = vmul.f32 %v1541, 1.442695
    %v1551 = vpow.pop %v1550
    %v1552 = vmul.f32 %v1542, 1.442695
    %v1553 = vpow.pop %v1552
    %v1554 = vmul.f32 %v1543, 1.442695
    %v1555 = vpow.pop %v1554
    %v1556 = vmul.f32 %v1544, 1.442695
    %v1557 = vpow.pop %v1556
    %v1558 = vmul.f32 %v1545, 1.442695
    %v1559 = vpow.pop %v1558
    %v1560 = vmul.f32 %v1546, 1.442695
    %v1561 = vpow.pop %v1560
    %v1562 = vmul.f32 %v1547, 1.442695
    %v1563 = vpow.pop %v1562
    %v1564 = vadd.f32 %v1549, 1.0
    %v1565 = vadd.f32 %v1551, 1.0
    %v1566 = vadd.f32 %v1553, 1.0
    %v1567 = vadd.f32 %v1555, 1.0
    %v1568 = vadd.f32 %v1557, 1.0
    %v1569 = vadd.f32 %v1559, 1.0
    %v1570 = vadd.f32 %v1561, 1.0
    %v1571 = vadd.f32 %v1563, 1.0
    %v1572 = vrcp.pop %v1564
    %v1573 = vmul.f32 1.0, %v1572
    %v1574 = vrcp.pop %v1565
    %v1575 = vmul.f32 1.0, %v1574
    %v1576 = vrcp.pop %v1566
    %v1577 = vmul.f32 1.0, %v1576
    %v1578 = vrcp.pop %v1567
    %v1579 = vmul.f32 1.0, %v1578
    %v1580 = vrcp.pop %v1568
    %v1581 = vmul.f32 1.0, %v1580
    %v1582 = vrcp.pop %v1569
    %v1583 = vmul.f32 1.0, %v1582
    %v1584 = vrcp.pop %v1570
    %v1585 = vmul.f32 1.0, %v1584
    %v1586 = vrcp.pop %v1571
    %v1587 = vmul.f32 1.0, %v1586
    %v1589 = vsel %vm244, %v1207, 0
    %v1592 = vsel %vm244, %v1209, 0
    %v1595 = vsel %vm244, %v1211, 0
    %v1598 = vsel %vm244, %v1213, 0
    %v1601 = vsel %vm244, %v1215, 0
    %v1604 = vsel %vm244, %v1217, 0
    %v1607 = vsel %vm244, %v1219, 0
    %v1610 = vsel %vm244, %v1221, 0
    %1612 = vmatprep.subr.mxu0 0.0
    %1613 = vmatpush1.msra.mxu0 0.0
    %1614 = vmatprep.subr.mxu0 0.0
    %1615 = vmatpush1.msra.mxu0 0.0
    %1616 = vmatprep.subr.mxu0 0.0
    %1617 = vmatpush1.msra.mxu0 0.0
    %1618 = vmatprep.subr.mxu0 0.0
    %1619 = vmatpush1.msra.mxu0 0.0
    %1620 = vmatprep.subr.mxu0 0.0
    %1621 = vmatpush1.msra.mxu0 0.0
    %1622 = vmatprep.subr.mxu0 0.0
    %1623 = vmatpush1.msra.mxu0 0.0
    %1624 = vmatprep.subr.mxu0 0.0
    %1625 = vmatpush1.msra.mxu0 0.0
    %1626 = vmatprep.subr.mxu0 0.0
    %1627 = vmatpush1.msra.mxu0 0.0
    %1628 = vmatprep.subr.mxu0 0.0
    %1629 = vmatpush1.msra.mxu0 0.0
    %1630 = vmatprep.subr.mxu0 0.0
    %1631 = vmatpush1.msra.mxu0 0.0
    %1632 = vmatprep.subr.mxu0 0.0
    %1633 = vmatpush1.msra.mxu0 0.0
    %1634 = vmatprep.subr.mxu0 0.0
    %1635 = vmatpush1.msra.mxu0 0.0
    %1636 = vmatprep.subr.mxu0 0.0
    %1637 = vmatpush1.msra.mxu0 0.0
    %1638 = vmatprep.subr.mxu0 0.0
    %1639 = vmatpush1.msra.mxu0 0.0
    %1640 = vmatprep.subr.mxu0 %v124
    %1641 = vmatpush1.msra.mxu0 %v123
    %1642 = vmatprep.subr.mxu0 %v122
    %1643 = vmatpush1.msra.mxu0 %v121
    %1644 = vmatprep.subr.mxu0 0.0
    %1645 = vmatpush2.msra.mxu0 0.0
    %1646 = vmatprep.subr.mxu0 0.0
    %1647 = vmatpush2.msra.mxu0 0.0
    %1648 = vmatprep.subr.mxu0 0.0
    %1649 = vmatpush2.msra.mxu0 0.0
    %1650 = vmatprep.subr.mxu0 0.0
    %1651 = vmatpush2.msra.mxu0 0.0
    %1652 = vmatprep.subr.mxu0 0.0
    %1653 = vmatpush2.msra.mxu0 0.0
    %1654 = vmatprep.subr.mxu0 0.0
    %1655 = vmatpush2.msra.mxu0 0.0
    %1656 = vmatprep.subr.mxu0 0.0
    %1657 = vmatpush2.msra.mxu0 0.0
    %1658 = vmatprep.subr.mxu0 0.0
    %1659 = vmatpush2.msra.mxu0 0.0
    %1660 = vmatprep.subr.mxu0 0.0
    %1661 = vmatpush2.msra.mxu0 0.0
    %1662 = vmatprep.subr.mxu0 0.0
    %1663 = vmatpush2.msra.mxu0 0.0
    %1664 = vmatprep.subr.mxu0 0.0
    %1665 = vmatpush2.msra.mxu0 0.0
    %1666 = vmatprep.subr.mxu0 0.0
    %1667 = vmatpush2.msra.mxu0 0.0
    %1668 = vmatprep.subr.mxu0 0.0
    %1669 = vmatpush2.msra.mxu0 0.0
    %1670 = vmatprep.subr.mxu0 0.0
    %1671 = vmatpush2.msra.mxu0 0.0
    %1672 = vmatprep.subr.mxu0 0.0
    %1673 = vmatpush2.msra.mxu0 0.0
    %1674 = vmatprep.subr.mxu0 0.0
    %1675 = vmatpush2.msra.mxu0 0.0
    %1676 = vmatprep.mubr.f32.mxu0 0.0
    %1677 = vmatmul.mubr.f32.gmra.mxu0 %v1589
    %v1678 = vpop.f32.mrf.mxu0
    %v1679 = vadd.f32 0.0, %v1678
    %v1680 = vpop.f32.mrf.mxu0
    %v1681 = vadd.f32 0.0, %v1680
    %1682 = vmatprep.mubr.f32.mxu0 0.0
    %1683 = vmatmul.mubr.f32.gmra.mxu0 %v1592
    %v1684 = vpop.f32.mrf.mxu0
    %v1685 = vadd.f32 0.0, %v1684
    %v1686 = vpop.f32.mrf.mxu0
    %v1687 = vadd.f32 0.0, %v1686
    %1688 = vmatprep.mubr.f32.mxu0 0.0
    %1689 = vmatmul.mubr.f32.gmra.mxu0 %v1595
    %v1690 = vpop.f32.mrf.mxu0
    %v1691 = vadd.f32 0.0, %v1690
    %v1692 = vpop.f32.mrf.mxu0
    %v1693 = vadd.f32 0.0, %v1692
    %1694 = vmatprep.mubr.f32.mxu0 0.0
    %1695 = vmatmul.mubr.f32.gmra.mxu0 %v1598
    %v1696 = vpop.f32.mrf.mxu0
    %v1697 = vadd.f32 0.0, %v1696
    %v1698 = vpop.f32.mrf.mxu0
    %v1699 = vadd.f32 0.0, %v1698
    %1700 = vmatprep.mubr.f32.mxu0 0.0
    %1701 = vmatmul.mubr.f32.gmra.mxu0 %v1601
    %v1702 = vpop.f32.mrf.mxu0
    %v1703 = vadd.f32 0.0, %v1702
    %v1704 = vpop.f32.mrf.mxu0
    %v1705 = vadd.f32 0.0, %v1704
    %1706 = vmatprep.mubr.f32.mxu0 0.0
    %1707 = vmatmul.mubr.f32.gmra.mxu0 %v1604
    %v1708 = vpop.f32.mrf.mxu0
    %v1709 = vadd.f32 0.0, %v1708
    %v1710 = vpop.f32.mrf.mxu0
    %v1711 = vadd.f32 0.0, %v1710
    %1712 = vmatprep.mubr.f32.mxu0 0.0
    %1713 = vmatmul.mubr.f32.gmra.mxu0 %v1607
    %v1714 = vpop.f32.mrf.mxu0
    %v1715 = vadd.f32 0.0, %v1714
    %v1716 = vpop.f32.mrf.mxu0
    %v1717 = vadd.f32 0.0, %v1716
    %1718 = vmatprep.mubr.f32.mxu0 0.0
    %1719 = vmatmul.mubr.f32.gmra.mxu0 %v1610
    %v1720 = vpop.f32.mrf.mxu0
    %v1721 = vadd.f32 0.0, %v1720
    %v1722 = vpop.f32.mrf.mxu0
    %v1723 = vadd.f32 0.0, %v1722
    %1724 = vdwg.mxu0
    %v1726 = vsel %vm244, %v1573, 0
    %v1729 = vsel %vm244, %v1575, 0
    %v1732 = vsel %vm244, %v1577, 0
    %v1735 = vsel %vm244, %v1579, 0
    %v1738 = vsel %vm244, %v1581, 0
    %v1741 = vsel %vm244, %v1583, 0
    %v1744 = vsel %vm244, %v1585, 0
    %v1747 = vsel %vm244, %v1587, 0
    %1749 = vmatprep.subr.mxu0 0.0
    %1750 = vmatpush1.msra.mxu0 0.0
    %1751 = vmatprep.subr.mxu0 0.0
    %1752 = vmatpush1.msra.mxu0 0.0
    %1753 = vmatprep.subr.mxu0 0.0
    %1754 = vmatpush1.msra.mxu0 0.0
    %1755 = vmatprep.subr.mxu0 0.0
    %1756 = vmatpush1.msra.mxu0 0.0
    %1757 = vmatprep.subr.mxu0 0.0
    %1758 = vmatpush1.msra.mxu0 0.0
    %1759 = vmatprep.subr.mxu0 0.0
    %1760 = vmatpush1.msra.mxu0 0.0
    %1761 = vmatprep.subr.mxu0 0.0
    %1762 = vmatpush1.msra.mxu0 0.0
    %1763 = vmatprep.subr.mxu0 0.0
    %1764 = vmatpush1.msra.mxu0 0.0
    %1765 = vmatprep.subr.mxu0 0.0
    %1766 = vmatpush1.msra.mxu0 0.0
    %1767 = vmatprep.subr.mxu0 0.0
    %1768 = vmatpush1.msra.mxu0 0.0
    %1769 = vmatprep.subr.mxu0 0.0
    %1770 = vmatpush1.msra.mxu0 0.0
    %1771 = vmatprep.subr.mxu0 0.0
    %1772 = vmatpush1.msra.mxu0 0.0
    %1773 = vmatprep.subr.mxu0 0.0
    %1774 = vmatpush1.msra.mxu0 0.0
    %1775 = vmatprep.subr.mxu0 0.0
    %1776 = vmatpush1.msra.mxu0 0.0
    %1777 = vmatprep.subr.mxu0 %v130
    %1778 = vmatpush1.msra.mxu0 %v129
    %1779 = vmatprep.subr.mxu0 %v128
    %1780 = vmatpush1.msra.mxu0 %v127
    %1781 = vmatprep.subr.mxu0 0.0
    %1782 = vmatpush2.msra.mxu0 0.0
    %1783 = vmatprep.subr.mxu0 0.0
    %1784 = vmatpush2.msra.mxu0 0.0
    %1785 = vmatprep.subr.mxu0 0.0
    %1786 = vmatpush2.msra.mxu0 0.0
    %1787 = vmatprep.subr.mxu0 0.0
    %1788 = vmatpush2.msra.mxu0 0.0
    %1789 = vmatprep.subr.mxu0 0.0
    %1790 = vmatpush2.msra.mxu0 0.0
    %1791 = vmatprep.subr.mxu0 0.0
    %1792 = vmatpush2.msra.mxu0 0.0
    %1793 = vmatprep.subr.mxu0 0.0
    %1794 = vmatpush2.msra.mxu0 0.0
    %1795 = vmatprep.subr.mxu0 0.0
    %1796 = vmatpush2.msra.mxu0 0.0
    %1797 = vmatprep.subr.mxu0 0.0
    %1798 = vmatpush2.msra.mxu0 0.0
    %1799 = vmatprep.subr.mxu0 0.0
    %1800 = vmatpush2.msra.mxu0 0.0
    %1801 = vmatprep.subr.mxu0 0.0
    %1802 = vmatpush2.msra.mxu0 0.0
    %1803 = vmatprep.subr.mxu0 0.0
    %1804 = vmatpush2.msra.mxu0 0.0
    %1805 = vmatprep.subr.mxu0 0.0
    %1806 = vmatpush2.msra.mxu0 0.0
    %1807 = vmatprep.subr.mxu0 0.0
    %1808 = vmatpush2.msra.mxu0 0.0
    %1809 = vmatprep.subr.mxu0 0.0
    %1810 = vmatpush2.msra.mxu0 0.0
    %1811 = vmatprep.subr.mxu0 0.0
    %1812 = vmatpush2.msra.mxu0 0.0
    %1813 = vmatprep.mubr.f32.mxu0 0.0
    %1814 = vmatmul.mubr.f32.gmra.mxu0 %v1726
    %v1815 = vpop.f32.mrf.mxu0
    %v1816 = vadd.f32 0.0, %v1815
    %v1817 = vpop.f32.mrf.mxu0
    %v1818 = vadd.f32 0.0, %v1817
    %1819 = vmatprep.mubr.f32.mxu0 0.0
    %1820 = vmatmul.mubr.f32.gmra.mxu0 %v1729
    %v1821 = vpop.f32.mrf.mxu0
    %v1822 = vadd.f32 0.0, %v1821
    %v1823 = vpop.f32.mrf.mxu0
    %v1824 = vadd.f32 0.0, %v1823
    %1825 = vmatprep.mubr.f32.mxu0 0.0
    %1826 = vmatmul.mubr.f32.gmra.mxu0 %v1732
    %v1827 = vpop.f32.mrf.mxu0
    %v1828 = vadd.f32 0.0, %v1827
    %v1829 = vpop.f32.mrf.mxu0
    %v1830 = vadd.f32 0.0, %v1829
    %1831 = vmatprep.mubr.f32.mxu0 0.0
    %1832 = vmatmul.mubr.f32.gmra.mxu0 %v1735
    %v1833 = vpop.f32.mrf.mxu0
    %v1834 = vadd.f32 0.0, %v1833
    %v1835 = vpop.f32.mrf.mxu0
    %v1836 = vadd.f32 0.0, %v1835
    %1837 = vmatprep.mubr.f32.mxu0 0.0
    %1838 = vmatmul.mubr.f32.gmra.mxu0 %v1738
    %v1839 = vpop.f32.mrf.mxu0
    %v1840 = vadd.f32 0.0, %v1839
    %v1841 = vpop.f32.mrf.mxu0
    %v1842 = vadd.f32 0.0, %v1841
    %1843 = vmatprep.mubr.f32.mxu0 0.0
    %1844 = vmatmul.mubr.f32.gmra.mxu0 %v1741
    %v1845 = vpop.f32.mrf.mxu0
    %v1846 = vadd.f32 0.0, %v1845
    %v1847 = vpop.f32.mrf.mxu0
    %v1848 = vadd.f32 0.0, %v1847
    %1849 = vmatprep.mubr.f32.mxu0 0.0
    %1850 = vmatmul.mubr.f32.gmra.mxu0 %v1744
    %v1851 = vpop.f32.mrf.mxu0
    %v1852 = vadd.f32 0.0, %v1851
    %v1853 = vpop.f32.mrf.mxu0
    %v1854 = vadd.f32 0.0, %v1853
    %1855 = vmatprep.mubr.f32.mxu0 0.0
    %1856 = vmatmul.mubr.f32.gmra.mxu0 %v1747
    %v1857 = vpop.f32.mrf.mxu0
    %v1858 = vadd.f32 0.0, %v1857
    %v1859 = vpop.f32.mrf.mxu0
    %v1860 = vadd.f32 0.0, %v1859
    %1861 = vdwg.mxu0
    %v1862 = vmul.f32 %v1679, %v1816
    %v1863 = vmul.f32 %v1681, %v1818
    %v1864 = vmul.f32 %v1685, %v1822
    %v1865 = vmul.f32 %v1687, %v1824
    %v1866 = vmul.f32 %v1691, %v1828
    %v1867 = vmul.f32 %v1693, %v1830
    %v1868 = vmul.f32 %v1697, %v1834
    %v1869 = vmul.f32 %v1699, %v1836
    %v1870 = vmul.f32 %v1703, %v1840
    %v1871 = vmul.f32 %v1705, %v1842
    %v1872 = vmul.f32 %v1709, %v1846
    %v1873 = vmul.f32 %v1711, %v1848
    %v1874 = vmul.f32 %v1715, %v1852
    %v1875 = vmul.f32 %v1717, %v1854
    %v1876 = vmul.f32 %v1721, %v1858
    %v1877 = vmul.f32 %v1723, %v1860
    %v1878 = vmul.f32 %v39, %v1862
    %v1879 = vmul.f32 %v40, %v1863
    %v1880 = vmul.f32 %v41, %v1864
    %v1881 = vmul.f32 %v42, %v1865
    %v1882 = vmul.f32 %v43, %v1866
    %v1883 = vmul.f32 %v44, %v1867
    %v1884 = vmul.f32 %v45, %v1868
    %v1885 = vmul.f32 %v46, %v1869
    %v1886 = vmul.f32 %v47, %v1870
    %v1887 = vmul.f32 %v48, %v1871
    %v1888 = vmul.f32 %v49, %v1872
    %v1889 = vmul.f32 %v50, %v1873
    %v1890 = vmul.f32 %v51, %v1874
    %v1891 = vmul.f32 %v52, %v1875
    %v1892 = vmul.f32 %v53, %v1876
    %v1893 = vmul.f32 %v54, %v1877
    %1894 = vst [vmem:[#allocation2] sm:$0xff] %v1878
    %1895 = vst [vmem:[#allocation2 + $0x8] sm:$0xff] %v1879
    %1896 = vst [vmem:[#allocation2 + $0x10] sm:$0xff] %v1880
    %1897 = vst [vmem:[#allocation2 + $0x18] sm:$0xff] %v1881
    %1898 = vst [vmem:[#allocation2 + $0x20] sm:$0xff] %v1882
    %1899 = vst [vmem:[#allocation2 + $0x28] sm:$0xff] %v1883
    %1900 = vst [vmem:[#allocation2 + $0x30] sm:$0xff] %v1884
    %1901 = vst [vmem:[#allocation2 + $0x38] sm:$0xff] %v1885
    %1902 = vst [vmem:[#allocation2 + $0x40] sm:$0xff] %v1886
    %1903 = vst [vmem:[#allocation2 + $0x48] sm:$0xff] %v1887
    %1904 = vst [vmem:[#allocation2 + $0x50] sm:$0xff] %v1888
    %1905 = vst [vmem:[#allocation2 + $0x58] sm:$0xff] %v1889
    %1906 = vst [vmem:[#allocation2 + $0x60] sm:$0xff] %v1890
    %1907 = vst [vmem:[#allocation2 + $0x68] sm:$0xff] %v1891
    %1908 = vst [vmem:[#allocation2 + $0x70] sm:$0xff] %v1892
    %1909 = vst [vmem:[#allocation2 + $0x78] sm:$0xff] %v1893
    // Predicated region
    $region46: #{tpu_custom_call.1} parent=1 // pred_check
      _
    $region47: #{tpu_custom_call.1} parent=1 // pred_check_branch
      %1911 = sbr.rel (0) target = $region49
    $region48: #{tpu_custom_call.1} parent=1 // pred_region
      %s1913 = ssub.s32 2048, 2048
      %1914 = vsyncadd [#allocation3], %s1913
      %s1915 = sshll.u32 [#allocation2], 4
      %s1916 = int_to_ptr.vmem [resolvable:$true] %s1915
      %1921 = dma.vmem_to_hbm [thread:$0]  %s1916, 2048, %s11, [#allocation3], 256, 256, 16
    $region49: #{tpu_custom_call.1} parent=1 // pred_fallthru
      _
    // Predicated region
    $region50: #{tpu_custom_call.1} parent=1 // pred_check
      _
    $region51: #{tpu_custom_call.1} parent=1 // pred_check_branch
      %1923 = sbr.rel (0) target = $region53
    $region52: #{tpu_custom_call.1} parent=1 // pred_region
      %1924 = dma.done [#allocation3], 2048
    $region53: #{tpu_custom_call.1} parent=1 // pred_fallthru
      _
    %1925 = vsyncpa [#allocation3], 1

// kernel: tpu_custom_call.1
$region0: #{tpu_custom_call.1}
  #allocation0 [shape = 'u32[]', space=smem, size = 0x4, offset = 0x4, fixed_abs, tag = 'smem constant byte address 0x4 - core index']
  #allocation1 [shape = 'u32[144,128]{1,0:T(1,128)}', space=vmem, size = 0x12000, scoped, tag = 'internal scratch']
  %s0 = inlined_call_operand.vmem [shape: f32[4,16,256], index: 0, kind: input, shape index: {}]
  %s1 = inlined_call_operand.vmem [shape: bf16[256,32], index: 1, kind: input, shape index: {}]
  %s2 = inlined_call_operand.vmem [shape: bf16[16,256], index: 2, kind: input, shape index: {}]
  %s3 = inlined_call_operand.vmem [shape: bf16[16,256], index: 3, kind: input, shape index: {}]
  %s4 = inlined_call_operand.vmem [shape: f32[8,16], index: 4, kind: input, shape index: {}]
  %s5 = inlined_call_operand.vmem [shape: f32[8,16], index: 5, kind: input, shape index: {}]
  %s6 = inlined_call_operand.vmem [shape: f32[8,1], index: 6, kind: input, shape index: {}]
  %s7 = inlined_call_operand.vmem [shape: f32[16,8], index: 7, kind: input, shape index: {}]
  %s8 = inlined_call_operand.vmem [shape: f32[16,1], index: 8, kind: input, shape index: {}]
  %s9 = inlined_call_operand.vmem [shape: f32[16,8], index: 9, kind: input, shape index: {}]
  %s10 = inlined_call_operand.vmem [shape: f32[16,1], index: 10, kind: input, shape index: {}]
  %s11 = inlined_call_operand.hbm [shape: f32[4,16,256], index: 11, kind: output, shape index: {}]
  %s12 = sld [smem:[#allocation0]]
  $region54: #{tpu_custom_call.1} parent=0
    _
  %s14 = ssub.s32 1, %s12
  %s15 = scalar_select 0, %s14, %s12
  $region1: #{tpu_custom_call.1} parent=0
    #allocation2 [shape = 'u8[65536]{0}', space=vmem, size = 0x10000, scoped, tag = 'output window, operand 0, single buffered']
    #allocation3 [shape = 's32[1]{0}', space=sflag, size = 0x4, scoped, tag = 'scoped memory for tpu_custom_call.1']
    %16 = vsyncpa [#allocation3], 0
    // Predicated region
    $region2: #{tpu_custom_call.1} parent=1 // pred_check
      _
    $region3: #{tpu_custom_call.1} parent=1 // pred_check_branch
      %18 = sbr.rel (0) target = $region5
    $region4: #{tpu_custom_call.1} parent=1 // pred_region
      _
    $region5: #{tpu_custom_call.1} parent=1 // pred_fallthru
      _
    // Predicated region
    $region6: #{tpu_custom_call.1} parent=1 // pred_check
      _
    $region7: #{tpu_custom_call.1} parent=1 // pred_check_branch
      %20 = sbr.rel (0) target = $region9
    $region8: #{tpu_custom_call.1} parent=1 // pred_region
      _
    $region9: #{tpu_custom_call.1} parent=1 // pred_fallthru
      _
    // Predicated region
    $region10: #{tpu_custom_call.1} parent=1 // pred_check
      _
    $region11: #{tpu_custom_call.1} parent=1 // pred_check_branch
      %22 = sbr.rel (0) target = $region13
    $region12: #{tpu_custom_call.1} parent=1 // pred_region
      _
    $region13: #{tpu_custom_call.1} parent=1 // pred_fallthru
      _
    // Predicated region
    $region14: #{tpu_custom_call.1} parent=1 // pred_check
      _
    $region15: #{tpu_custom_call.1} parent=1 // pred_check_branch
      %24 = sbr.rel (0) target = $region17
    $region16: #{tpu_custom_call.1} parent=1 // pred_region
      _
    $region17: #{tpu_custom_call.1} parent=1 // pred_fallthru
      _
    // Predicated region
    $region18: #{tpu_custom_call.1} parent=1 // pred_check
      _
    $region19: #{tpu_custom_call.1} parent=1 // pred_check_branch
      %26 = sbr.rel (0) target = $region21
    $region20: #{tpu_custom_call.1} parent=1 // pred_region
      _
    $region21: #{tpu_custom_call.1} parent=1 // pred_fallthru
      _
    // Predicated region
    $region22: #{tpu_custom_call.1} parent=1 // pred_check
      _
    $region23: #{tpu_custom_call.1} parent=1 // pred_check_branch
      %28 = sbr.rel (0) target = $region25
    $region24: #{tpu_custom_call.1} parent=1 // pred_region
      _
    $region25: #{tpu_custom_call.1} parent=1 // pred_fallthru
      _
    // Predicated region
    $region26: #{tpu_custom_call.1} parent=1 // pred_check
      _
    $region27: #{tpu_custom_call.1} parent=1 // pred_check_branch
      %30 = sbr.rel (0) target = $region29
    $region28: #{tpu_custom_call.1} parent=1 // pred_region
      _
    $region29: #{tpu_custom_call.1} parent=1 // pred_fallthru
      _
    // Predicated region
    $region30: #{tpu_custom_call.1} parent=1 // pred_check
      _
    $region31: #{tpu_custom_call.1} parent=1 // pred_check_branch
      %32 = sbr.rel (0) target = $region33
    $region32: #{tpu_custom_call.1} parent=1 // pred_region
      _
    $region33: #{tpu_custom_call.1} parent=1 // pred_fallthru
      _
    // Predicated region
    $region34: #{tpu_custom_call.1} parent=1 // pred_check
      _
    $region35: #{tpu_custom_call.1} parent=1 // pred_check_branch
      %34 = sbr.rel (0) target = $region37
    $region36: #{tpu_custom_call.1} parent=1 // pred_region
      _
    $region37: #{tpu_custom_call.1} parent=1 // pred_fallthru
      _
    // Predicated region
    $region38: #{tpu_custom_call.1} parent=1 // pred_check
      _
    $region39: #{tpu_custom_call.1} parent=1 // pred_check_branch
      %36 = sbr.rel (0) target = $region41
    $region40: #{tpu_custom_call.1} parent=1 // pred_region
      _
    $region41: #{tpu_custom_call.1} parent=1 // pred_fallthru
      _
    // Predicated region
    $region42: #{tpu_custom_call.1} parent=1 // pred_check
      _
    $region43: #{tpu_custom_call.1} parent=1 // pred_check_branch
      %38 = sbr.rel (0) target = $region45
    $region44: #{tpu_custom_call.1} parent=1 // pred_region
      _
    $region45: #{tpu_custom_call.1} parent=1 // pred_fallthru
      _
    %v39 = vld [vmem:[%s0] sm:$0xff]
    %v40 = vld [vmem:[%s0 + $0x8] sm:$0xff]
    %v41 = vld [vmem:[%s0 + $0x10] sm:$0xff]
    %v42 = vld [vmem:[%s0 + $0x18] sm:$0xff]
    %v43 = vld [vmem:[%s0 + $0x20] sm:$0xff]
    %v44 = vld [vmem:[%s0 + $0x28] sm:$0xff]
    %v45 = vld [vmem:[%s0 + $0x30] sm:$0xff]
    %v46 = vld [vmem:[%s0 + $0x38] sm:$0xff]
    %v47 = vld [vmem:[%s0 + $0x40] sm:$0xff]
    %v48 = vld [vmem:[%s0 + $0x48] sm:$0xff]
    %v49 = vld [vmem:[%s0 + $0x50] sm:$0xff]
    %v50 = vld [vmem:[%s0 + $0x58] sm:$0xff]
    %v51 = vld [vmem:[%s0 + $0x60] sm:$0xff]
    %v52 = vld [vmem:[%s0 + $0x68] sm:$0xff]
    %v53 = vld [vmem:[%s0 + $0x70] sm:$0xff]
    %v54 = vld [vmem:[%s0 + $0x78] sm:$0xff]
    %v55 = vld [vmem:[%s1] sm:$0xf]
    %v56 = vld [vmem:[%s1 + $0x4] sm:$0xf]
    %v57 = vld [vmem:[%s1 + $0x8] sm:$0xf]
    %v58 = vld [vmem:[%s1 + $0xc] sm:$0xf]
    %v59 = vld [vmem:[%s1 + $0x10] sm:$0xf]
    %v60 = vld [vmem:[%s1 + $0x14] sm:$0xf]
    %v61 = vld [vmem:[%s1 + $0x18] sm:$0xf]
    %v62 = vld [vmem:[%s1 + $0x1c] sm:$0xf]
    %v63 = vld [vmem:[%s1 + $0x20] sm:$0xf]
    %v64 = vld [vmem:[%s1 + $0x24] sm:$0xf]
    %v65 = vld [vmem:[%s1 + $0x28] sm:$0xf]
    %v66 = vld [vmem:[%s1 + $0x2c] sm:$0xf]
    %v67 = vld [vmem:[%s1 + $0x30] sm:$0xf]
    %v68 = vld [vmem:[%s1 + $0x34] sm:$0xf]
    %v69 = vld [vmem:[%s1 + $0x38] sm:$0xf]
    %v70 = vld [vmem:[%s1 + $0x3c] sm:$0xf]
    %v71 = vld [vmem:[%s1 + $0x40] sm:$0xf]
    %v72 = vld [vmem:[%s1 + $0x44] sm:$0xf]
    %v73 = vld [vmem:[%s1 + $0x48] sm:$0xf]
    %v74 = vld [vmem:[%s1 + $0x4c] sm:$0xf]
    %v75 = vld [vmem:[%s1 + $0x50] sm:$0xf]
    %v76 = vld [vmem:[%s1 + $0x54] sm:$0xf]
    %v77 = vld [vmem:[%s1 + $0x58] sm:$0xf]
    %v78 = vld [vmem:[%s1 + $0x5c] sm:$0xf]
    %v79 = vld [vmem:[%s1 + $0x60] sm:$0xf]
    %v80 = vld [vmem:[%s1 + $0x64] sm:$0xf]
    %v81 = vld [vmem:[%s1 + $0x68] sm:$0xf]
    %v82 = vld [vmem:[%s1 + $0x6c] sm:$0xf]
    %v83 = vld [vmem:[%s1 + $0x70] sm:$0xf]
    %v84 = vld [vmem:[%s1 + $0x74] sm:$0xf]
    %v85 = vld [vmem:[%s1 + $0x78] sm:$0xf]
    %v86 = vld [vmem:[%s1 + $0x7c] sm:$0xf]
    %v87 = vunpack.c.l.bf16 %v55
    %v88 = vunpack.c.l.bf16 %v56
    %v89 = vunpack.c.l.bf16 %v57
    %v90 = vunpack.c.l.bf16 %v58
    %v91 = vunpack.c.l.bf16 %v59
    %v92 = vunpack.c.l.bf16 %v60
    %v93 = vunpack.c.l.bf16 %v61
    %v94 = vunpack.c.l.bf16 %v62
    %v95 = vunpack.c.l.bf16 %v63
    %v96 = vunpack.c.l.bf16 %v64
    %v97 = vunpack.c.l.bf16 %v65
    %v98 = vunpack.c.l.bf16 %v66
    %v99 = vunpack.c.l.bf16 %v67
    %v100 = vunpack.c.l.bf16 %v68
    %v101 = vunpack.c.l.bf16 %v69
    %v102 = vunpack.c.l.bf16 %v70
    %v103 = vunpack.c.l.bf16 %v71
    %v104 = vunpack.c.l.bf16 %v72
    %v105 = vunpack.c.l.bf16 %v73
    %v106 = vunpack.c.l.bf16 %v74
    %v107 = vunpack.c.l.bf16 %v75
    %v108 = vunpack.c.l.bf16 %v76
    %v109 = vunpack.c.l.bf16 %v77
    %v110 = vunpack.c.l.bf16 %v78
    %v111 = vunpack.c.l.bf16 %v79
    %v112 = vunpack.c.l.bf16 %v80
    %v113 = vunpack.c.l.bf16 %v81
    %v114 = vunpack.c.l.bf16 %v82
    %v115 = vunpack.c.l.bf16 %v83
    %v116 = vunpack.c.l.bf16 %v84
    %v117 = vunpack.c.l.bf16 %v85
    %v118 = vunpack.c.l.bf16 %v86
    %v119 = vld [vmem:[%s2] sm:$0xff]
    %v120 = vld [vmem:[%s2 + $0x8] sm:$0xff]
    %v121 = vunpack.c.l.bf16 %v119
    %v122 = vunpack.c.h.bf16 %v119
    %v123 = vunpack.c.l.bf16 %v120
    %v124 = vunpack.c.h.bf16 %v120
    %v125 = vld [vmem:[%s3] sm:$0xff]
    %v126 = vld [vmem:[%s3 + $0x8] sm:$0xff]
    %v127 = vunpack.c.l.bf16 %v125
    %v128 = vunpack.c.h.bf16 %v125
    %v129 = vunpack.c.l.bf16 %v126
    %v130 = vunpack.c.h.bf16 %v126
    %131 = vmatprep.subr.mxu0 0.0
    %132 = vmatpush1.msra.mxu0 %v102
    %133 = vmatprep.subr.mxu0 0.0
    %134 = vmatpush1.msra.mxu0 %v101
    %135 = vmatprep.subr.mxu0 0.0
    %136 = vmatpush1.msra.mxu0 %v100
    %137 = vmatprep.subr.mxu0 0.0
    %138 = vmatpush1.msra.mxu0 %v99
    %139 = vmatprep.subr.mxu0 0.0
    %140 = vmatpush1.msra.mxu0 %v98
    %141 = vmatprep.subr.mxu0 0.0
    %142 = vmatpush1.msra.mxu0 %v97
    %143 = vmatprep.subr.mxu0 0.0
    %144 = vmatpush1.msra.mxu0 %v96
    %145 = vmatprep.subr.mxu0 0.0
    %146 = vmatpush1.msra.mxu0 %v95
    %147 = vmatprep.subr.mxu0 0.0
    %148 = vmatpush1.msra.mxu0 %v94
    %149 = vmatprep.subr.mxu0 0.0
    %150 = vmatpush1.msra.mxu0 %v93
    %151 = vmatprep.subr.mxu0 0.0
    %152 = vmatpush1.msra.mxu0 %v92
    %153 = vmatprep.subr.mxu0 0.0
    %154 = vmatpush1.msra.mxu0 %v91
    %155 = vmatprep.subr.mxu0 0.0
    %156 = vmatpush1.msra.mxu0 %v90
    %157 = vmatprep.subr.mxu0 0.0
    %158 = vmatpush1.msra.mxu0 %v89
    %159 = vmatprep.subr.mxu0 0.0
    %160 = vmatpush1.msra.mxu0 %v88
    %161 = vmatprep.subr.mxu0 0.0
    %162 = vmatpush1.msra.mxu0 %v87
    %163 = vmatprep.subr.mxu0 0.0
    %164 = vmatpush2.msra.mxu0 %v118
    %165 = vmatprep.subr.mxu0 0.0
    %166 = vmatpush2.msra.mxu0 %v117
    %167 = vmatprep.subr.mxu0 0.0
    %168 = vmatpush2.msra.mxu0 %v116
    %169 = vmatprep.subr.mxu0 0.0
    %170 = vmatpush2.msra.mxu0 %v115
    %171 = vmatprep.subr.mxu0 0.0
    %172 = vmatpush2.msra.mxu0 %v114
    %173 = vmatprep.subr.mxu0 0.0
    %174 = vmatpush2.msra.mxu0 %v113
    %175 = vmatprep.subr.mxu0 0.0
    %176 = vmatpush2.msra.mxu0 %v112
    %177 = vmatprep.subr.mxu0 0.0
    %178 = vmatpush2.msra.mxu0 %v111
    %179 = vmatprep.subr.mxu0 0.0
    %180 = vmatpush2.msra.mxu0 %v110
    %181 = vmatprep.subr.mxu0 0.0
    %182 = vmatpush2.msra.mxu0 %v109
    %183 = vmatprep.subr.mxu0 0.0
    %184 = vmatpush2.msra.mxu0 %v108
    %185 = vmatprep.subr.mxu0 0.0
    %186 = vmatpush2.msra.mxu0 %v107
    %187 = vmatprep.subr.mxu0 0.0
    %188 = vmatpush2.msra.mxu0 %v106
    %189 = vmatprep.subr.mxu0 0.0
    %190 = vmatpush2.msra.mxu0 %v105
    %191 = vmatprep.subr.mxu0 0.0
    %192 = vmatpush2.msra.mxu0 %v104
    %193 = vmatprep.subr.mxu0 0.0
    %194 = vmatpush2.msra.mxu0 %v103
    %195 = vmatprep.mubr.f32.mxu0 %v40
    %196 = vmatmul.mubr.f32.gmra.mxu0 %v39
    %v197 = vpop.f32.mrf.mxu0
    %v198 = vadd.f32 0.0, %v197
    %v199 = vpop.f32.mrf.mxu0
    %200 = vmatprep.mubr.f32.mxu0 %v42
    %201 = vmatmul.mubr.f32.gmra.mxu0 %v41
    %v202 = vpop.f32.mrf.mxu0
    %v203 = vadd.f32 0.0, %v202
    %v204 = vpop.f32.mrf.mxu0
    %205 = vmatprep.mubr.f32.mxu0 %v44
    %206 = vmatmul.mubr.f32.gmra.mxu0 %v43
    %v207 = vpop.f32.mrf.mxu0
    %v208 = vadd.f32 0.0, %v207
    %v209 = vpop.f32.mrf.mxu0
    %210 = vmatprep.mubr.f32.mxu0 %v46
    %211 = vmatmul.mubr.f32.gmra.mxu0 %v45
    %v212 = vpop.f32.mrf.mxu0
    %v213 = vadd.f32 0.0, %v212
    %v214 = vpop.f32.mrf.mxu0
    %215 = vmatprep.mubr.f32.mxu0 %v48
    %216 = vmatmul.mubr.f32.gmra.mxu0 %v47
    %v217 = vpop.f32.mrf.mxu0
    %v218 = vadd.f32 0.0, %v217
    %v219 = vpop.f32.mrf.mxu0
    %220 = vmatprep.mubr.f32.mxu0 %v50
    %221 = vmatmul.mubr.f32.gmra.mxu0 %v49
    %v222 = vpop.f32.mrf.mxu0
    %v223 = vadd.f32 0.0, %v222
    %v224 = vpop.f32.mrf.mxu0
    %225 = vmatprep.mubr.f32.mxu0 %v52
    %226 = vmatmul.mubr.f32.gmra.mxu0 %v51
    %v227 = vpop.f32.mrf.mxu0
    %v228 = vadd.f32 0.0, %v227
    %v229 = vpop.f32.mrf.mxu0
    %230 = vmatprep.mubr.f32.mxu0 %v54
    %231 = vmatmul.mubr.f32.gmra.mxu0 %v53
    %v232 = vpop.f32.mrf.mxu0
    %v233 = vadd.f32 0.0, %v232
    %v234 = vpop.f32.mrf.mxu0
    %235 = vdwg.mxu0
    %v236 = vld [vmem:[%s4] sm:$0xff]
    %v237 = vld [vmem:[%s5] sm:$0xff]
    %v238 = vld [vmem:[%s6] sm:$0xff]
    %240 = vset.pattern.permute.xlu0 0
    %241 = vperm.xlu0 %240, %v238
    %v242 = vpop.permute.xlu0 %241
    %vm244 = vcmask 130048
    %v246 = vsel %vm244, %v236, 0
    %248 = vmatprep.subr.mxu0 0.0
    %249 = vmatpush1.msra.mxu0 0.0
    %250 = vmatprep.subr.mxu0 0.0
    %251 = vmatpush1.msra.mxu0 0.0
    %252 = vmatprep.subr.mxu0 0.0
    %253 = vmatpush1.msra.mxu0 0.0
    %254 = vmatprep.subr.mxu0 0.0
    %255 = vmatpush1.msra.mxu0 0.0
    %256 = vmatprep.subr.mxu0 0.0
    %257 = vmatpush1.msra.mxu0 0.0
    %258 = vmatprep.subr.mxu0 0.0
    %259 = vmatpush1.msra.mxu0 0.0
    %260 = vmatprep.subr.mxu0 0.0
    %261 = vmatpush1.msra.mxu0 0.0
    %262 = vmatprep.subr.mxu0 0.0
    %263 = vmatpush1.msra.mxu0 0.0
    %264 = vmatprep.subr.mxu0 0.0
    %265 = vmatpush1.msra.mxu0 0.0
    %266 = vmatprep.subr.mxu0 0.0
    %267 = vmatpush1.msra.mxu0 0.0
    %268 = vmatprep.subr.mxu0 0.0
    %269 = vmatpush1.msra.mxu0 0.0
    %270 = vmatprep.subr.mxu0 0.0
    %271 = vmatpush1.msra.mxu0 0.0
    %272 = vmatprep.subr.mxu0 0.0
    %273 = vmatpush1.msra.mxu0 0.0
    %274 = vmatprep.subr.mxu0 0.0
    %275 = vmatpush1.msra.mxu0 0.0
    %276 = vmatprep.subr.mxu0 0.0
    %277 = vmatpush1.msra.mxu0 %v203
    %278 = vmatprep.subr.mxu0 0.0
    %279 = vmatpush1.msra.mxu0 %v198
    %280 = vmatprep.subr.mxu0 0.0
    %281 = vmatpush2.msra.mxu0 0.0
    %282 = vmatprep.subr.mxu0 0.0
    %283 = vmatpush2.msra.mxu0 0.0
    %284 = vmatprep.subr.mxu0 0.0
    %285 = vmatpush2.msra.mxu0 0.0
    %286 = vmatprep.subr.mxu0 0.0
    %287 = vmatpush2.msra.mxu0 0.0
    %288 = vmatprep.subr.mxu0 0.0
    %289 = vmatpush2.msra.mxu0 0.0
    %290 = vmatprep.subr.mxu0 0.0
    %291 = vmatpush2.msra.mxu0 0.0
    %292 = vmatprep.subr.mxu0 0.0
    %293 = vmatpush2.msra.mxu0 0.0
    %294 = vmatprep.subr.mxu0 0.0
    %295 = vmatpush2.msra.mxu0 0.0
    %296 = vmatprep.subr.mxu0 0.0
    %297 = vmatpush2.msra.mxu0 0.0
    %298 = vmatprep.subr.mxu0 0.0
    %299 = vmatpush2.msra.mxu0 0.0
    %300 = vmatprep.subr.mxu0 0.0
    %301 = vmatpush2.msra.mxu0 0.0
    %302 = vmatprep.subr.mxu0 0.0
    %303 = vmatpush2.msra.mxu0 0.0
    %304 = vmatprep.subr.mxu0 0.0
    %305 = vmatpush2.msra.mxu0 0.0
    %306 = vmatprep.subr.mxu0 0.0
    %307 = vmatpush2.msra.mxu0 0.0
    %308 = vmatprep.subr.mxu0 0.0
    %309 = vmatpush2.msra.mxu0 0.0
    %310 = vmatprep.subr.mxu0 0.0
    %311 = vmatpush2.msra.mxu0 0.0
    %312 = vmatprep.mubr.f32.mxu0 0.0
    %313 = vmatmul.mubr.f32.gmra.mxu0 %v246
    %v314 = vpop.f32.mrf.mxu0
    %v315 = vadd.f32 %v242, %v314
    %v316 = vpop.f32.mrf.mxu0
    %317 = vdwg.mxu0
    %318 = vmatprep.subr.mxu0 0.0
    %319 = vmatpush1.msra.mxu0 0.0
    %320 = vmatprep.subr.mxu0 0.0
    %321 = vmatpush1.msra.mxu0 0.0
    %322 = vmatprep.subr.mxu0 0.0
    %323 = vmatpush1.msra.mxu0 0.0
    %324 = vmatprep.subr.mxu0 0.0
    %325 = vmatpush1.msra.mxu0 0.0
    %326 = vmatprep.subr.mxu0 0.0
    %327 = vmatpush1.msra.mxu0 0.0
    %328 = vmatprep.subr.mxu0 0.0
    %329 = vmatpush1.msra.mxu0 0.0
    %330 = vmatprep.subr.mxu0 0.0
    %331 = vmatpush1.msra.mxu0 0.0
    %332 = vmatprep.subr.mxu0 0.0
    %333 = vmatpush1.msra.mxu0 0.0
    %334 = vmatprep.subr.mxu0 0.0
    %335 = vmatpush1.msra.mxu0 0.0
    %336 = vmatprep.subr.mxu0 0.0
    %337 = vmatpush1.msra.mxu0 0.0
    %338 = vmatprep.subr.mxu0 0.0
    %339 = vmatpush1.msra.mxu0 0.0
    %340 = vmatprep.subr.mxu0 0.0
    %341 = vmatpush1.msra.mxu0 0.0
    %342 = vmatprep.subr.mxu0 0.0
    %343 = vmatpush1.msra.mxu0 0.0
    %344 = vmatprep.subr.mxu0 0.0
    %345 = vmatpush1.msra.mxu0 0.0
    %346 = vmatprep.subr.mxu0 0.0
    %347 = vmatpush1.msra.mxu0 %v213
    %348 = vmatprep.subr.mxu0 0.0
    %349 = vmatpush1.msra.mxu0 %v208
    %350 = vmatprep.subr.mxu0 0.0
    %351 = vmatpush2.msra.mxu0 0.0
    %352 = vmatprep.subr.mxu0 0.0
    %353 = vmatpush2.msra.mxu0 0.0
    %354 = vmatprep.subr.mxu0 0.0
    %355 = vmatpush2.msra.mxu0 0.0
    %356 = vmatprep.subr.mxu0 0.0
    %357 = vmatpush2.msra.mxu0 0.0
    %358 = vmatprep.subr.mxu0 0.0
    %359 = vmatpush2.msra.mxu0 0.0
    %360 = vmatprep.subr.mxu0 0.0
    %361 = vmatpush2.msra.mxu0 0.0
    %362 = vmatprep.subr.mxu0 0.0
    %363 = vmatpush2.msra.mxu0 0.0
    %364 = vmatprep.subr.mxu0 0.0
    %365 = vmatpush2.msra.mxu0 0.0
    %366 = vmatprep.subr.mxu0 0.0
    %367 = vmatpush2.msra.mxu0 0.0
    %368 = vmatprep.subr.mxu0 0.0
    %369 = vmatpush2.msra.mxu0 0.0
    %370 = vmatprep.subr.mxu0 0.0
    %371 = vmatpush2.msra.mxu0 0.0
    %372 = vmatprep.subr.mxu0 0.0
    %373 = vmatpush2.msra.mxu0 0.0
    %374 = vmatprep.subr.mxu0 0.0
    %375 = vmatpush2.msra.mxu0 0.0
    %376 = vmatprep.subr.mxu0 0.0
    %377 = vmatpush2.msra.mxu0 0.0
    %378 = vmatprep.subr.mxu0 0.0
    %379 = vmatpush2.msra.mxu0 0.0
    %380 = vmatprep.subr.mxu0 0.0
    %381 = vmatpush2.msra.mxu0 0.0
    %382 = vmatprep.mubr.f32.mxu0 0.0
    %383 = vmatmul.mubr.f32.gmra.mxu0 %v246
    %v384 = vpop.f32.mrf.mxu0
    %v385 = vadd.f32 %v242, %v384
    %v386 = vpop.f32.mrf.mxu0
    %387 = vdwg.mxu0
    %388 = vmatprep.subr.mxu0 0.0
    %389 = vmatpush1.msra.mxu0 0.0
    %390 = vmatprep.subr.mxu0 0.0
    %391 = vmatpush1.msra.mxu0 0.0
    %392 = vmatprep.subr.mxu0 0.0
    %393 = vmatpush1.msra.mxu0 0.0
    %394 = vmatprep.subr.mxu0 0.0
    %395 = vmatpush1.msra.mxu0 0.0
    %396 = vmatprep.subr.mxu0 0.0
    %397 = vmatpush1.msra.mxu0 0.0
    %398 = vmatprep.subr.mxu0 0.0
    %399 = vmatpush1.msra.mxu0 0.0
    %400 = vmatprep.subr.mxu0 0.0
    %401 = vmatpush1.msra.mxu0 0.0
    %402 = vmatprep.subr.mxu0 0.0
    %403 = vmatpush1.msra.mxu0 0.0
    %404 = vmatprep.subr.mxu0 0.0
    %405 = vmatpush1.msra.mxu0 0.0
    %406 = vmatprep.subr.mxu0 0.0
    %407 = vmatpush1.msra.mxu0 0.0
    %408 = vmatprep.subr.mxu0 0.0
    %409 = vmatpush1.msra.mxu0 0.0
    %410 = vmatprep.subr.mxu0 0.0
    %411 = vmatpush1.msra.mxu0 0.0
    %412 = vmatprep.subr.mxu0 0.0
    %413 = vmatpush1.msra.mxu0 0.0
    %414 = vmatprep.subr.mxu0 0.0
    %415 = vmatpush1.msra.mxu0 0.0
    %416 = vmatprep.subr.mxu0 0.0
    %417 = vmatpush1.msra.mxu0 %v223
    %418 = vmatprep.subr.mxu0 0.0
    %419 = vmatpush1.msra.mxu0 %v218
    %420 = vmatprep.subr.mxu0 0.0
    %421 = vmatpush2.msra.mxu0 0.0
    %422 = vmatprep.subr.mxu0 0.0
    %423 = vmatpush2.msra.mxu0 0.0
    %424 = vmatprep.subr.mxu0 0.0
    %425 = vmatpush2.msra.mxu0 0.0
    %426 = vmatprep.subr.mxu0 0.0
    %427 = vmatpush2.msra.mxu0 0.0
    %428 = vmatprep.subr.mxu0 0.0
    %429 = vmatpush2.msra.mxu0 0.0
    %430 = vmatprep.subr.mxu0 0.0
    %431 = vmatpush2.msra.mxu0 0.0
    %432 = vmatprep.subr.mxu0 0.0
    %433 = vmatpush2.msra.mxu0 0.0
    %434 = vmatprep.subr.mxu0 0.0
    %435 = vmatpush2.msra.mxu0 0.0
    %436 = vmatprep.subr.mxu0 0.0
    %437 = vmatpush2.msra.mxu0 0.0
    %438 = vmatprep.subr.mxu0 0.0
    %439 = vmatpush2.msra.mxu0 0.0
    %440 = vmatprep.subr.mxu0 0.0
    %441 = vmatpush2.msra.mxu0 0.0
    %442 = vmatprep.subr.mxu0 0.0
    %443 = vmatpush2.msra.mxu0 0.0
    %444 = vmatprep.subr.mxu0 0.0
    %445 = vmatpush2.msra.mxu0 0.0
    %446 = vmatprep.subr.mxu0 0.0
    %447 = vmatpush2.msra.mxu0 0.0
    %448 = vmatprep.subr.mxu0 0.0
    %449 = vmatpush2.msra.mxu0 0.0
    %450 = vmatprep.subr.mxu0 0.0
    %451 = vmatpush2.msra.mxu0 0.0
    %452 = vmatprep.mubr.f32.mxu0 0.0
    %453 = vmatmul.mubr.f32.gmra.mxu0 %v246
    %v454 = vpop.f32.mrf.mxu0
    %v455 = vadd.f32 %v242, %v454
    %v456 = vpop.f32.mrf.mxu0
    %457 = vdwg.mxu0
    %458 = vmatprep.subr.mxu0 0.0
    %459 = vmatpush1.msra.mxu0 0.0
    %460 = vmatprep.subr.mxu0 0.0
    %461 = vmatpush1.msra.mxu0 0.0
    %462 = vmatprep.subr.mxu0 0.0
    %463 = vmatpush1.msra.mxu0 0.0
    %464 = vmatprep.subr.mxu0 0.0
    %465 = vmatpush1.msra.mxu0 0.0
    %466 = vmatprep.subr.mxu0 0.0
    %467 = vmatpush1.msra.mxu0 0.0
    %468 = vmatprep.subr.mxu0 0.0
    %469 = vmatpush1.msra.mxu0 0.0
    %470 = vmatprep.subr.mxu0 0.0
    %471 = vmatpush1.msra.mxu0 0.0
    %472 = vmatprep.subr.mxu0 0.0
    %473 = vmatpush1.msra.mxu0 0.0
    %474 = vmatprep.subr.mxu0 0.0
    %475 = vmatpush1.msra.mxu0 0.0
    %476 = vmatprep.subr.mxu0 0.0
    %477 = vmatpush1.msra.mxu0 0.0
    %478 = vmatprep.subr.mxu0 0.0
    %479 = vmatpush1.msra.mxu0 0.0
    %480 = vmatprep.subr.mxu0 0.0
    %481 = vmatpush1.msra.mxu0 0.0
    %482 = vmatprep.subr.mxu0 0.0
    %483 = vmatpush1.msra.mxu0 0.0
    %484 = vmatprep.subr.mxu0 0.0
    %485 = vmatpush1.msra.mxu0 0.0
    %486 = vmatprep.subr.mxu0 0.0
    %487 = vmatpush1.msra.mxu0 %v233
    %488 = vmatprep.subr.mxu0 0.0
    %489 = vmatpush1.msra.mxu0 %v228
    %490 = vmatprep.subr.mxu0 0.0
    %491 = vmatpush2.msra.mxu0 0.0
    %492 = vmatprep.subr.mxu0 0.0
    %493 = vmatpush2.msra.mxu0 0.0
    %494 = vmatprep.subr.mxu0 0.0
    %495 = vmatpush2.msra.mxu0 0.0
    %496 = vmatprep.subr.mxu0 0.0
    %497 = vmatpush2.msra.mxu0 0.0
    %498 = vmatprep.subr.mxu0 0.0
    %499 = vmatpush2.msra.mxu0 0.0
    %500 = vmatprep.subr.mxu0 0.0
    %501 = vmatpush2.msra.mxu0 0.0
    %502 = vmatprep.subr.mxu0 0.0
    %503 = vmatpush2.msra.mxu0 0.0
    %504 = vmatprep.subr.mxu0 0.0
    %505 = vmatpush2.msra.mxu0 0.0
    %506 = vmatprep.subr.mxu0 0.0
    %507 = vmatpush2.msra.mxu0 0.0
    %508 = vmatprep.subr.mxu0 0.0
    %509 = vmatpush2.msra.mxu0 0.0
    %510 = vmatprep.subr.mxu0 0.0
    %511 = vmatpush2.msra.mxu0 0.0
    %512 = vmatprep.subr.mxu0 0.0
    %513 = vmatpush2.msra.mxu0 0.0
    %514 = vmatprep.subr.mxu0 0.0
    %515 = vmatpush2.msra.mxu0 0.0
    %516 = vmatprep.subr.mxu0 0.0
    %517 = vmatpush2.msra.mxu0 0.0
    %518 = vmatprep.subr.mxu0 0.0
    %519 = vmatpush2.msra.mxu0 0.0
    %520 = vmatprep.subr.mxu0 0.0
    %521 = vmatpush2.msra.mxu0 0.0
    %522 = vmatprep.mubr.f32.mxu0 0.0
    %523 = vmatmul.mubr.f32.gmra.mxu0 %v246
    %v524 = vpop.f32.mrf.mxu0
    %v525 = vadd.f32 %v242, %v524
    %v526 = vpop.f32.mrf.mxu0
    %527 = vdwg.mxu0
    %v528 = vmax.f32 %v315, 0.0
    %v529 = vmax.f32 %v385, 0.0
    %v530 = vmax.f32 %v455, 0.0
    %v531 = vmax.f32 %v525, 0.0
    %534 = vrot.lane.b32.xlu0 %v198, 112
    %v535 = vpop.permute.xlu0 %534
    %536 = vrot.lane.b32.xlu0 %v203, 112
    %v537 = vpop.permute.xlu0 %536
    %v541 = vsel %vm244, %v237, 0
    %543 = vmatprep.subr.mxu0 0.0
    %544 = vmatpush1.msra.mxu0 0.0
    %545 = vmatprep.subr.mxu0 0.0
    %546 = vmatpush1.msra.mxu0 0.0
    %547 = vmatprep.subr.mxu0 0.0
    %548 = vmatpush1.msra.mxu0 0.0
    %549 = vmatprep.subr.mxu0 0.0
    %550 = vmatpush1.msra.mxu0 0.0
    %551 = vmatprep.subr.mxu0 0.0
    %552 = vmatpush1.msra.mxu0 0.0
    %553 = vmatprep.subr.mxu0 0.0
    %554 = vmatpush1.msra.mxu0 0.0
    %555 = vmatprep.subr.mxu0 0.0
    %556 = vmatpush1.msra.mxu0 0.0
    %557 = vmatprep.subr.mxu0 0.0
    %558 = vmatpush1.msra.mxu0 0.0
    %559 = vmatprep.subr.mxu0 0.0
    %560 = vmatpush1.msra.mxu0 0.0
    %561 = vmatprep.subr.mxu0 0.0
    %562 = vmatpush1.msra.mxu0 0.0
    %563 = vmatprep.subr.mxu0 0.0
    %564 = vmatpush1.msra.mxu0 0.0
    %565 = vmatprep.subr.mxu0 0.0
    %566 = vmatpush1.msra.mxu0 0.0
    %567 = vmatprep.subr.mxu0 0.0
    %568 = vmatpush1.msra.mxu0 0.0
    %569 = vmatprep.subr.mxu0 0.0
    %570 = vmatpush1.msra.mxu0 0.0
    %571 = vmatprep.subr.mxu0 0.0
    %572 = vmatpush1.msra.mxu0 %v537
    %573 = vmatprep.subr.mxu0 0.0
    %574 = vmatpush1.msra.mxu0 %v535
    %575 = vmatprep.subr.mxu0 0.0
    %576 = vmatpush2.msra.mxu0 0.0
    %577 = vmatprep.subr.mxu0 0.0
    %578 = vmatpush2.msra.mxu0 0.0
    %579 = vmatprep.subr.mxu0 0.0
    %580 = vmatpush2.msra.mxu0 0.0
    %581 = vmatprep.subr.mxu0 0.0
    %582 = vmatpush2.msra.mxu0 0.0
    %583 = vmatprep.subr.mxu0 0.0
    %584 = vmatpush2.msra.mxu0 0.0
    %585 = vmatprep.subr.mxu0 0.0
    %586 = vmatpush2.msra.mxu0 0.0
    %587 = vmatprep.subr.mxu0 0.0
    %588 = vmatpush2.msra.mxu0 0.0
    %589 = vmatprep.subr.mxu0 0.0
    %590 = vmatpush2.msra.mxu0 0.0
    %591 = vmatprep.subr.mxu0 0.0
    %592 = vmatpush2.msra.mxu0 0.0
    %593 = vmatprep.subr.mxu0 0.0
    %594 = vmatpush2.msra.mxu0 0.0
    %595 = vmatprep.subr.mxu0 0.0
    %596 = vmatpush2.msra.mxu0 0.0
    %597 = vmatprep.subr.mxu0 0.0
    %598 = vmatpush2.msra.mxu0 0.0
    %599 = vmatprep.subr.mxu0 0.0
    %600 = vmatpush2.msra.mxu0 0.0
    %601 = vmatprep.subr.mxu0 0.0
    %602 = vmatpush2.msra.mxu0 0.0
    %603 = vmatprep.subr.mxu0 0.0
    %604 = vmatpush2.msra.mxu0 0.0
    %605 = vmatprep.subr.mxu0 0.0
    %606 = vmatpush2.msra.mxu0 0.0
    %607 = vmatprep.mubr.f32.mxu0 0.0
    %608 = vmatmul.mubr.f32.gmra.mxu0 %v541
    %v609 = vpop.f32.mrf.mxu0
    %v610 = vadd.f32 %v242, %v609
    %v611 = vpop.f32.mrf.mxu0
    %612 = vdwg.mxu0
    %615 = vrot.lane.b32.xlu0 %v208, 112
    %v616 = vpop.permute.xlu0 %615
    %617 = vrot.lane.b32.xlu0 %v213, 112
    %v618 = vpop.permute.xlu0 %617
    %621 = vmatprep.subr.mxu0 0.0
    %622 = vmatpush1.msra.mxu0 0.0
    %623 = vmatprep.subr.mxu0 0.0
    %624 = vmatpush1.msra.mxu0 0.0
    %625 = vmatprep.subr.mxu0 0.0
    %626 = vmatpush1.msra.mxu0 0.0
    %627 = vmatprep.subr.mxu0 0.0
    %628 = vmatpush1.msra.mxu0 0.0
    %629 = vmatprep.subr.mxu0 0.0
    %630 = vmatpush1.msra.mxu0 0.0
    %631 = vmatprep.subr.mxu0 0.0
    %632 = vmatpush1.msra.mxu0 0.0
    %633 = vmatprep.subr.mxu0 0.0
    %634 = vmatpush1.msra.mxu0 0.0
    %635 = vmatprep.subr.mxu0 0.0
    %636 = vmatpush1.msra.mxu0 0.0
    %637 = vmatprep.subr.mxu0 0.0
    %638 = vmatpush1.msra.mxu0 0.0
    %639 = vmatprep.subr.mxu0 0.0
    %640 = vmatpush1.msra.mxu0 0.0
    %641 = vmatprep.subr.mxu0 0.0
    %642 = vmatpush1.msra.mxu0 0.0
    %643 = vmatprep.subr.mxu0 0.0
    %644 = vmatpush1.msra.mxu0 0.0
    %645 = vmatprep.subr.mxu0 0.0
    %646 = vmatpush1.msra.mxu0 0.0
    %647 = vmatprep.subr.mxu0 0.0
    %648 = vmatpush1.msra.mxu0 0.0
    %649 = vmatprep.subr.mxu0 0.0
    %650 = vmatpush1.msra.mxu0 %v618
    %651 = vmatprep.subr.mxu0 0.0
    %652 = vmatpush1.msra.mxu0 %v616
    %653 = vmatprep.subr.mxu0 0.0
    %654 = vmatpush2.msra.mxu0 0.0
    %655 = vmatprep.subr.mxu0 0.0
    %656 = vmatpush2.msra.mxu0 0.0
    %657 = vmatprep.subr.mxu0 0.0
    %658 = vmatpush2.msra.mxu0 0.0
    %659 = vmatprep.subr.mxu0 0.0
    %660 = vmatpush2.msra.mxu0 0.0
    %661 = vmatprep.subr.mxu0 0.0
    %662 = vmatpush2.msra.mxu0 0.0
    %663 = vmatprep.subr.mxu0 0.0
    %664 = vmatpush2.msra.mxu0 0.0
    %665 = vmatprep.subr.mxu0 0.0
    %666 = vmatpush2.msra.mxu0 0.0
    %667 = vmatprep.subr.mxu0 0.0
    %668 = vmatpush2.msra.mxu0 0.0
    %669 = vmatprep.subr.mxu0 0.0
    %670 = vmatpush2.msra.mxu0 0.0
    %671 = vmatprep.subr.mxu0 0.0
    %672 = vmatpush2.msra.mxu0 0.0
    %673 = vmatprep.subr.mxu0 0.0
    %674 = vmatpush2.msra.mxu0 0.0
    %675 = vmatprep.subr.mxu0 0.0
    %676 = vmatpush2.msra.mxu0 0.0
    %677 = vmatprep.subr.mxu0 0.0
    %678 = vmatpush2.msra.mxu0 0.0
    %679 = vmatprep.subr.mxu0 0.0
    %680 = vmatpush2.msra.mxu0 0.0
    %681 = vmatprep.subr.mxu0 0.0
    %682 = vmatpush2.msra.mxu0 0.0
    %683 = vmatprep.subr.mxu0 0.0
    %684 = vmatpush2.msra.mxu0 0.0
    %685 = vmatprep.mubr.f32.mxu0 0.0
    %686 = vmatmul.mubr.f32.gmra.mxu0 %v541
    %v687 = vpop.f32.mrf.mxu0
    %v688 = vadd.f32 %v242, %v687
    %v689 = vpop.f32.mrf.mxu0
    %690 = vdwg.mxu0
    %693 = vrot.lane.b32.xlu0 %v218, 112
    %v694 = vpop.permute.xlu0 %693
    %695 = vrot.lane.b32.xlu0 %v223, 112
    %v696 = vpop.permute.xlu0 %695
    %699 = vmatprep.subr.mxu0 0.0
    %700 = vmatpush1.msra.mxu0 0.0
    %701 = vmatprep.subr.mxu0 0.0
    %702 = vmatpush1.msra.mxu0 0.0
    %703 = vmatprep.subr.mxu0 0.0
    %704 = vmatpush1.msra.mxu0 0.0
    %705 = vmatprep.subr.mxu0 0.0
    %706 = vmatpush1.msra.mxu0 0.0
    %707 = vmatprep.subr.mxu0 0.0
    %708 = vmatpush1.msra.mxu0 0.0
    %709 = vmatprep.subr.mxu0 0.0
    %710 = vmatpush1.msra.mxu0 0.0
    %711 = vmatprep.subr.mxu0 0.0
    %712 = vmatpush1.msra.mxu0 0.0
    %713 = vmatprep.subr.mxu0 0.0
    %714 = vmatpush1.msra.mxu0 0.0
    %715 = vmatprep.subr.mxu0 0.0
    %716 = vmatpush1.msra.mxu0 0.0
    %717 = vmatprep.subr.mxu0 0.0
    %718 = vmatpush1.msra.mxu0 0.0
    %719 = vmatprep.subr.mxu0 0.0
    %720 = vmatpush1.msra.mxu0 0.0
    %721 = vmatprep.subr.mxu0 0.0
    %722 = vmatpush1.msra.mxu0 0.0
    %723 = vmatprep.subr.mxu0 0.0
    %724 = vmatpush1.msra.mxu0 0.0
    %725 = vmatprep.subr.mxu0 0.0
    %726 = vmatpush1.msra.mxu0 0.0
    %727 = vmatprep.subr.mxu0 0.0
    %728 = vmatpush1.msra.mxu0 %v696
    %729 = vmatprep.subr.mxu0 0.0
    %730 = vmatpush1.msra.mxu0 %v694
    %731 = vmatprep.subr.mxu0 0.0
    %732 = vmatpush2.msra.mxu0 0.0
    %733 = vmatprep.subr.mxu0 0.0
    %734 = vmatpush2.msra.mxu0 0.0
    %735 = vmatprep.subr.mxu0 0.0
    %736 = vmatpush2.msra.mxu0 0.0
    %737 = vmatprep.subr.mxu0 0.0
    %738 = vmatpush2.msra.mxu0 0.0
    %739 = vmatprep.subr.mxu0 0.0
    %740 = vmatpush2.msra.mxu0 0.0
    %741 = vmatprep.subr.mxu0 0.0
    %742 = vmatpush2.msra.mxu0 0.0
    %743 = vmatprep.subr.mxu0 0.0
    %744 = vmatpush2.msra.mxu0 0.0
    %745 = vmatprep.subr.mxu0 0.0
    %746 = vmatpush2.msra.mxu0 0.0
    %747 = vmatprep.subr.mxu0 0.0
    %748 = vmatpush2.msra.mxu0 0.0
    %749 = vmatprep.subr.mxu0 0.0
    %750 = vmatpush2.msra.mxu0 0.0
    %751 = vmatprep.subr.mxu0 0.0
    %752 = vmatpush2.msra.mxu0 0.0
    %753 = vmatprep.subr.mxu0 0.0
    %754 = vmatpush2.msra.mxu0 0.0
    %755 = vmatprep.subr.mxu0 0.0
    %756 = vmatpush2.msra.mxu0 0.0
    %757 = vmatprep.subr.mxu0 0.0
    %758 = vmatpush2.msra.mxu0 0.0
    %759 = vmatprep.subr.mxu0 0.0
    %760 = vmatpush2.msra.mxu0 0.0
    %761 = vmatprep.subr.mxu0 0.0
    %762 = vmatpush2.msra.mxu0 0.0
    %763 = vmatprep.mubr.f32.mxu0 0.0
    %764 = vmatmul.mubr.f32.gmra.mxu0 %v541
    %v765 = vpop.f32.mrf.mxu0
    %v766 = vadd.f32 %v242, %v765
    %v767 = vpop.f32.mrf.mxu0
    %768 = vdwg.mxu0
    %771 = vrot.lane.b32.xlu0 %v228, 112
    %v772 = vpop.permute.xlu0 %771
    %773 = vrot.lane.b32.xlu0 %v233, 112
    %v774 = vpop.permute.xlu0 %773
    %777 = vmatprep.subr.mxu0 0.0
    %778 = vmatpush1.msra.mxu0 0.0
    %779 = vmatprep.subr.mxu0 0.0
    %780 = vmatpush1.msra.mxu0 0.0
    %781 = vmatprep.subr.mxu0 0.0
    %782 = vmatpush1.msra.mxu0 0.0
    %783 = vmatprep.subr.mxu0 0.0
    %784 = vmatpush1.msra.mxu0 0.0
    %785 = vmatprep.subr.mxu0 0.0
    %786 = vmatpush1.msra.mxu0 0.0
    %787 = vmatprep.subr.mxu0 0.0
    %788 = vmatpush1.msra.mxu0 0.0
    %789 = vmatprep.subr.mxu0 0.0
    %790 = vmatpush1.msra.mxu0 0.0
    %791 = vmatprep.subr.mxu0 0.0
    %792 = vmatpush1.msra.mxu0 0.0
    %793 = vmatprep.subr.mxu0 0.0
    %794 = vmatpush1.msra.mxu0 0.0
    %795 = vmatprep.subr.mxu0 0.0
    %796 = vmatpush1.msra.mxu0 0.0
    %797 = vmatprep.subr.mxu0 0.0
    %798 = vmatpush1.msra.mxu0 0.0
    %799 = vmatprep.subr.mxu0 0.0
    %800 = vmatpush1.msra.mxu0 0.0
    %801 = vmatprep.subr.mxu0 0.0
    %802 = vmatpush1.msra.mxu0 0.0
    %803 = vmatprep.subr.mxu0 0.0
    %804 = vmatpush1.msra.mxu0 0.0
    %805 = vmatprep.subr.mxu0 0.0
    %806 = vmatpush1.msra.mxu0 %v774
    %807 = vmatprep.subr.mxu0 0.0
    %808 = vmatpush1.msra.mxu0 %v772
    %809 = vmatprep.subr.mxu0 0.0
    %810 = vmatpush2.msra.mxu0 0.0
    %811 = vmatprep.subr.mxu0 0.0
    %812 = vmatpush2.msra.mxu0 0.0
    %813 = vmatprep.subr.mxu0 0.0
    %814 = vmatpush2.msra.mxu0 0.0
    %815 = vmatprep.subr.mxu0 0.0
    %816 = vmatpush2.msra.mxu0 0.0
    %817 = vmatprep.subr.mxu0 0.0
    %818 = vmatpush2.msra.mxu0 0.0
    %819 = vmatprep.subr.mxu0 0.0
    %820 = vmatpush2.msra.mxu0 0.0
    %821 = vmatprep.subr.mxu0 0.0
    %822 = vmatpush2.msra.mxu0 0.0
    %823 = vmatprep.subr.mxu0 0.0
    %824 = vmatpush2.msra.mxu0 0.0
    %825 = vmatprep.subr.mxu0 0.0
    %826 = vmatpush2.msra.mxu0 0.0
    %827 = vmatprep.subr.mxu0 0.0
    %828 = vmatpush2.msra.mxu0 0.0
    %829 = vmatprep.subr.mxu0 0.0
    %830 = vmatpush2.msra.mxu0 0.0
    %831 = vmatprep.subr.mxu0 0.0
    %832 = vmatpush2.msra.mxu0 0.0
    %833 = vmatprep.subr.mxu0 0.0
    %834 = vmatpush2.msra.mxu0 0.0
    %835 = vmatprep.subr.mxu0 0.0
    %836 = vmatpush2.msra.mxu0 0.0
    %837 = vmatprep.subr.mxu0 0.0
    %838 = vmatpush2.msra.mxu0 0.0
    %839 = vmatprep.subr.mxu0 0.0
    %840 = vmatpush2.msra.mxu0 0.0
    %841 = vmatprep.mubr.f32.mxu0 0.0
    %842 = vmatmul.mubr.f32.gmra.mxu0 %v541
    %v843 = vpop.f32.mrf.mxu0
    %v844 = vadd.f32 %v242, %v843
    %v845 = vpop.f32.mrf.mxu0
    %846 = vdwg.mxu0
    %v847 = vmax.f32 %v610, 0.0
    %v848 = vmax.f32 %v688, 0.0
    %v849 = vmax.f32 %v766, 0.0
    %v850 = vmax.f32 %v844, 0.0
    %v851 = vld [vmem:[%s7] sm:$0xff]
    %v852 = vld [vmem:[%s7 + $0x8] sm:$0xff]
    %v853 = vld [vmem:[%s9] sm:$0xff]
    %v854 = vld [vmem:[%s9 + $0x8] sm:$0xff]
    %v855 = vld [vmem:[%s8] sm:$0xff]
    %v856 = vld [vmem:[%s8 + $0x8] sm:$0xff]
    %858 = vset.pattern.permute.xlu0 0
    %859 = vperm.xlu0 %858, %v855
    %v860 = vpop.permute.xlu0 %859
    %863 = vset.pattern.permute.xlu0 0
    %864 = vperm.xlu0 %863, %v856
    %v865 = vpop.permute.xlu0 %864
    %vm867 = vcmask 64512
    %v869 = vsel %vm867, %v851, 0
    %v872 = vsel %vm867, %v852, 0
    %874 = vmatprep.subr.mxu0 0.0
    %875 = vmatpush1.msra.mxu0 0.0
    %876 = vmatprep.subr.mxu0 0.0
    %877 = vmatpush1.msra.mxu0 0.0
    %878 = vmatprep.subr.mxu0 0.0
    %879 = vmatpush1.msra.mxu0 0.0
    %880 = vmatprep.subr.mxu0 0.0
    %881 = vmatpush1.msra.mxu0 0.0
    %882 = vmatprep.subr.mxu0 0.0
    %883 = vmatpush1.msra.mxu0 0.0
    %884 = vmatprep.subr.mxu0 0.0
    %885 = vmatpush1.msra.mxu0 0.0
    %886 = vmatprep.subr.mxu0 0.0
    %887 = vmatpush1.msra.mxu0 0.0
    %888 = vmatprep.subr.mxu0 0.0
    %889 = vmatpush1.msra.mxu0 0.0
    %890 = vmatprep.subr.mxu0 0.0
    %891 = vmatpush1.msra.mxu0 0.0
    %892 = vmatprep.subr.mxu0 0.0
    %893 = vmatpush1.msra.mxu0 0.0
    %894 = vmatprep.subr.mxu0 0.0
    %895 = vmatpush1.msra.mxu0 0.0
    %896 = vmatprep.subr.mxu0 0.0
    %897 = vmatpush1.msra.mxu0 0.0
    %898 = vmatprep.subr.mxu0 0.0
    %899 = vmatpush1.msra.mxu0 0.0
    %900 = vmatprep.subr.mxu0 0.0
    %901 = vmatpush1.msra.mxu0 0.0
    %902 = vmatprep.subr.mxu0 0.0
    %903 = vmatpush1.msra.mxu0 0.0
    %904 = vmatprep.subr.mxu0 0.0
    %905 = vmatpush1.msra.mxu0 %v528
    %906 = vmatprep.subr.mxu0 0.0
    %907 = vmatpush2.msra.mxu0 0.0
    %908 = vmatprep.subr.mxu0 0.0
    %909 = vmatpush2.msra.mxu0 0.0
    %910 = vmatprep.subr.mxu0 0.0
    %911 = vmatpush2.msra.mxu0 0.0
    %912 = vmatprep.subr.mxu0 0.0
    %913 = vmatpush2.msra.mxu0 0.0
    %914 = vmatprep.subr.mxu0 0.0
    %915 = vmatpush2.msra.mxu0 0.0
    %916 = vmatprep.subr.mxu0 0.0
    %917 = vmatpush2.msra.mxu0 0.0
    %918 = vmatprep.subr.mxu0 0.0
    %919 = vmatpush2.msra.mxu0 0.0
    %920 = vmatprep.subr.mxu0 0.0
    %921 = vmatpush2.msra.mxu0 0.0
    %922 = vmatprep.subr.mxu0 0.0
    %923 = vmatpush2.msra.mxu0 0.0
    %924 = vmatprep.subr.mxu0 0.0
    %925 = vmatpush2.msra.mxu0 0.0
    %926 = vmatprep.subr.mxu0 0.0
    %927 = vmatpush2.msra.mxu0 0.0
    %928 = vmatprep.subr.mxu0 0.0
    %929 = vmatpush2.msra.mxu0 0.0
    %930 = vmatprep.subr.mxu0 0.0
    %931 = vmatpush2.msra.mxu0 0.0
    %932 = vmatprep.subr.mxu0 0.0
    %933 = vmatpush2.msra.mxu0 0.0
    %934 = vmatprep.subr.mxu0 0.0
    %935 = vmatpush2.msra.mxu0 0.0
    %936 = vmatprep.subr.mxu0 0.0
    %937 = vmatpush2.msra.mxu0 0.0
    %938 = vmatprep.mubr.f32.mxu0 0.0
    %939 = vmatmul.mubr.f32.gmra.mxu0 %v869
    %v940 = vpop.f32.mrf.mxu0
    %v941 = vadd.f32 %v860, %v940
    %v942 = vpop.f32.mrf.mxu0
    %943 = vmatprep.mubr.f32.mxu0 0.0
    %944 = vmatmul.mubr.f32.gmra.mxu0 %v872
    %v945 = vpop.f32.mrf.mxu0
    %v946 = vadd.f32 %v865, %v945
    %v947 = vpop.f32.mrf.mxu0
    %948 = vdwg.mxu0
    %949 = vmatprep.subr.mxu0 0.0
    %950 = vmatpush1.msra.mxu0 0.0
    %951 = vmatprep.subr.mxu0 0.0
    %952 = vmatpush1.msra.mxu0 0.0
    %953 = vmatprep.subr.mxu0 0.0
    %954 = vmatpush1.msra.mxu0 0.0
    %955 = vmatprep.subr.mxu0 0.0
    %956 = vmatpush1.msra.mxu0 0.0
    %957 = vmatprep.subr.mxu0 0.0
    %958 = vmatpush1.msra.mxu0 0.0
    %959 = vmatprep.subr.mxu0 0.0
    %960 = vmatpush1.msra.mxu0 0.0
    %961 = vmatprep.subr.mxu0 0.0
    %962 = vmatpush1.msra.mxu0 0.0
    %963 = vmatprep.subr.mxu0 0.0
    %964 = vmatpush1.msra.mxu0 0.0
    %965 = vmatprep.subr.mxu0 0.0
    %966 = vmatpush1.msra.mxu0 0.0
    %967 = vmatprep.subr.mxu0 0.0
    %968 = vmatpush1.msra.mxu0 0.0
    %969 = vmatprep.subr.mxu0 0.0
    %970 = vmatpush1.msra.mxu0 0.0
    %971 = vmatprep.subr.mxu0 0.0
    %972 = vmatpush1.msra.mxu0 0.0
    %973 = vmatprep.subr.mxu0 0.0
    %974 = vmatpush1.msra.mxu0 0.0
    %975 = vmatprep.subr.mxu0 0.0
    %976 = vmatpush1.msra.mxu0 0.0
    %977 = vmatprep.subr.mxu0 0.0
    %978 = vmatpush1.msra.mxu0 0.0
    %979 = vmatprep.subr.mxu0 0.0
    %980 = vmatpush1.msra.mxu0 %v529
    %981 = vmatprep.subr.mxu0 0.0
    %982 = vmatpush2.msra.mxu0 0.0
    %983 = vmatprep.subr.mxu0 0.0
    %984 = vmatpush2.msra.mxu0 0.0
    %985 = vmatprep.subr.mxu0 0.0
    %986 = vmatpush2.msra.mxu0 0.0
    %987 = vmatprep.subr.mxu0 0.0
    %988 = vmatpush2.msra.mxu0 0.0
    %989 = vmatprep.subr.mxu0 0.0
    %990 = vmatpush2.msra.mxu0 0.0
    %991 = vmatprep.subr.mxu0 0.0
    %992 = vmatpush2.msra.mxu0 0.0
    %993 = vmatprep.subr.mxu0 0.0
    %994 = vmatpush2.msra.mxu0 0.0
    %995 = vmatprep.subr.mxu0 0.0
    %996 = vmatpush2.msra.mxu0 0.0
    %997 = vmatprep.subr.mxu0 0.0
    %998 = vmatpush2.msra.mxu0 0.0
    %999 = vmatprep.subr.mxu0 0.0
    %1000 = vmatpush2.msra.mxu0 0.0
    %1001 = vmatprep.subr.mxu0 0.0
    %1002 = vmatpush2.msra.mxu0 0.0
    %1003 = vmatprep.subr.mxu0 0.0
    %1004 = vmatpush2.msra.mxu0 0.0
    %1005 = vmatprep.subr.mxu0 0.0
    %1006 = vmatpush2.msra.mxu0 0.0
    %1007 = vmatprep.subr.mxu0 0.0
    %1008 = vmatpush2.msra.mxu0 0.0
    %1009 = vmatprep.subr.mxu0 0.0
    %1010 = vmatpush2.msra.mxu0 0.0
    %1011 = vmatprep.subr.mxu0 0.0
    %1012 = vmatpush2.msra.mxu0 0.0
    %1013 = vmatprep.mubr.f32.mxu0 0.0
    %1014 = vmatmul.mubr.f32.gmra.mxu0 %v869
    %v1015 = vpop.f32.mrf.mxu0
    %v1016 = vadd.f32 %v860, %v1015
    %v1017 = vpop.f32.mrf.mxu0
    %1018 = vmatprep.mubr.f32.mxu0 0.0
    %1019 = vmatmul.mubr.f32.gmra.mxu0 %v872
    %v1020 = vpop.f32.mrf.mxu0
    %v1021 = vadd.f32 %v865, %v1020
    %v1022 = vpop.f32.mrf.mxu0
    %1023 = vdwg.mxu0
    %1024 = vmatprep.subr.mxu0 0.0
    %1025 = vmatpush1.msra.mxu0 0.0
    %1026 = vmatprep.subr.mxu0 0.0
    %1027 = vmatpush1.msra.mxu0 0.0
    %1028 = vmatprep.subr.mxu0 0.0
    %1029 = vmatpush1.msra.mxu0 0.0
    %1030 = vmatprep.subr.mxu0 0.0
    %1031 = vmatpush1.msra.mxu0 0.0
    %1032 = vmatprep.subr.mxu0 0.0
    %1033 = vmatpush1.msra.mxu0 0.0
    %1034 = vmatprep.subr.mxu0 0.0
    %1035 = vmatpush1.msra.mxu0 0.0
    %1036 = vmatprep.subr.mxu0 0.0
    %1037 = vmatpush1.msra.mxu0 0.0
    %1038 = vmatprep.subr.mxu0 0.0
    %1039 = vmatpush1.msra.mxu0 0.0
    %1040 = vmatprep.subr.mxu0 0.0
    %1041 = vmatpush1.msra.mxu0 0.0
    %1042 = vmatprep.subr.mxu0 0.0
    %1043 = vmatpush1.msra.mxu0 0.0
    %1044 = vmatprep.subr.mxu0 0.0
    %1045 = vmatpush1.msra.mxu0 0.0
    %1046 = vmatprep.subr.mxu0 0.0
    %1047 = vmatpush1.msra.mxu0 0.0
    %1048 = vmatprep.subr.mxu0 0.0
    %1049 = vmatpush1.msra.mxu0 0.0
    %1050 = vmatprep.subr.mxu0 0.0
    %1051 = vmatpush1.msra.mxu0 0.0
    %1052 = vmatprep.subr.mxu0 0.0
    %1053 = vmatpush1.msra.mxu0 0.0
    %1054 = vmatprep.subr.mxu0 0.0
    %1055 = vmatpush1.msra.mxu0 %v530
    %1056 = vmatprep.subr.mxu0 0.0
    %1057 = vmatpush2.msra.mxu0 0.0
    %1058 = vmatprep.subr.mxu0 0.0
    %1059 = vmatpush2.msra.mxu0 0.0
    %1060 = vmatprep.subr.mxu0 0.0
    %1061 = vmatpush2.msra.mxu0 0.0
    %1062 = vmatprep.subr.mxu0 0.0
    %1063 = vmatpush2.msra.mxu0 0.0
    %1064 = vmatprep.subr.mxu0 0.0
    %1065 = vmatpush2.msra.mxu0 0.0
    %1066 = vmatprep.subr.mxu0 0.0
    %1067 = vmatpush2.msra.mxu0 0.0
    %1068 = vmatprep.subr.mxu0 0.0
    %1069 = vmatpush2.msra.mxu0 0.0
    %1070 = vmatprep.subr.mxu0 0.0
    %1071 = vmatpush2.msra.mxu0 0.0
    %1072 = vmatprep.subr.mxu0 0.0
    %1073 = vmatpush2.msra.mxu0 0.0
    %1074 = vmatprep.subr.mxu0 0.0
    %1075 = vmatpush2.msra.mxu0 0.0
    %1076 = vmatprep.subr.mxu0 0.0
    %1077 = vmatpush2.msra.mxu0 0.0
    %1078 = vmatprep.subr.mxu0 0.0
    %1079 = vmatpush2.msra.mxu0 0.0
    %1080 = vmatprep.subr.mxu0 0.0
    %1081 = vmatpush2.msra.mxu0 0.0
    %1082 = vmatprep.subr.mxu0 0.0
    %1083 = vmatpush2.msra.mxu0 0.0
    %1084 = vmatprep.subr.mxu0 0.0
    %1085 = vmatpush2.msra.mxu0 0.0
    %1086 = vmatprep.subr.mxu0 0.0
    %1087 = vmatpush2.msra.mxu0 0.0
    %1088 = vmatprep.mubr.f32.mxu0 0.0
    %1089 = vmatmul.mubr.f32.gmra.mxu0 %v869
    %v1090 = vpop.f32.mrf.mxu0
    %v1091 = vadd.f32 %v860, %v1090
    %v1092 = vpop.f32.mrf.mxu0
    %1093 = vmatprep.mubr.f32.mxu0 0.0
    %1094 = vmatmul.mubr.f32.gmra.mxu0 %v872
    %v1095 = vpop.f32.mrf.mxu0
    %v1096 = vadd.f32 %v865, %v1095
    %v1097 = vpop.f32.mrf.mxu0
    %1098 = vdwg.mxu0
    %1099 = vmatprep.subr.mxu0 0.0
    %1100 = vmatpush1.msra.mxu0 0.0
    %1101 = vmatprep.subr.mxu0 0.0
    %1102 = vmatpush1.msra.mxu0 0.0
    %1103 = vmatprep.subr.mxu0 0.0
    %1104 = vmatpush1.msra.mxu0 0.0
    %1105 = vmatprep.subr.mxu0 0.0
    %1106 = vmatpush1.msra.mxu0 0.0
    %1107 = vmatprep.subr.mxu0 0.0
    %1108 = vmatpush1.msra.mxu0 0.0
    %1109 = vmatprep.subr.mxu0 0.0
    %1110 = vmatpush1.msra.mxu0 0.0
    %1111 = vmatprep.subr.mxu0 0.0
    %1112 = vmatpush1.msra.mxu0 0.0
    %1113 = vmatprep.subr.mxu0 0.0
    %1114 = vmatpush1.msra.mxu0 0.0
    %1115 = vmatprep.subr.mxu0 0.0
    %1116 = vmatpush1.msra.mxu0 0.0
    %1117 = vmatprep.subr.mxu0 0.0
    %1118 = vmatpush1.msra.mxu0 0.0
    %1119 = vmatprep.subr.mxu0 0.0
    %1120 = vmatpush1.msra.mxu0 0.0
    %1121 = vmatprep.subr.mxu0 0.0
    %1122 = vmatpush1.msra.mxu0 0.0
    %1123 = vmatprep.subr.mxu0 0.0
    %1124 = vmatpush1.msra.mxu0 0.0
    %1125 = vmatprep.subr.mxu0 0.0
    %1126 = vmatpush1.msra.mxu0 0.0
    %1127 = vmatprep.subr.mxu0 0.0
    %1128 = vmatpush1.msra.mxu0 0.0
    %1129 = vmatprep.subr.mxu0 0.0
    %1130 = vmatpush1.msra.mxu0 %v531
    %1131 = vmatprep.subr.mxu0 0.0
    %1132 = vmatpush2.msra.mxu0 0.0
    %1133 = vmatprep.subr.mxu0 0.0
    %1134 = vmatpush2.msra.mxu0 0.0
    %1135 = vmatprep.subr.mxu0 0.0
    %1136 = vmatpush2.msra.mxu0 0.0
    %1137 = vmatprep.subr.mxu0 0.0
    %1138 = vmatpush2.msra.mxu0 0.0
    %1139 = vmatprep.subr.mxu0 0.0
    %1140 = vmatpush2.msra.mxu0 0.0
    %1141 = vmatprep.subr.mxu0 0.0
    %1142 = vmatpush2.msra.mxu0 0.0
    %1143 = vmatprep.subr.mxu0 0.0
    %1144 = vmatpush2.msra.mxu0 0.0
    %1145 = vmatprep.subr.mxu0 0.0
    %1146 = vmatpush2.msra.mxu0 0.0
    %1147 = vmatprep.subr.mxu0 0.0
    %1148 = vmatpush2.msra.mxu0 0.0
    %1149 = vmatprep.subr.mxu0 0.0
    %1150 = vmatpush2.msra.mxu0 0.0
    %1151 = vmatprep.subr.mxu0 0.0
    %1152 = vmatpush2.msra.mxu0 0.0
    %1153 = vmatprep.subr.mxu0 0.0
    %1154 = vmatpush2.msra.mxu0 0.0
    %1155 = vmatprep.subr.mxu0 0.0
    %1156 = vmatpush2.msra.mxu0 0.0
    %1157 = vmatprep.subr.mxu0 0.0
    %1158 = vmatpush2.msra.mxu0 0.0
    %1159 = vmatprep.subr.mxu0 0.0
    %1160 = vmatpush2.msra.mxu0 0.0
    %1161 = vmatprep.subr.mxu0 0.0
    %1162 = vmatpush2.msra.mxu0 0.0
    %1163 = vmatprep.mubr.f32.mxu0 0.0
    %1164 = vmatmul.mubr.f32.gmra.mxu0 %v869
    %v1165 = vpop.f32.mrf.mxu0
    %v1166 = vadd.f32 %v860, %v1165
    %v1167 = vpop.f32.mrf.mxu0
    %1168 = vmatprep.mubr.f32.mxu0 0.0
    %1169 = vmatmul.mubr.f32.gmra.mxu0 %v872
    %v1170 = vpop.f32.mrf.mxu0
    %v1171 = vadd.f32 %v865, %v1170
    %v1172 = vpop.f32.mrf.mxu0
    %1173 = vdwg.mxu0
    %v1174 = vxor.u32 %v941, 2147483648
    %v1175 = vxor.u32 %v946, 2147483648
    %v1176 = vxor.u32 %v1016, 2147483648
    %v1177 = vxor.u32 %v1021, 2147483648
    %v1178 = vxor.u32 %v1091, 2147483648
    %v1179 = vxor.u32 %v1096, 2147483648
    %v1180 = vxor.u32 %v1166, 2147483648
    %v1181 = vxor.u32 %v1171, 2147483648
    %v1182 = vmul.f32 %v1174, 1.442695
    %v1183 = vpow.pop %v1182
    %v1184 = vmul.f32 %v1175, 1.442695
    %v1185 = vpow.pop %v1184
    %v1186 = vmul.f32 %v1176, 1.442695
    %v1187 = vpow.pop %v1186
    %v1188 = vmul.f32 %v1177, 1.442695
    %v1189 = vpow.pop %v1188
    %v1190 = vmul.f32 %v1178, 1.442695
    %v1191 = vpow.pop %v1190
    %v1192 = vmul.f32 %v1179, 1.442695
    %v1193 = vpow.pop %v1192
    %v1194 = vmul.f32 %v1180, 1.442695
    %v1195 = vpow.pop %v1194
    %v1196 = vmul.f32 %v1181, 1.442695
    %v1197 = vpow.pop %v1196
    %v1198 = vadd.f32 %v1183, 1.0
    %v1199 = vadd.f32 %v1185, 1.0
    %v1200 = vadd.f32 %v1187, 1.0
    %v1201 = vadd.f32 %v1189, 1.0
    %v1202 = vadd.f32 %v1191, 1.0
    %v1203 = vadd.f32 %v1193, 1.0
    %v1204 = vadd.f32 %v1195, 1.0
    %v1205 = vadd.f32 %v1197, 1.0
    %v1206 = vrcp.pop %v1198
    %v1207 = vmul.f32 1.0, %v1206
    %v1208 = vrcp.pop %v1199
    %v1209 = vmul.f32 1.0, %v1208
    %v1210 = vrcp.pop %v1200
    %v1211 = vmul.f32 1.0, %v1210
    %v1212 = vrcp.pop %v1201
    %v1213 = vmul.f32 1.0, %v1212
    %v1214 = vrcp.pop %v1202
    %v1215 = vmul.f32 1.0, %v1214
    %v1216 = vrcp.pop %v1203
    %v1217 = vmul.f32 1.0, %v1216
    %v1218 = vrcp.pop %v1204
    %v1219 = vmul.f32 1.0, %v1218
    %v1220 = vrcp.pop %v1205
    %v1221 = vmul.f32 1.0, %v1220
    %v1222 = vld [vmem:[%s10] sm:$0xff]
    %v1223 = vld [vmem:[%s10 + $0x8] sm:$0xff]
    %1225 = vset.pattern.permute.xlu0 0
    %1226 = vperm.xlu0 %1225, %v1222
    %v1227 = vpop.permute.xlu0 %1226
    %1230 = vset.pattern.permute.xlu0 0
    %1231 = vperm.xlu0 %1230, %v1223
    %v1232 = vpop.permute.xlu0 %1231
    %v1235 = vsel %vm867, %v853, 0
    %v1238 = vsel %vm867, %v854, 0
    %1240 = vmatprep.subr.mxu0 0.0
    %1241 = vmatpush1.msra.mxu0 0.0
    %1242 = vmatprep.subr.mxu0 0.0
    %1243 = vmatpush1.msra.mxu0 0.0
    %1244 = vmatprep.subr.mxu0 0.0
    %1245 = vmatpush1.msra.mxu0 0.0
    %1246 = vmatprep.subr.mxu0 0.0
    %1247 = vmatpush1.msra.mxu0 0.0
    %1248 = vmatprep.subr.mxu0 0.0
    %1249 = vmatpush1.msra.mxu0 0.0
    %1250 = vmatprep.subr.mxu0 0.0
    %1251 = vmatpush1.msra.mxu0 0.0
    %1252 = vmatprep.subr.mxu0 0.0
    %1253 = vmatpush1.msra.mxu0 0.0
    %1254 = vmatprep.subr.mxu0 0.0
    %1255 = vmatpush1.msra.mxu0 0.0
    %1256 = vmatprep.subr.mxu0 0.0
    %1257 = vmatpush1.msra.mxu0 0.0
    %1258 = vmatprep.subr.mxu0 0.0
    %1259 = vmatpush1.msra.mxu0 0.0
    %1260 = vmatprep.subr.mxu0 0.0
    %1261 = vmatpush1.msra.mxu0 0.0
    %1262 = vmatprep.subr.mxu0 0.0
    %1263 = vmatpush1.msra.mxu0 0.0
    %1264 = vmatprep.subr.mxu0 0.0
    %1265 = vmatpush1.msra.mxu0 0.0
    %1266 = vmatprep.subr.mxu0 0.0
    %1267 = vmatpush1.msra.mxu0 0.0
    %1268 = vmatprep.subr.mxu0 0.0
    %1269 = vmatpush1.msra.mxu0 0.0
    %1270 = vmatprep.subr.mxu0 0.0
    %1271 = vmatpush1.msra.mxu0 %v847
    %1272 = vmatprep.subr.mxu0 0.0
    %1273 = vmatpush2.msra.mxu0 0.0
    %1274 = vmatprep.subr.mxu0 0.0
    %1275 = vmatpush2.msra.mxu0 0.0
    %1276 = vmatprep.subr.mxu0 0.0
    %1277 = vmatpush2.msra.mxu0 0.0
    %1278 = vmatprep.subr.mxu0 0.0
    %1279 = vmatpush2.msra.mxu0 0.0
    %1280 = vmatprep.subr.mxu0 0.0
    %1281 = vmatpush2.msra.mxu0 0.0
    %1282 = vmatprep.subr.mxu0 0.0
    %1283 = vmatpush2.msra.mxu0 0.0
    %1284 = vmatprep.subr.mxu0 0.0
    %1285 = vmatpush2.msra.mxu0 0.0
    %1286 = vmatprep.subr.mxu0 0.0
    %1287 = vmatpush2.msra.mxu0 0.0
    %1288 = vmatprep.subr.mxu0 0.0
    %1289 = vmatpush2.msra.mxu0 0.0
    %1290 = vmatprep.subr.mxu0 0.0
    %1291 = vmatpush2.msra.mxu0 0.0
    %1292 = vmatprep.subr.mxu0 0.0
    %1293 = vmatpush2.msra.mxu0 0.0
    %1294 = vmatprep.subr.mxu0 0.0
    %1295 = vmatpush2.msra.mxu0 0.0
    %1296 = vmatprep.subr.mxu0 0.0
    %1297 = vmatpush2.msra.mxu0 0.0
    %1298 = vmatprep.subr.mxu0 0.0
    %1299 = vmatpush2.msra.mxu0 0.0
    %1300 = vmatprep.subr.mxu0 0.0
    %1301 = vmatpush2.msra.mxu0 0.0
    %1302 = vmatprep.subr.mxu0 0.0
    %1303 = vmatpush2.msra.mxu0 0.0
    %1304 = vmatprep.mubr.f32.mxu0 0.0
    %1305 = vmatmul.mubr.f32.gmra.mxu0 %v1235
    %v1306 = vpop.f32.mrf.mxu0
    %v1307 = vadd.f32 %v1227, %v1306
    %v1308 = vpop.f32.mrf.mxu0
    %1309 = vmatprep.mubr.f32.mxu0 0.0
    %1310 = vmatmul.mubr.f32.gmra.mxu0 %v1238
    %v1311 = vpop.f32.mrf.mxu0
    %v1312 = vadd.f32 %v1232, %v1311
    %v1313 = vpop.f32.mrf.mxu0
    %1314 = vdwg.mxu0
    %1315 = vmatprep.subr.mxu0 0.0
    %1316 = vmatpush1.msra.mxu0 0.0
    %1317 = vmatprep.subr.mxu0 0.0
    %1318 = vmatpush1.msra.mxu0 0.0
    %1319 = vmatprep.subr.mxu0 0.0
    %1320 = vmatpush1.msra.mxu0 0.0
    %1321 = vmatprep.subr.mxu0 0.0
    %1322 = vmatpush1.msra.mxu0 0.0
    %1323 = vmatprep.subr.mxu0 0.0
    %1324 = vmatpush1.msra.mxu0 0.0
    %1325 = vmatprep.subr.mxu0 0.0
    %1326 = vmatpush1.msra.mxu0 0.0
    %1327 = vmatprep.subr.mxu0 0.0
    %1328 = vmatpush1.msra.mxu0 0.0
    %1329 = vmatprep.subr.mxu0 0.0
    %1330 = vmatpush1.msra.mxu0 0.0
    %1331 = vmatprep.subr.mxu0 0.0
    %1332 = vmatpush1.msra.mxu0 0.0
    %1333 = vmatprep.subr.mxu0 0.0
    %1334 = vmatpush1.msra.mxu0 0.0
    %1335 = vmatprep.subr.mxu0 0.0
    %1336 = vmatpush1.msra.mxu0 0.0
    %1337 = vmatprep.subr.mxu0 0.0
    %1338 = vmatpush1.msra.mxu0 0.0
    %1339 = vmatprep.subr.mxu0 0.0
    %1340 = vmatpush1.msra.mxu0 0.0
    %1341 = vmatprep.subr.mxu0 0.0
    %1342 = vmatpush1.msra.mxu0 0.0
    %1343 = vmatprep.subr.mxu0 0.0
    %1344 = vmatpush1.msra.mxu0 0.0
    %1345 = vmatprep.subr.mxu0 0.0
    %1346 = vmatpush1.msra.mxu0 %v848
    %1347 = vmatprep.subr.mxu0 0.0
    %1348 = vmatpush2.msra.mxu0 0.0
    %1349 = vmatprep.subr.mxu0 0.0
    %1350 = vmatpush2.msra.mxu0 0.0
    %1351 = vmatprep.subr.mxu0 0.0
    %1352 = vmatpush2.msra.mxu0 0.0
    %1353 = vmatprep.subr.mxu0 0.0
    %1354 = vmatpush2.msra.mxu0 0.0
    %1355 = vmatprep.subr.mxu0 0.0
    %1356 = vmatpush2.msra.mxu0 0.0
    %1357 = vmatprep.subr.mxu0 0.0
    %1358 = vmatpush2.msra.mxu0 0.0
    %1359 = vmatprep.subr.mxu0 0.0
    %1360 = vmatpush2.msra.mxu0 0.0
    %1361 = vmatprep.subr.mxu0 0.0
    %1362 = vmatpush2.msra.mxu0 0.0
    %1363 = vmatprep.subr.mxu0 0.0
    %1364 = vmatpush2.msra.mxu0 0.0
    %1365 = vmatprep.subr.mxu0 0.0
    %1366 = vmatpush2.msra.mxu0 0.0
    %1367 = vmatprep.subr.mxu0 0.0
    %1368 = vmatpush2.msra.mxu0 0.0
    %1369 = vmatprep.subr.mxu0 0.0
    %1370 = vmatpush2.msra.mxu0 0.0
    %1371 = vmatprep.subr.mxu0 0.0
    %1372 = vmatpush2.msra.mxu0 0.0
    %1373 = vmatprep.subr.mxu0 0.0
    %1374 = vmatpush2.msra.mxu0 0.0
    %1375 = vmatprep.subr.mxu0 0.0
    %1376 = vmatpush2.msra.mxu0 0.0
    %1377 = vmatprep.subr.mxu0 0.0
    %1378 = vmatpush2.msra.mxu0 0.0
    %1379 = vmatprep.mubr.f32.mxu0 0.0
    %1380 = vmatmul.mubr.f32.gmra.mxu0 %v1235
    %v1381 = vpop.f32.mrf.mxu0
    %v1382 = vadd.f32 %v1227, %v1381
    %v1383 = vpop.f32.mrf.mxu0
    %1384 = vmatprep.mubr.f32.mxu0 0.0
    %1385 = vmatmul.mubr.f32.gmra.mxu0 %v1238
    %v1386 = vpop.f32.mrf.mxu0
    %v1387 = vadd.f32 %v1232, %v1386
    %v1388 = vpop.f32.mrf.mxu0
    %1389 = vdwg.mxu0
    %1390 = vmatprep.subr.mxu0 0.0
    %1391 = vmatpush1.msra.mxu0 0.0
    %1392 = vmatprep.subr.mxu0 0.0
    %1393 = vmatpush1.msra.mxu0 0.0
    %1394 = vmatprep.subr.mxu0 0.0
    %1395 = vmatpush1.msra.mxu0 0.0
    %1396 = vmatprep.subr.mxu0 0.0
    %1397 = vmatpush1.msra.mxu0 0.0
    %1398 = vmatprep.subr.mxu0 0.0
    %1399 = vmatpush1.msra.mxu0 0.0
    %1400 = vmatprep.subr.mxu0 0.0
    %1401 = vmatpush1.msra.mxu0 0.0
    %1402 = vmatprep.subr.mxu0 0.0
    %1403 = vmatpush1.msra.mxu0 0.0
    %1404 = vmatprep.subr.mxu0 0.0
    %1405 = vmatpush1.msra.mxu0 0.0
    %1406 = vmatprep.subr.mxu0 0.0
    %1407 = vmatpush1.msra.mxu0 0.0
    %1408 = vmatprep.subr.mxu0 0.0
    %1409 = vmatpush1.msra.mxu0 0.0
    %1410 = vmatprep.subr.mxu0 0.0
    %1411 = vmatpush1.msra.mxu0 0.0
    %1412 = vmatprep.subr.mxu0 0.0
    %1413 = vmatpush1.msra.mxu0 0.0
    %1414 = vmatprep.subr.mxu0 0.0
    %1415 = vmatpush1.msra.mxu0 0.0
    %1416 = vmatprep.subr.mxu0 0.0
    %1417 = vmatpush1.msra.mxu0 0.0
    %1418 = vmatprep.subr.mxu0 0.0
    %1419 = vmatpush1.msra.mxu0 0.0
    %1420 = vmatprep.subr.mxu0 0.0
    %1421 = vmatpush1.msra.mxu0 %v849
    %1422 = vmatprep.subr.mxu0 0.0
    %1423 = vmatpush2.msra.mxu0 0.0
    %1424 = vmatprep.subr.mxu0 0.0
    %1425 = vmatpush2.msra.mxu0 0.0
    %1426 = vmatprep.subr.mxu0 0.0
    %1427 = vmatpush2.msra.mxu0 0.0
    %1428 = vmatprep.subr.mxu0 0.0
    %1429 = vmatpush2.msra.mxu0 0.0
    %1430 = vmatprep.subr.mxu0 0.0
    %1431 = vmatpush2.msra.mxu0 0.0
    %1432 = vmatprep.subr.mxu0 0.0
    %1433 = vmatpush2.msra.mxu0 0.0
    %1434 = vmatprep.subr.mxu0 0.0
    %1435 = vmatpush2.msra.mxu0 0.0
    %1436 = vmatprep.subr.mxu0 0.0
    %1437 = vmatpush2.msra.mxu0 0.0
    %1438 = vmatprep.subr.mxu0 0.0
    %1439 = vmatpush2.msra.mxu0 0.0
    %1440 = vmatprep.subr.mxu0 0.0
    %1441 = vmatpush2.msra.mxu0 0.0
    %1442 = vmatprep.subr.mxu0 0.0
    %1443 = vmatpush2.msra.mxu0 0.0
    %1444 = vmatprep.subr.mxu0 0.0
    %1445 = vmatpush2.msra.mxu0 0.0
    %1446 = vmatprep.subr.mxu0 0.0
    %1447 = vmatpush2.msra.mxu0 0.0
    %1448 = vmatprep.subr.mxu0 0.0
    %1449 = vmatpush2.msra.mxu0 0.0
    %1450 = vmatprep.subr.mxu0 0.0
    %1451 = vmatpush2.msra.mxu0 0.0
    %1452 = vmatprep.subr.mxu0 0.0
    %1453 = vmatpush2.msra.mxu0 0.0
    %1454 = vmatprep.mubr.f32.mxu0 0.0
    %1455 = vmatmul.mubr.f32.gmra.mxu0 %v1235
    %v1456 = vpop.f32.mrf.mxu0
    %v1457 = vadd.f32 %v1227, %v1456
    %v1458 = vpop.f32.mrf.mxu0
    %1459 = vmatprep.mubr.f32.mxu0 0.0
    %1460 = vmatmul.mubr.f32.gmra.mxu0 %v1238
    %v1461 = vpop.f32.mrf.mxu0
    %v1462 = vadd.f32 %v1232, %v1461
    %v1463 = vpop.f32.mrf.mxu0
    %1464 = vdwg.mxu0
    %1465 = vmatprep.subr.mxu0 0.0
    %1466 = vmatpush1.msra.mxu0 0.0
    %1467 = vmatprep.subr.mxu0 0.0
    %1468 = vmatpush1.msra.mxu0 0.0
    %1469 = vmatprep.subr.mxu0 0.0
    %1470 = vmatpush1.msra.mxu0 0.0
    %1471 = vmatprep.subr.mxu0 0.0
    %1472 = vmatpush1.msra.mxu0 0.0
    %1473 = vmatprep.subr.mxu0 0.0
    %1474 = vmatpush1.msra.mxu0 0.0
    %1475 = vmatprep.subr.mxu0 0.0
    %1476 = vmatpush1.msra.mxu0 0.0
    %1477 = vmatprep.subr.mxu0 0.0
    %1478 = vmatpush1.msra.mxu0 0.0
    %1479 = vmatprep.subr.mxu0 0.0
    %1480 = vmatpush1.msra.mxu0 0.0
    %1481 = vmatprep.subr.mxu0 0.0
    %1482 = vmatpush1.msra.mxu0 0.0
    %1483 = vmatprep.subr.mxu0 0.0
    %1484 = vmatpush1.msra.mxu0 0.0
    %1485 = vmatprep.subr.mxu0 0.0
    %1486 = vmatpush1.msra.mxu0 0.0
    %1487 = vmatprep.subr.mxu0 0.0
    %1488 = vmatpush1.msra.mxu0 0.0
    %1489 = vmatprep.subr.mxu0 0.0
    %1490 = vmatpush1.msra.mxu0 0.0
    %1491 = vmatprep.subr.mxu0 0.0
    %1492 = vmatpush1.msra.mxu0 0.0
    %1493 = vmatprep.subr.mxu0 0.0
    %1494 = vmatpush1.msra.mxu0 0.0
    %1495 = vmatprep.subr.mxu0 0.0
    %1496 = vmatpush1.msra.mxu0 %v850
    %1497 = vmatprep.subr.mxu0 0.0
    %1498 = vmatpush2.msra.mxu0 0.0
    %1499 = vmatprep.subr.mxu0 0.0
    %1500 = vmatpush2.msra.mxu0 0.0
    %1501 = vmatprep.subr.mxu0 0.0
    %1502 = vmatpush2.msra.mxu0 0.0
    %1503 = vmatprep.subr.mxu0 0.0
    %1504 = vmatpush2.msra.mxu0 0.0
    %1505 = vmatprep.subr.mxu0 0.0
    %1506 = vmatpush2.msra.mxu0 0.0
    %1507 = vmatprep.subr.mxu0 0.0
    %1508 = vmatpush2.msra.mxu0 0.0
    %1509 = vmatprep.subr.mxu0 0.0
    %1510 = vmatpush2.msra.mxu0 0.0
    %1511 = vmatprep.subr.mxu0 0.0
    %1512 = vmatpush2.msra.mxu0 0.0
    %1513 = vmatprep.subr.mxu0 0.0
    %1514 = vmatpush2.msra.mxu0 0.0
    %1515 = vmatprep.subr.mxu0 0.0
    %1516 = vmatpush2.msra.mxu0 0.0
    %1517 = vmatprep.subr.mxu0 0.0
    %1518 = vmatpush2.msra.mxu0 0.0
    %1519 = vmatprep.subr.mxu0 0.0
    %1520 = vmatpush2.msra.mxu0 0.0
    %1521 = vmatprep.subr.mxu0 0.0
    %1522 = vmatpush2.msra.mxu0 0.0
    %1523 = vmatprep.subr.mxu0 0.0
    %1524 = vmatpush2.msra.mxu0 0.0
    %1525 = vmatprep.subr.mxu0 0.0
    %1526 = vmatpush2.msra.mxu0 0.0
    %1527 = vmatprep.subr.mxu0 0.0
    %1528 = vmatpush2.msra.mxu0 0.0
    %1529 = vmatprep.mubr.f32.mxu0 0.0
    %1530 = vmatmul.mubr.f32.gmra.mxu0 %v1235
    %v1531 = vpop.f32.mrf.mxu0
    %v1532 = vadd.f32 %v1227, %v1531
    %v1533 = vpop.f32.mrf.mxu0
    %1534 = vmatprep.mubr.f32.mxu0 0.0
    %1535 = vmatmul.mubr.f32.gmra.mxu0 %v1238
    %v1536 = vpop.f32.mrf.mxu0
    %v1537 = vadd.f32 %v1232, %v1536
    %v1538 = vpop.f32.mrf.mxu0
    %1539 = vdwg.mxu0
    %v1540 = vxor.u32 %v1307, 2147483648
    %v1541 = vxor.u32 %v1312, 2147483648
    %v1542 = vxor.u32 %v1382, 2147483648
    %v1543 = vxor.u32 %v1387, 2147483648
    %v1544 = vxor.u32 %v1457, 2147483648
    %v1545 = vxor.u32 %v1462, 2147483648
    %v1546 = vxor.u32 %v1532, 2147483648
    %v1547 = vxor.u32 %v1537, 2147483648
    %v1548 = vmul.f32 %v1540, 1.442695
    %v1549 = vpow.pop %v1548
    %v1550 = vmul.f32 %v1541, 1.442695
    %v1551 = vpow.pop %v1550
    %v1552 = vmul.f32 %v1542, 1.442695
    %v1553 = vpow.pop %v1552
    %v1554 = vmul.f32 %v1543, 1.442695
    %v1555 = vpow.pop %v1554
    %v1556 = vmul.f32 %v1544, 1.442695
    %v1557 = vpow.pop %v1556
    %v1558 = vmul.f32 %v1545, 1.442695
    %v1559 = vpow.pop %v1558
    %v1560 = vmul.f32 %v1546, 1.442695
    %v1561 = vpow.pop %v1560
    %v1562 = vmul.f32 %v1547, 1.442695
    %v1563 = vpow.pop %v1562
    %v1564 = vadd.f32 %v1549, 1.0
    %v1565 = vadd.f32 %v1551, 1.0
    %v1566 = vadd.f32 %v1553, 1.0
    %v1567 = vadd.f32 %v1555, 1.0
    %v1568 = vadd.f32 %v1557, 1.0
    %v1569 = vadd.f32 %v1559, 1.0
    %v1570 = vadd.f32 %v1561, 1.0
    %v1571 = vadd.f32 %v1563, 1.0
    %v1572 = vrcp.pop %v1564
    %v1573 = vmul.f32 1.0, %v1572
    %v1574 = vrcp.pop %v1565
    %v1575 = vmul.f32 1.0, %v1574
    %v1576 = vrcp.pop %v1566
    %v1577 = vmul.f32 1.0, %v1576
    %v1578 = vrcp.pop %v1567
    %v1579 = vmul.f32 1.0, %v1578
    %v1580 = vrcp.pop %v1568
    %v1581 = vmul.f32 1.0, %v1580
    %v1582 = vrcp.pop %v1569
    %v1583 = vmul.f32 1.0, %v1582
    %v1584 = vrcp.pop %v1570
    %v1585 = vmul.f32 1.0, %v1584
    %v1586 = vrcp.pop %v1571
    %v1587 = vmul.f32 1.0, %v1586
    %v1589 = vsel %vm244, %v1207, 0
    %v1592 = vsel %vm244, %v1209, 0
    %v1595 = vsel %vm244, %v1211, 0
    %v1598 = vsel %vm244, %v1213, 0
    %v1601 = vsel %vm244, %v1215, 0
    %v1604 = vsel %vm244, %v1217, 0
    %v1607 = vsel %vm244, %v1219, 0
    %v1610 = vsel %vm244, %v1221, 0
    %1612 = vmatprep.subr.mxu0 0.0
    %1613 = vmatpush1.msra.mxu0 0.0
    %1614 = vmatprep.subr.mxu0 0.0
    %1615 = vmatpush1.msra.mxu0 0.0
    %1616 = vmatprep.subr.mxu0 0.0
    %1617 = vmatpush1.msra.mxu0 0.0
    %1618 = vmatprep.subr.mxu0 0.0
    %1619 = vmatpush1.msra.mxu0 0.0
    %1620 = vmatprep.subr.mxu0 0.0
    %1621 = vmatpush1.msra.mxu0 0.0
    %1622 = vmatprep.subr.mxu0 0.0
    %1623 = vmatpush1.msra.mxu0 0.0
    %1624 = vmatprep.subr.mxu0 0.0
    %1625 = vmatpush1.msra.mxu0 0.0
    %1626 = vmatprep.subr.mxu0 0.0
    %1627 = vmatpush1.msra.mxu0 0.0
    %1628 = vmatprep.subr.mxu0 0.0
    %1629 = vmatpush1.msra.mxu0 0.0
    %1630 = vmatprep.subr.mxu0 0.0
    %1631 = vmatpush1.msra.mxu0 0.0
    %1632 = vmatprep.subr.mxu0 0.0
    %1633 = vmatpush1.msra.mxu0 0.0
    %1634 = vmatprep.subr.mxu0 0.0
    %1635 = vmatpush1.msra.mxu0 0.0
    %1636 = vmatprep.subr.mxu0 0.0
    %1637 = vmatpush1.msra.mxu0 0.0
    %1638 = vmatprep.subr.mxu0 0.0
    %1639 = vmatpush1.msra.mxu0 0.0
    %1640 = vmatprep.subr.mxu0 %v124
    %1641 = vmatpush1.msra.mxu0 %v123
    %1642 = vmatprep.subr.mxu0 %v122
    %1643 = vmatpush1.msra.mxu0 %v121
    %1644 = vmatprep.subr.mxu0 0.0
    %1645 = vmatpush2.msra.mxu0 0.0
    %1646 = vmatprep.subr.mxu0 0.0
    %1647 = vmatpush2.msra.mxu0 0.0
    %1648 = vmatprep.subr.mxu0 0.0
    %1649 = vmatpush2.msra.mxu0 0.0
    %1650 = vmatprep.subr.mxu0 0.0
    %1651 = vmatpush2.msra.mxu0 0.0
    %1652 = vmatprep.subr.mxu0 0.0
    %1653 = vmatpush2.msra.mxu0 0.0
    %1654 = vmatprep.subr.mxu0 0.0
    %1655 = vmatpush2.msra.mxu0 0.0
    %1656 = vmatprep.subr.mxu0 0.0
    %1657 = vmatpush2.msra.mxu0 0.0
    %1658 = vmatprep.subr.mxu0 0.0
    %1659 = vmatpush2.msra.mxu0 0.0
    %1660 = vmatprep.subr.mxu0 0.0
    %1661 = vmatpush2.msra.mxu0 0.0
    %1662 = vmatprep.subr.mxu0 0.0
    %1663 = vmatpush2.msra.mxu0 0.0
    %1664 = vmatprep.subr.mxu0 0.0
    %1665 = vmatpush2.msra.mxu0 0.0
    %1666 = vmatprep.subr.mxu0 0.0
    %1667 = vmatpush2.msra.mxu0 0.0
    %1668 = vmatprep.subr.mxu0 0.0
    %1669 = vmatpush2.msra.mxu0 0.0
    %1670 = vmatprep.subr.mxu0 0.0
    %1671 = vmatpush2.msra.mxu0 0.0
    %1672 = vmatprep.subr.mxu0 0.0
    %1673 = vmatpush2.msra.mxu0 0.0
    %1674 = vmatprep.subr.mxu0 0.0
    %1675 = vmatpush2.msra.mxu0 0.0
    %1676 = vmatprep.mubr.f32.mxu0 0.0
    %1677 = vmatmul.mubr.f32.gmra.mxu0 %v1589
    %v1678 = vpop.f32.mrf.mxu0
    %v1679 = vadd.f32 0.0, %v1678
    %v1680 = vpop.f32.mrf.mxu0
    %v1681 = vadd.f32 0.0, %v1680
    %1682 = vmatprep.mubr.f32.mxu0 0.0
    %1683 = vmatmul.mubr.f32.gmra.mxu0 %v1592
    %v1684 = vpop.f32.mrf.mxu0
    %v1685 = vadd.f32 0.0, %v1684
    %v1686 = vpop.f32.mrf.mxu0
    %v1687 = vadd.f32 0.0, %v1686
    %1688 = vmatprep.mubr.f32.mxu0 0.0
    %1689 = vmatmul.mubr.f32.gmra.mxu0 %v1595
    %v1690 = vpop.f32.mrf.mxu0
    %v1691 = vadd.f32 0.0, %v1690
    %v1692 = vpop.f32.mrf.mxu0
    %v1693 = vadd.f32 0.0, %v1692
    %1694 = vmatprep.mubr.f32.mxu0 0.0
    %1695 = vmatmul.mubr.f32.gmra.mxu0 %v1598
    %v1696 = vpop.f32.mrf.mxu0
    %v1697 = vadd.f32 0.0, %v1696
    %v1698 = vpop.f32.mrf.mxu0
    %v1699 = vadd.f32 0.0, %v1698
    %1700 = vmatprep.mubr.f32.mxu0 0.0
    %1701 = vmatmul.mubr.f32.gmra.mxu0 %v1601
    %v1702 = vpop.f32.mrf.mxu0
    %v1703 = vadd.f32 0.0, %v1702
    %v1704 = vpop.f32.mrf.mxu0
    %v1705 = vadd.f32 0.0, %v1704
    %1706 = vmatprep.mubr.f32.mxu0 0.0
    %1707 = vmatmul.mubr.f32.gmra.mxu0 %v1604
    %v1708 = vpop.f32.mrf.mxu0
    %v1709 = vadd.f32 0.0, %v1708
    %v1710 = vpop.f32.mrf.mxu0
    %v1711 = vadd.f32 0.0, %v1710
    %1712 = vmatprep.mubr.f32.mxu0 0.0
    %1713 = vmatmul.mubr.f32.gmra.mxu0 %v1607
    %v1714 = vpop.f32.mrf.mxu0
    %v1715 = vadd.f32 0.0, %v1714
    %v1716 = vpop.f32.mrf.mxu0
    %v1717 = vadd.f32 0.0, %v1716
    %1718 = vmatprep.mubr.f32.mxu0 0.0
    %1719 = vmatmul.mubr.f32.gmra.mxu0 %v1610
    %v1720 = vpop.f32.mrf.mxu0
    %v1721 = vadd.f32 0.0, %v1720
    %v1722 = vpop.f32.mrf.mxu0
    %v1723 = vadd.f32 0.0, %v1722
    %1724 = vdwg.mxu0
    %v1726 = vsel %vm244, %v1573, 0
    %v1729 = vsel %vm244, %v1575, 0
    %v1732 = vsel %vm244, %v1577, 0
    %v1735 = vsel %vm244, %v1579, 0
    %v1738 = vsel %vm244, %v1581, 0
    %v1741 = vsel %vm244, %v1583, 0
    %v1744 = vsel %vm244, %v1585, 0
    %v1747 = vsel %vm244, %v1587, 0
    %1749 = vmatprep.subr.mxu0 0.0
    %1750 = vmatpush1.msra.mxu0 0.0
    %1751 = vmatprep.subr.mxu0 0.0
    %1752 = vmatpush1.msra.mxu0 0.0
    %1753 = vmatprep.subr.mxu0 0.0
    %1754 = vmatpush1.msra.mxu0 0.0
    %1755 = vmatprep.subr.mxu0 0.0
    %1756 = vmatpush1.msra.mxu0 0.0
    %1757 = vmatprep.subr.mxu0 0.0
    %1758 = vmatpush1.msra.mxu0 0.0
    %1759 = vmatprep.subr.mxu0 0.0
    %1760 = vmatpush1.msra.mxu0 0.0
    %1761 = vmatprep.subr.mxu0 0.0
    %1762 = vmatpush1.msra.mxu0 0.0
    %1763 = vmatprep.subr.mxu0 0.0
    %1764 = vmatpush1.msra.mxu0 0.0
    %1765 = vmatprep.subr.mxu0 0.0
    %1766 = vmatpush1.msra.mxu0 0.0
    %1767 = vmatprep.subr.mxu0 0.0
    %1768 = vmatpush1.msra.mxu0 0.0
    %1769 = vmatprep.subr.mxu0 0.0
    %1770 = vmatpush1.msra.mxu0 0.0
    %1771 = vmatprep.subr.mxu0 0.0
    %1772 = vmatpush1.msra.mxu0 0.0
    %1773 = vmatprep.subr.mxu0 0.0
    %1774 = vmatpush1.msra.mxu0 0.0
    %1775 = vmatprep.subr.mxu0 0.0
    %1776 = vmatpush1.msra.mxu0 0.0
    %1777 = vmatprep.subr.mxu0 %v130
    %1778 = vmatpush1.msra.mxu0 %v129
    %1779 = vmatprep.subr.mxu0 %v128
    %1780 = vmatpush1.msra.mxu0 %v127
    %1781 = vmatprep.subr.mxu0 0.0
    %1782 = vmatpush2.msra.mxu0 0.0
    %1783 = vmatprep.subr.mxu0 0.0
    %1784 = vmatpush2.msra.mxu0 0.0
    %1785 = vmatprep.subr.mxu0 0.0
    %1786 = vmatpush2.msra.mxu0 0.0
    %1787 = vmatprep.subr.mxu0 0.0
    %1788 = vmatpush2.msra.mxu0 0.0
    %1789 = vmatprep.subr.mxu0 0.0
    %1790 = vmatpush2.msra.mxu0 0.0
    %1791 = vmatprep.subr.mxu0 0.0
    %1792 = vmatpush2.msra.mxu0 0.0
    %1793 = vmatprep.subr.mxu0 0.0
    %1794 = vmatpush2.msra.mxu0 0.0
    %1795 = vmatprep.subr.mxu0 0.0
    %1796 = vmatpush2.msra.mxu0 0.0
    %1797 = vmatprep.subr.mxu0 0.0
    %1798 = vmatpush2.msra.mxu0 0.0
    %1799 = vmatprep.subr.mxu0 0.0
    %1800 = vmatpush2.msra.mxu0 0.0
    %1801 = vmatprep.subr.mxu0 0.0
    %1802 = vmatpush2.msra.mxu0 0.0
    %1803 = vmatprep.subr.mxu0 0.0
    %1804 = vmatpush2.msra.mxu0 0.0
    %1805 = vmatprep.subr.mxu0 0.0
    %1806 = vmatpush2.msra.mxu0 0.0
    %1807 = vmatprep.subr.mxu0 0.0
    %1808 = vmatpush2.msra.mxu0 0.0
    %1809 = vmatprep.subr.mxu0 0.0
    %1810 = vmatpush2.msra.mxu0 0.0
    %1811 = vmatprep.subr.mxu0 0.0
    %1812 = vmatpush2.msra.mxu0 0.0
    %1813 = vmatprep.mubr.f32.mxu0 0.0
    %1814 = vmatmul.mubr.f32.gmra.mxu0 %v1726
    %v1815 = vpop.f32.mrf.mxu0
    %v1816 = vadd.f32 0.0, %v1815
    %v1817 = vpop.f32.mrf.mxu0
    %v1818 = vadd.f32 0.0, %v1817
    %1819 = vmatprep.mubr.f32.mxu0 0.0
    %1820 = vmatmul.mubr.f32.gmra.mxu0 %v1729
    %v1821 = vpop.f32.mrf.mxu0
    %v1822 = vadd.f32 0.0, %v1821
    %v1823 = vpop.f32.mrf.mxu0
    %v1824 = vadd.f32 0.0, %v1823
    %1825 = vmatprep.mubr.f32.mxu0 0.0
    %1826 = vmatmul.mubr.f32.gmra.mxu0 %v1732
    %v1827 = vpop.f32.mrf.mxu0
    %v1828 = vadd.f32 0.0, %v1827
    %v1829 = vpop.f32.mrf.mxu0
    %v1830 = vadd.f32 0.0, %v1829
    %1831 = vmatprep.mubr.f32.mxu0 0.0
    %1832 = vmatmul.mubr.f32.gmra.mxu0 %v1735
    %v1833 = vpop.f32.mrf.mxu0
    %v1834 = vadd.f32 0.0, %v1833
    %v1835 = vpop.f32.mrf.mxu0
    %v1836 = vadd.f32 0.0, %v1835
    %1837 = vmatprep.mubr.f32.mxu0 0.0
    %1838 = vmatmul.mubr.f32.gmra.mxu0 %v1738
    %v1839 = vpop.f32.mrf.mxu0
    %v1840 = vadd.f32 0.0, %v1839
    %v1841 = vpop.f32.mrf.mxu0
    %v1842 = vadd.f32 0.0, %v1841
    %1843 = vmatprep.mubr.f32.mxu0 0.0
    %1844 = vmatmul.mubr.f32.gmra.mxu0 %v1741
    %v1845 = vpop.f32.mrf.mxu0
    %v1846 = vadd.f32 0.0, %v1845
    %v1847 = vpop.f32.mrf.mxu0
    %v1848 = vadd.f32 0.0, %v1847
    %1849 = vmatprep.mubr.f32.mxu0 0.0
    %1850 = vmatmul.mubr.f32.gmra.mxu0 %v1744
    %v1851 = vpop.f32.mrf.mxu0
    %v1852 = vadd.f32 0.0, %v1851
    %v1853 = vpop.f32.mrf.mxu0
    %v1854 = vadd.f32 0.0, %v1853
    %1855 = vmatprep.mubr.f32.mxu0 0.0
    %1856 = vmatmul.mubr.f32.gmra.mxu0 %v1747
    %v1857 = vpop.f32.mrf.mxu0
    %v1858 = vadd.f32 0.0, %v1857
    %v1859 = vpop.f32.mrf.mxu0
    %v1860 = vadd.f32 0.0, %v1859
    %1861 = vdwg.mxu0
    %v1862 = vmul.f32 %v1679, %v1816
    %v1863 = vmul.f32 %v1681, %v1818
    %v1864 = vmul.f32 %v1685, %v1822
    %v1865 = vmul.f32 %v1687, %v1824
    %v1866 = vmul.f32 %v1691, %v1828
    %v1867 = vmul.f32 %v1693, %v1830
    %v1868 = vmul.f32 %v1697, %v1834
    %v1869 = vmul.f32 %v1699, %v1836
    %v1870 = vmul.f32 %v1703, %v1840
    %v1871 = vmul.f32 %v1705, %v1842
    %v1872 = vmul.f32 %v1709, %v1846
    %v1873 = vmul.f32 %v1711, %v1848
    %v1874 = vmul.f32 %v1715, %v1852
    %v1875 = vmul.f32 %v1717, %v1854
    %v1876 = vmul.f32 %v1721, %v1858
    %v1877 = vmul.f32 %v1723, %v1860
    %v1878 = vmul.f32 %v39, %v1862
    %v1879 = vmul.f32 %v40, %v1863
    %v1880 = vmul.f32 %v41, %v1864
    %v1881 = vmul.f32 %v42, %v1865
    %v1882 = vmul.f32 %v43, %v1866
    %v1883 = vmul.f32 %v44, %v1867
    %v1884 = vmul.f32 %v45, %v1868
    %v1885 = vmul.f32 %v46, %v1869
    %v1886 = vmul.f32 %v47, %v1870
    %v1887 = vmul.f32 %v48, %v1871
    %v1888 = vmul.f32 %v49, %v1872
    %v1889 = vmul.f32 %v50, %v1873
    %v1890 = vmul.f32 %v51, %v1874
    %v1891 = vmul.f32 %v52, %v1875
    %v1892 = vmul.f32 %v53, %v1876
    %v1893 = vmul.f32 %v54, %v1877
    %1894 = vst [vmem:[#allocation2] sm:$0xff] %v1878
    %1895 = vst [vmem:[#allocation2 + $0x8] sm:$0xff] %v1879
    %1896 = vst [vmem:[#allocation2 + $0x10] sm:$0xff] %v1880
    %1897 = vst [vmem:[#allocation2 + $0x18] sm:$0xff] %v1881
    %1898 = vst [vmem:[#allocation2 + $0x20] sm:$0xff] %v1882
    %1899 = vst [vmem:[#allocation2 + $0x28] sm:$0xff] %v1883
    %1900 = vst [vmem:[#allocation2 + $0x30] sm:$0xff] %v1884
    %1901 = vst [vmem:[#allocation2 + $0x38] sm:$0xff] %v1885
    %1902 = vst [vmem:[#allocation2 + $0x40] sm:$0xff] %v1886
    %1903 = vst [vmem:[#allocation2 + $0x48] sm:$0xff] %v1887
    %1904 = vst [vmem:[#allocation2 + $0x50] sm:$0xff] %v1888
    %1905 = vst [vmem:[#allocation2 + $0x58] sm:$0xff] %v1889
    %1906 = vst [vmem:[#allocation2 + $0x60] sm:$0xff] %v1890
    %1907 = vst [vmem:[#allocation2 + $0x68] sm:$0xff] %v1891
    %1908 = vst [vmem:[#allocation2 + $0x70] sm:$0xff] %v1892
    %1909 = vst [vmem:[#allocation2 + $0x78] sm:$0xff] %v1893
    // Predicated region
    $region46: #{tpu_custom_call.1} parent=1 // pred_check
      _
    $region47: #{tpu_custom_call.1} parent=1 // pred_check_branch
      %1911 = sbr.rel (0) target = $region49
    $region48: #{tpu_custom_call.1} parent=1 // pred_region
      %s1913 = ssub.s32 2048, 2048
      %1914 = vsyncadd [#allocation3], %s1913
      %s1915 = sshll.u32 [#allocation2], 4
      %s1916 = int_to_ptr.vmem [resolvable:$true] %s1915
      %1921 = dma.vmem_to_hbm [thread:$0]  %s1916, 2048, %s11, [#allocation3], 256, 256, 16
    $region49: #{tpu_custom_call.1} parent=1 // pred_fallthru
      _
    // Predicated region
    $region50: #{tpu_custom_call.1} parent=1 // pred_check
      _
    $region51: #{tpu_custom_call.1} parent=1 // pred_check_branch
      %1923 = sbr.rel (0) target = $region53
    $region52: #{tpu_custom_call.1} parent=1 // pred_region
      %1924 = dma.done [#allocation3], 2048
    $region53: #{tpu_custom_call.1} parent=1 // pred_fallthru
      _
    %1925 = vsyncpa [#allocation3], 1

</llo_original>
